<compile_context>
chip_gen: v5e
topology: v5e:2x2
jax: 0.10.0
libtpu: 0.0.40
codegen_flags: <defaults>
</compile_context>

<pallas_src>
import functools
import math

import jax
import jax.numpy as jnp
from jax.experimental import pallas as pl
from jax.experimental.pallas import tpu as pltpu

CUTOFF_LOWER = 1e-12
CUTOFF_UPPER = 5.0
NUM_RBF = 100


def _round_up(x, m):
    return ((x + m - 1) // m) * m


def _make_params(cutoff_lower=CUTOFF_LOWER, cutoff_upper=CUTOFF_UPPER,
                 num_rbf=NUM_RBF):
    """Deterministic parameter init, matching ExpNormalSmearing._initial_params."""
    start_value = math.exp(-cutoff_upper + cutoff_lower)
    means = jnp.linspace(start_value, 1.0, num_rbf, dtype=jnp.float32)
    betas = jnp.full((num_rbf,),
                     (2.0 / num_rbf * (1.0 - start_value)) ** (-2),
                     dtype=jnp.float32)
    alpha = 5.0 / (cutoff_upper - cutoff_lower)
    return means, betas, alpha


def _expnorm_kernel(dist_ref, const_ref, out_ref, *,
                    alpha, cutoff_lower, cutoff_upper, exp_in_bf16):
    d = dist_ref[...]                     # (tile_n, 1) f32
    c = const_ref[...]                    # (2, R)      f32
    means = c[0:1, :]                     # (1, R)
    neg_betas = c[1:2, :]                 # (1, R)  == -betas (host pre-folded)

    # exp(-betas * (exp(alpha * (cutoff_lower - d)) - means)^2)
    e = jnp.exp(alpha * (cutoff_lower - d))          # (tile_n, 1), EUP
    diff = e - means                                 # (tile_n, R) broadcast
    arg = neg_betas * diff * diff                    # (tile_n, R), VPU
    if exp_in_bf16:
        # v6e/v7x lever: bf16 EUP path ~2x exp throughput (~3 sig. digits).
        rbf = jnp.exp(arg.astype(jnp.bfloat16)).astype(jnp.float32)
    else:
        rbf = jnp.exp(arg)

    # CosineCutoff(0, cutoff_upper): 0.5*(cos(pi*d/upper)+1) * (d < upper)
    cut = 0.5 * (jnp.cos(d * (math.pi / cutoff_upper)) + 1.0)
    cut = jnp.where(d < cutoff_upper, cut, 0.0)      # (tile_n, 1)

    out_ref[...] = (rbf * cut).astype(out_ref.dtype)


def exp_normal_smearing(dist, *, tile_n=2048,
                        cutoff_lower=CUTOFF_LOWER,
                        cutoff_upper=CUTOFF_UPPER,
                        num_rbf=NUM_RBF,
                        out_dtype=jnp.float32,
                        exp_in_bf16=False):
    """dist: (N,) float -> (N, num_rbf) array of out_dtype."""
    means, betas, alpha = _make_params(cutoff_lower, cutoff_upper, num_rbf)
    const = jnp.stack([means, -betas], axis=0)        # (2, R)

    n = dist.shape[0]
    # Shrink the tile for small inputs (keep the sublane dim a multiple of 8),
    # then pad N up to a whole number of tiles; padded tail is sliced off.
    tile_n = max(8, min(int(tile_n), _round_up(n, 8)))
    tile_n = _round_up(tile_n, 8)
    n_pad = _round_up(n, tile_n)

    dist2 = dist.astype(jnp.float32)
    if n_pad != n:
        dist2 = jnp.pad(dist2, (0, n_pad - n))
    dist2 = dist2.reshape(n_pad, 1)

    kernel = functools.partial(
        _expnorm_kernel,
        alpha=float(alpha),
        cutoff_lower=float(cutoff_lower),
        cutoff_upper=float(cutoff_upper),
        exp_in_bf16=bool(exp_in_bf16),
    )

    out_bytes = n_pad * num_rbf * jnp.dtype(out_dtype).itemsize
    cost = pl.CostEstimate(
        flops=6 * n_pad * num_rbf,
        transcendentals=n_pad * (num_rbf + 2),
        bytes_accessed=4 * n_pad + 8 * num_rbf + out_bytes,
    )

    grid = (n_pad // tile_n,)
    out = pl.pallas_call(
        kernel,
        out_shape=jax.ShapeDtypeStruct((n_pad, num_rbf), out_dtype),
        grid_spec=pltpu.PrefetchScalarGridSpec(
            num_scalar_prefetch=0,
            grid=grid,
            in_specs=[
                pl.BlockSpec((tile_n, 1), lambda i: (i, 0)),
                pl.BlockSpec((2, num_rbf), lambda i: (0, 0)),
            ],
            out_specs=pl.BlockSpec((tile_n, num_rbf), lambda i: (i, 0)),
        ),
        compiler_params=pltpu.CompilerParams(
            dimension_semantics=("parallel",),
            vmem_limit_bytes=32 * 1024 * 1024,
        ),
        cost_estimate=cost,
    )(dist2, const)

    if n_pad != n:
        out = out[:n]
    return out


def _reference(dist, cutoff_lower=CUTOFF_LOWER, cutoff_upper=CUTOFF_UPPER,
               num_rbf=NUM_RBF):
    means, betas, alpha = _make_params(cutoff_lower, cutoff_upper, num_rbf)
    d = dist.reshape(-1, 1).astype(jnp.float32)
    rbf = jnp.exp(-betas[None, :] *
                  (jnp.exp(alpha * (cutoff_lower - d)) - means[None, :]) ** 2)
    cut = 0.5 * (jnp.cos(d * math.pi / cutoff_upper) + 1.0)
    cut = cut * (d < cutoff_upper).astype(d.dtype)
    return rbf * cut


if __name__ == "__main__":
    key = jax.random.PRNGKey(0)

    # Small demo: flat vector of pairwise distances in [0, 6] so some exceed
    # cutoff_upper=5.0 (exercises the cutoff mask).
    n0 = 256
    dist0 = jax.random.uniform(key, (n0,), dtype=jnp.float32) * 6.0
    out0 = jax.block_until_ready(exp_normal_smearing(dist0))
    ref0 = _reference(dist0)
    assert out0.shape == (n0, NUM_RBF)
    assert jnp.allclose(out0, ref0, atol=1e-5, rtol=1e-5)

    # Ragged N (not a multiple of the tile or of 8): exercises the cdiv grid,
    # zero-padding and tail slicing path with a multi-step grid.
    n1 = 1003
    dist1 = jax.random.uniform(jax.random.PRNGKey(1), (n1,), dtype=jnp.float32) * 6.0
    out1 = jax.block_until_ready(exp_normal_smearing(dist1, tile_n=512))
    ref1 = _reference(dist1)
    assert out1.shape == (n1, NUM_RBF)
    assert jnp.allclose(out1, ref1, atol=1e-5, rtol=1e-5)

    # bf16 output path (halves HBM writeback on mem-bound chips); loose check.
    out_bf16 = jax.block_until_ready(
        exp_normal_smearing(dist0, out_dtype=jnp.bfloat16))
    assert out_bf16.dtype == jnp.bfloat16
    assert jnp.allclose(out_bf16.astype(jnp.float32), ref0, atol=1e-2, rtol=1e-2)

    print("KERNEL_OK")
</pallas_src>

<mosaic_0001>
module attributes {stable_mosaic.version = 11 : i64} {
  func.func @_expnorm_kernel(%arg0: i32, %arg1: memref<256x1xf32, #tpu.memory_space<vmem>>, %arg2: memref<2x100xf32, #tpu.memory_space<vmem>>, %arg3: memref<256x100xf32, #tpu.memory_space<vmem>>) attributes {dimension_semantics = [#tpu.dimension_semantics<parallel>], iteration_bounds = array<i64: 1>, scalar_prefetch = 0 : i64, scratch_operands = 0 : i64, tpu.core_type = #tpu.core_type<tc>, window_params = [{transform_indices = @transform_0, window_bounds = array<i64: 256, 1>}, {pipeline_mode = #tpu.pipeline_mode<synchronous>, transform_indices = @transform_1, window_bounds = array<i64: 2, 100>}, {transform_indices = @transform_2, window_bounds = array<i64: 256, 100>}]} {
    %c0 = arith.constant 0 : index
    %c0_0 = arith.constant 0 : index
    %0 = vector.load %arg1[%c0, %c0_0] : memref<256x1xf32, #tpu.memory_space<vmem>>, vector<256x1xf32>
    %c0_1 = arith.constant 0 : index
    %c0_2 = arith.constant 0 : index
    %1 = vector.load %arg2[%c0_1, %c0_2] : memref<2x100xf32, #tpu.memory_space<vmem>>, vector<2x100xf32>
    %2 = vector.extract_strided_slice %1 {offsets = [0, 0], sizes = [1, 100], strides = [1, 1]} : vector<2x100xf32> to vector<1x100xf32>
    %3 = vector.extract_strided_slice %1 {offsets = [1, 0], sizes = [1, 100], strides = [1, 1]} : vector<2x100xf32> to vector<1x100xf32>
    %cst = arith.constant 9.99999996E-13 : f32
    %4 = vector.broadcast %cst : f32 to vector<256x1xf32>
    %5 = arith.subf %4, %0 : vector<256x1xf32>
    %cst_3 = arith.constant 1.000000e+00 : f32
    %6 = vector.broadcast %cst_3 : f32 to vector<256x1xf32>
    %7 = arith.mulf %6, %5 : vector<256x1xf32>
    %8 = math.exp %7 : vector<256x1xf32>
    %9 = vector.broadcast %8 : vector<256x1xf32> to vector<256x100xf32>
    %10 = vector.broadcast %2 : vector<1x100xf32> to vector<256x100xf32>
    %11 = arith.subf %9, %10 : vector<256x100xf32>
    %12 = vector.broadcast %3 : vector<1x100xf32> to vector<256x100xf32>
    %13 = arith.mulf %12, %11 : vector<256x100xf32>
    %14 = arith.mulf %13, %11 : vector<256x100xf32>
    %15 = math.exp %14 : vector<256x100xf32>
    %cst_4 = arith.constant 0.628318548 : f32
    %16 = vector.broadcast %cst_4 : f32 to vector<256x1xf32>
    %17 = arith.mulf %0, %16 : vector<256x1xf32>
    %18 = math.cos %17 : vector<256x1xf32>
    %cst_5 = arith.constant 1.000000e+00 : f32
    %19 = vector.broadcast %cst_5 : f32 to vector<256x1xf32>
    %20 = arith.addf %18, %19 : vector<256x1xf32>
    %cst_6 = arith.constant 5.000000e-01 : f32
    %21 = vector.broadcast %cst_6 : f32 to vector<256x1xf32>
    %22 = arith.mulf %21, %20 : vector<256x1xf32>
    %cst_7 = arith.constant 5.000000e+00 : f32
    %23 = vector.broadcast %cst_7 : f32 to vector<256x1xf32>
    %24 = arith.cmpf olt, %0, %23 : vector<256x1xf32>
    %cst_8 = arith.constant 0.000000e+00 : f32
    %25 = vector.broadcast %cst_8 : f32 to vector<256x1xf32>
    %26 = arith.select %24, %22, %25 : vector<256x1xi1>, vector<256x1xf32>
    %27 = vector.broadcast %26 : vector<256x1xf32> to vector<256x100xf32>
    %28 = arith.mulf %15, %27 : vector<256x100xf32>
    %c0_9 = arith.constant 0 : index
    %c0_10 = arith.constant 0 : index
    %29 = vector.load %arg3[%c0_9, %c0_10] : memref<256x100xf32, #tpu.memory_space<vmem>>, vector<256x100xf32>
    tpu.vector_store %arg3[%c0_9, %c0_10], %28 {strides = array<i32>} : memref<256x100xf32, #tpu.memory_space<vmem>>, vector<256x100xf32>,
    return
  }
  func.func @transform_0(%arg0: i32) -> (i32, i32) {
    %c0_i32 = arith.constant 0 : i32
    %c0_i32_0 = arith.constant 0 : i32
    return %arg0, %c0_i32 : i32, i32
  }
  func.func @transform_1(%arg0: i32) -> (i32, i32) {
    %c0_i32 = arith.constant 0 : i32
    %c0_i32_0 = arith.constant 0 : i32
    %c0_i32_1 = arith.constant 0 : i32
    return %c0_i32, %c0_i32_0 : i32, i32
  }
  func.func @transform_2(%arg0: i32) -> (i32, i32) {
    %c0_i32 = arith.constant 0 : i32
    %c0_i32_0 = arith.constant 0 : i32
    return %arg0, %c0_i32 : i32, i32
  }
}

</mosaic_0001>

<llo_original>
// kernel: tpu_custom_call.1
$region0: #{tpu_custom_call.1}
  #allocation0 [shape = 'u32[]', space=smem, size = 0x4, offset = 0x4, fixed_abs, tag = 'smem constant byte address 0x4 - core index']
  #allocation1 [shape = 'u32[72,128]{1,0:T(1,128)}', space=vmem, size = 0x9000, scoped, tag = 'internal scratch']
  %s0 = inlined_call_operand.vmem [shape: f32[256,1], index: 0, kind: input, shape index: {}]
  %s1 = inlined_call_operand.vmem [shape: f32[2,100], index: 1, kind: input, shape index: {}]
  %s2 = inlined_call_operand.vmem [shape: f32[256,100], index: 2, kind: output, shape index: {}]
  %s3 = sld [smem:[#allocation0]]
  $region18: #{tpu_custom_call.1} parent=0
    _
  %s5 = ssub.s32 1, %s3
  %s6 = scalar_select 0, %s5, %s3
  // Predicated region
  $region2: #{tpu_custom_call.1} parent=0 // pred_check
    _
  $region3: #{tpu_custom_call.1} parent=0 // pred_check_branch
    %8 = sbr.rel (0) target = $region5
  $region4: #{tpu_custom_call.1} parent=0 // pred_region
    _
  $region5: #{tpu_custom_call.1} parent=0 // pred_fallthru
    _
  // Predicated region
  $region6: #{tpu_custom_call.1} parent=0 // pred_check
    _
  $region7: #{tpu_custom_call.1} parent=0 // pred_check_branch
    %10 = sbr.rel (0) target = $region9
  $region8: #{tpu_custom_call.1} parent=0 // pred_region
    _
  $region9: #{tpu_custom_call.1} parent=0 // pred_fallthru
    _
  %v11 = vld [vmem:[%s0] sm:$0xff]
  %v12 = vld [vmem:[%s0 + $0x8] sm:$0xff]
  %v13 = vld [vmem:[%s0 + $0x10] sm:$0xff]
  %v14 = vld [vmem:[%s0 + $0x18] sm:$0xff]
  %v15 = vld [vmem:[%s0 + $0x20] sm:$0xff]
  %v16 = vld [vmem:[%s0 + $0x28] sm:$0xff]
  %v17 = vld [vmem:[%s0 + $0x30] sm:$0xff]
  %v18 = vld [vmem:[%s0 + $0x38] sm:$0xff]
  %v19 = vld [vmem:[%s0 + $0x40] sm:$0xff]
  %v20 = vld [vmem:[%s0 + $0x48] sm:$0xff]
  %v21 = vld [vmem:[%s0 + $0x50] sm:$0xff]
  %v22 = vld [vmem:[%s0 + $0x58] sm:$0xff]
  %v23 = vld [vmem:[%s0 + $0x60] sm:$0xff]
  %v24 = vld [vmem:[%s0 + $0x68] sm:$0xff]
  %v25 = vld [vmem:[%s0 + $0x70] sm:$0xff]
  %v26 = vld [vmem:[%s0 + $0x78] sm:$0xff]
  %v27 = vld [vmem:[%s0 + $0x80] sm:$0xff]
  %v28 = vld [vmem:[%s0 + $0x88] sm:$0xff]
  %v29 = vld [vmem:[%s0 + $0x90] sm:$0xff]
  %v30 = vld [vmem:[%s0 + $0x98] sm:$0xff]
  %v31 = vld [vmem:[%s0 + $0xa0] sm:$0xff]
  %v32 = vld [vmem:[%s0 + $0xa8] sm:$0xff]
  %v33 = vld [vmem:[%s0 + $0xb0] sm:$0xff]
  %v34 = vld [vmem:[%s0 + $0xb8] sm:$0xff]
  %v35 = vld [vmem:[%s0 + $0xc0] sm:$0xff]
  %v36 = vld [vmem:[%s0 + $0xc8] sm:$0xff]
  %v37 = vld [vmem:[%s0 + $0xd0] sm:$0xff]
  %v38 = vld [vmem:[%s0 + $0xd8] sm:$0xff]
  %v39 = vld [vmem:[%s0 + $0xe0] sm:$0xff]
  %v40 = vld [vmem:[%s0 + $0xe8] sm:$0xff]
  %v41 = vld [vmem:[%s0 + $0xf0] sm:$0xff]
  %v42 = vld [vmem:[%s0 + $0xf8] sm:$0xff]
  %v43 = vld [vmem:[%s1] sm:$0x3]
  %v44 = vsub.f32 1e-12, %v11
  %v45 = vsub.f32 1e-12, %v12
  %v46 = vsub.f32 1e-12, %v13
  %v47 = vsub.f32 1e-12, %v14
  %v48 = vsub.f32 1e-12, %v15
  %v49 = vsub.f32 1e-12, %v16
  %v50 = vsub.f32 1e-12, %v17
  %v51 = vsub.f32 1e-12, %v18
  %v52 = vsub.f32 1e-12, %v19
  %v53 = vsub.f32 1e-12, %v20
  %v54 = vsub.f32 1e-12, %v21
  %v55 = vsub.f32 1e-12, %v22
  %v56 = vsub.f32 1e-12, %v23
  %v57 = vsub.f32 1e-12, %v24
  %v58 = vsub.f32 1e-12, %v25
  %v59 = vsub.f32 1e-12, %v26
  %v60 = vsub.f32 1e-12, %v27
  %v61 = vsub.f32 1e-12, %v28
  %v62 = vsub.f32 1e-12, %v29
  %v63 = vsub.f32 1e-12, %v30
  %v64 = vsub.f32 1e-12, %v31
  %v65 = vsub.f32 1e-12, %v32
  %v66 = vsub.f32 1e-12, %v33
  %v67 = vsub.f32 1e-12, %v34
  %v68 = vsub.f32 1e-12, %v35
  %v69 = vsub.f32 1e-12, %v36
  %v70 = vsub.f32 1e-12, %v37
  %v71 = vsub.f32 1e-12, %v38
  %v72 = vsub.f32 1e-12, %v39
  %v73 = vsub.f32 1e-12, %v40
  %v74 = vsub.f32 1e-12, %v41
  %v75 = vsub.f32 1e-12, %v42
  %v76 = vmul.f32 %v44, 1.442695
  %v77 = vpow.pop %v76
  %v78 = vmul.f32 %v45, 1.442695
  %v79 = vpow.pop %v78
  %v80 = vmul.f32 %v46, 1.442695
  %v81 = vpow.pop %v80
  %v82 = vmul.f32 %v47, 1.442695
  %v83 = vpow.pop %v82
  %v84 = vmul.f32 %v48, 1.442695
  %v85 = vpow.pop %v84
  %v86 = vmul.f32 %v49, 1.442695
  %v87 = vpow.pop %v86
  %v88 = vmul.f32 %v50, 1.442695
  %v89 = vpow.pop %v88
  %v90 = vmul.f32 %v51, 1.442695
  %v91 = vpow.pop %v90
  %v92 = vmul.f32 %v52, 1.442695
  %v93 = vpow.pop %v92
  %v94 = vmul.f32 %v53, 1.442695
  %v95 = vpow.pop %v94
  %v96 = vmul.f32 %v54, 1.442695
  %v97 = vpow.pop %v96
  %v98 = vmul.f32 %v55, 1.442695
  %v99 = vpow.pop %v98
  %v100 = vmul.f32 %v56, 1.442695
  %v101 = vpow.pop %v100
  %v102 = vmul.f32 %v57, 1.442695
  %v103 = vpow.pop %v102
  %v104 = vmul.f32 %v58, 1.442695
  %v105 = vpow.pop %v104
  %v106 = vmul.f32 %v59, 1.442695
  %v107 = vpow.pop %v106
  %v108 = vmul.f32 %v60, 1.442695
  %v109 = vpow.pop %v108
  %v110 = vmul.f32 %v61, 1.442695
  %v111 = vpow.pop %v110
  %v112 = vmul.f32 %v62, 1.442695
  %v113 = vpow.pop %v112
  %v114 = vmul.f32 %v63, 1.442695
  %v115 = vpow.pop %v114
  %v116 = vmul.f32 %v64, 1.442695
  %v117 = vpow.pop %v116
  %v118 = vmul.f32 %v65, 1.442695
  %v119 = vpow.pop %v118
  %v120 = vmul.f32 %v66, 1.442695
  %v121 = vpow.pop %v120
  %v122 = vmul.f32 %v67, 1.442695
  %v123 = vpow.pop %v122
  %v124 = vmul.f32 %v68, 1.442695
  %v125 = vpow.pop %v124
  %v126 = vmul.f32 %v69, 1.442695
  %v127 = vpow.pop %v126
  %v128 = vmul.f32 %v70, 1.442695
  %v129 = vpow.pop %v128
  %v130 = vmul.f32 %v71, 1.442695
  %v131 = vpow.pop %v130
  %v132 = vmul.f32 %v72, 1.442695
  %v133 = vpow.pop %v132
  %v134 = vmul.f32 %v73, 1.442695
  %v135 = vpow.pop %v134
  %v136 = vmul.f32 %v74, 1.442695
  %v137 = vpow.pop %v136
  %v138 = vmul.f32 %v75, 1.442695
  %v139 = vpow.pop %v138
  %141 = vset.pattern.permute.xlu0 0
  %142 = vperm.xlu0 %141, %v77
  %v143 = vpop.permute.xlu0 %142
  %146 = vset.pattern.permute.xlu0 0
  %147 = vperm.xlu0 %146, %v79
  %v148 = vpop.permute.xlu0 %147
  %151 = vset.pattern.permute.xlu0 0
  %152 = vperm.xlu0 %151, %v81
  %v153 = vpop.permute.xlu0 %152
  %156 = vset.pattern.permute.xlu0 0
  %157 = vperm.xlu0 %156, %v83
  %v158 = vpop.permute.xlu0 %157
  %161 = vset.pattern.permute.xlu0 0
  %162 = vperm.xlu0 %161, %v85
  %v163 = vpop.permute.xlu0 %162
  %166 = vset.pattern.permute.xlu0 0
  %167 = vperm.xlu0 %166, %v87
  %v168 = vpop.permute.xlu0 %167
  %171 = vset.pattern.permute.xlu0 0
  %172 = vperm.xlu0 %171, %v89
  %v173 = vpop.permute.xlu0 %172
  %176 = vset.pattern.permute.xlu0 0
  %177 = vperm.xlu0 %176, %v91
  %v178 = vpop.permute.xlu0 %177
  %181 = vset.pattern.permute.xlu0 0
  %182 = vperm.xlu0 %181, %v93
  %v183 = vpop.permute.xlu0 %182
  %186 = vset.pattern.permute.xlu0 0
  %187 = vperm.xlu0 %186, %v95
  %v188 = vpop.permute.xlu0 %187
  %191 = vset.pattern.permute.xlu0 0
  %192 = vperm.xlu0 %191, %v97
  %v193 = vpop.permute.xlu0 %192
  %196 = vset.pattern.permute.xlu0 0
  %197 = vperm.xlu0 %196, %v99
  %v198 = vpop.permute.xlu0 %197
  %201 = vset.pattern.permute.xlu0 0
  %202 = vperm.xlu0 %201, %v101
  %v203 = vpop.permute.xlu0 %202
  %206 = vset.pattern.permute.xlu0 0
  %207 = vperm.xlu0 %206, %v103
  %v208 = vpop.permute.xlu0 %207
  %211 = vset.pattern.permute.xlu0 0
  %212 = vperm.xlu0 %211, %v105
  %v213 = vpop.permute.xlu0 %212
  %216 = vset.pattern.permute.xlu0 0
  %217 = vperm.xlu0 %216, %v107
  %v218 = vpop.permute.xlu0 %217
  %221 = vset.pattern.permute.xlu0 0
  %222 = vperm.xlu0 %221, %v109
  %v223 = vpop.permute.xlu0 %222
  %226 = vset.pattern.permute.xlu0 0
  %227 = vperm.xlu0 %226, %v111
  %v228 = vpop.permute.xlu0 %227
  %231 = vset.pattern.permute.xlu0 0
  %232 = vperm.xlu0 %231, %v113
  %v233 = vpop.permute.xlu0 %232
  %236 = vset.pattern.permute.xlu0 0
  %237 = vperm.xlu0 %236, %v115
  %v238 = vpop.permute.xlu0 %237
  %241 = vset.pattern.permute.xlu0 0
  %242 = vperm.xlu0 %241, %v117
  %v243 = vpop.permute.xlu0 %242
  %246 = vset.pattern.permute.xlu0 0
  %247 = vperm.xlu0 %246, %v119
  %v248 = vpop.permute.xlu0 %247
  %251 = vset.pattern.permute.xlu0 0
  %252 = vperm.xlu0 %251, %v121
  %v253 = vpop.permute.xlu0 %252
  %256 = vset.pattern.permute.xlu0 0
  %257 = vperm.xlu0 %256, %v123
  %v258 = vpop.permute.xlu0 %257
  %261 = vset.pattern.permute.xlu0 0
  %262 = vperm.xlu0 %261, %v125
  %v263 = vpop.permute.xlu0 %262
  %266 = vset.pattern.permute.xlu0 0
  %267 = vperm.xlu0 %266, %v127
  %v268 = vpop.permute.xlu0 %267
  %271 = vset.pattern.permute.xlu0 0
  %272 = vperm.xlu0 %271, %v129
  %v273 = vpop.permute.xlu0 %272
  %276 = vset.pattern.permute.xlu0 0
  %277 = vperm.xlu0 %276, %v131
  %v278 = vpop.permute.xlu0 %277
  %281 = vset.pattern.permute.xlu0 0
  %282 = vperm.xlu0 %281, %v133
  %v283 = vpop.permute.xlu0 %282
  %286 = vset.pattern.permute.xlu0 0
  %287 = vperm.xlu0 %286, %v135
  %v288 = vpop.permute.xlu0 %287
  %291 = vset.pattern.permute.xlu0 0
  %292 = vperm.xlu0 %291, %v137
  %v293 = vpop.permute.xlu0 %292
  %296 = vset.pattern.permute.xlu0 0
  %297 = vperm.xlu0 %296, %v139
  %v298 = vpop.permute.xlu0 %297
  %v300 = vperm.slane %v43, 0
  %v301 = vsub.f32 %v143, %v300
  %v302 = vsub.f32 %v148, %v300
  %v303 = vsub.f32 %v153, %v300
  %v304 = vsub.f32 %v158, %v300
  %v305 = vsub.f32 %v163, %v300
  %v306 = vsub.f32 %v168, %v300
  %v307 = vsub.f32 %v173, %v300
  %v308 = vsub.f32 %v178, %v300
  %v309 = vsub.f32 %v183, %v300
  %v310 = vsub.f32 %v188, %v300
  %v311 = vsub.f32 %v193, %v300
  %v312 = vsub.f32 %v198, %v300
  %v313 = vsub.f32 %v203, %v300
  %v314 = vsub.f32 %v208, %v300
  %v315 = vsub.f32 %v213, %v300
  %v316 = vsub.f32 %v218, %v300
  %v317 = vsub.f32 %v223, %v300
  %v318 = vsub.f32 %v228, %v300
  %v319 = vsub.f32 %v233, %v300
  %v320 = vsub.f32 %v238, %v300
  %v321 = vsub.f32 %v243, %v300
  %v322 = vsub.f32 %v248, %v300
  %v323 = vsub.f32 %v253, %v300
  %v324 = vsub.f32 %v258, %v300
  %v325 = vsub.f32 %v263, %v300
  %v326 = vsub.f32 %v268, %v300
  %v327 = vsub.f32 %v273, %v300
  %v328 = vsub.f32 %v278, %v300
  %v329 = vsub.f32 %v283, %v300
  %v330 = vsub.f32 %v288, %v300
  %v331 = vsub.f32 %v293, %v300
  %v332 = vsub.f32 %v298, %v300
  %v333 = vperm.slane %v43, 1
  %v334 = vmul.f32 %v333, %v301
  %v335 = vmul.f32 %v333, %v302
  %v336 = vmul.f32 %v333, %v303
  %v337 = vmul.f32 %v333, %v304
  %v338 = vmul.f32 %v333, %v305
  %v339 = vmul.f32 %v333, %v306
  %v340 = vmul.f32 %v333, %v307
  %v341 = vmul.f32 %v333, %v308
  %v342 = vmul.f32 %v333, %v309
  %v343 = vmul.f32 %v333, %v310
  %v344 = vmul.f32 %v333, %v311
  %v345 = vmul.f32 %v333, %v312
  %v346 = vmul.f32 %v333, %v313
  %v347 = vmul.f32 %v333, %v314
  %v348 = vmul.f32 %v333, %v315
  %v349 = vmul.f32 %v333, %v316
  %v350 = vmul.f32 %v333, %v317
  %v351 = vmul.f32 %v333, %v318
  %v352 = vmul.f32 %v333, %v319
  %v353 = vmul.f32 %v333, %v320
  %v354 = vmul.f32 %v333, %v321
  %v355 = vmul.f32 %v333, %v322
  %v356 = vmul.f32 %v333, %v323
  %v357 = vmul.f32 %v333, %v324
  %v358 = vmul.f32 %v333, %v325
  %v359 = vmul.f32 %v333, %v326
  %v360 = vmul.f32 %v333, %v327
  %v361 = vmul.f32 %v333, %v328
  %v362 = vmul.f32 %v333, %v329
  %v363 = vmul.f32 %v333, %v330
  %v364 = vmul.f32 %v333, %v331
  %v365 = vmul.f32 %v333, %v332
  %v366 = vmul.f32 %v334, %v301
  %v367 = vmul.f32 %v335, %v302
  %v368 = vmul.f32 %v336, %v303
  %v369 = vmul.f32 %v337, %v304
  %v370 = vmul.f32 %v338, %v305
  %v371 = vmul.f32 %v339, %v306
  %v372 = vmul.f32 %v340, %v307
  %v373 = vmul.f32 %v341, %v308
  %v374 = vmul.f32 %v342, %v309
  %v375 = vmul.f32 %v343, %v310
  %v376 = vmul.f32 %v344, %v311
  %v377 = vmul.f32 %v345, %v312
  %v378 = vmul.f32 %v346, %v313
  %v379 = vmul.f32 %v347, %v314
  %v380 = vmul.f32 %v348, %v315
  %v381 = vmul.f32 %v349, %v316
  %v382 = vmul.f32 %v350, %v317
  %v383 = vmul.f32 %v351, %v318
  %v384 = vmul.f32 %v352, %v319
  %v385 = vmul.f32 %v353, %v320
  %v386 = vmul.f32 %v354, %v321
  %v387 = vmul.f32 %v355, %v322
  %v388 = vmul.f32 %v356, %v323
  %v389 = vmul.f32 %v357, %v324
  %v390 = vmul.f32 %v358, %v325
  %v391 = vmul.f32 %v359, %v326
  %v392 = vmul.f32 %v360, %v327
  %v393 = vmul.f32 %v361, %v328
  %v394 = vmul.f32 %v362, %v329
  %v395 = vmul.f32 %v363, %v330
  %v396 = vmul.f32 %v364, %v331
  %v397 = vmul.f32 %v365, %v332
  %v398 = vmul.f32 %v366, 1.442695
  %v399 = vpow.pop %v398
  %v400 = vmul.f32 %v367, 1.442695
  %v401 = vpow.pop %v400
  %v402 = vmul.f32 %v368, 1.442695
  %v403 = vpow.pop %v402
  %v404 = vmul.f32 %v369, 1.442695
  %v405 = vpow.pop %v404
  %v406 = vmul.f32 %v370, 1.442695
  %v407 = vpow.pop %v406
  %v408 = vmul.f32 %v371, 1.442695
  %v409 = vpow.pop %v408
  %v410 = vmul.f32 %v372, 1.442695
  %v411 = vpow.pop %v410
  %v412 = vmul.f32 %v373, 1.442695
  %v413 = vpow.pop %v412
  %v414 = vmul.f32 %v374, 1.442695
  %v415 = vpow.pop %v414
  %v416 = vmul.f32 %v375, 1.442695
  %v417 = vpow.pop %v416
  %v418 = vmul.f32 %v376, 1.442695
  %v419 = vpow.pop %v418
  %v420 = vmul.f32 %v377, 1.442695
  %v421 = vpow.pop %v420
  %v422 = vmul.f32 %v378, 1.442695
  %v423 = vpow.pop %v422
  %v424 = vmul.f32 %v379, 1.442695
  %v425 = vpow.pop %v424
  %v426 = vmul.f32 %v380, 1.442695
  %v427 = vpow.pop %v426
  %v428 = vmul.f32 %v381, 1.442695
  %v429 = vpow.pop %v428
  %v430 = vmul.f32 %v382, 1.442695
  %v431 = vpow.pop %v430
  %v432 = vmul.f32 %v383, 1.442695
  %v433 = vpow.pop %v432
  %v434 = vmul.f32 %v384, 1.442695
  %v435 = vpow.pop %v434
  %v436 = vmul.f32 %v385, 1.442695
  %v437 = vpow.pop %v436
  %v438 = vmul.f32 %v386, 1.442695
  %v439 = vpow.pop %v438
  %v440 = vmul.f32 %v387, 1.442695
  %v441 = vpow.pop %v440
  %v442 = vmul.f32 %v388, 1.442695
  %v443 = vpow.pop %v442
  %v444 = vmul.f32 %v389, 1.442695
  %v445 = vpow.pop %v444
  %v446 = vmul.f32 %v390, 1.442695
  %v447 = vpow.pop %v446
  %v448 = vmul.f32 %v391, 1.442695
  %v449 = vpow.pop %v448
  %v450 = vmul.f32 %v392, 1.442695
  %v451 = vpow.pop %v450
  %v452 = vmul.f32 %v393, 1.442695
  %v453 = vpow.pop %v452
  %v454 = vmul.f32 %v394, 1.442695
  %v455 = vpow.pop %v454
  %v456 = vmul.f32 %v395, 1.442695
  %v457 = vpow.pop %v456
  %v458 = vmul.f32 %v396, 1.442695
  %v459 = vpow.pop %v458
  %v460 = vmul.f32 %v397, 1.442695
  %v461 = vpow.pop %v460
  %v462 = vmul.f32 %v11, 0.62831855
  %v463 = vmul.f32 %v12, 0.62831855
  %v464 = vmul.f32 %v13, 0.62831855
  %v465 = vmul.f32 %v14, 0.62831855
  %v466 = vmul.f32 %v15, 0.62831855
  %v467 = vmul.f32 %v16, 0.62831855
  %v468 = vmul.f32 %v17, 0.62831855
  %v469 = vmul.f32 %v18, 0.62831855
  %v470 = vmul.f32 %v19, 0.62831855
  %v471 = vmul.f32 %v20, 0.62831855
  %v472 = vmul.f32 %v21, 0.62831855
  %v473 = vmul.f32 %v22, 0.62831855
  %v474 = vmul.f32 %v23, 0.62831855
  %v475 = vmul.f32 %v24, 0.62831855
  %v476 = vmul.f32 %v25, 0.62831855
  %v477 = vmul.f32 %v26, 0.62831855
  %v478 = vmul.f32 %v27, 0.62831855
  %v479 = vmul.f32 %v28, 0.62831855
  %v480 = vmul.f32 %v29, 0.62831855
  %v481 = vmul.f32 %v30, 0.62831855
  %v482 = vmul.f32 %v31, 0.62831855
  %v483 = vmul.f32 %v32, 0.62831855
  %v484 = vmul.f32 %v33, 0.62831855
  %v485 = vmul.f32 %v34, 0.62831855
  %v486 = vmul.f32 %v35, 0.62831855
  %v487 = vmul.f32 %v36, 0.62831855
  %v488 = vmul.f32 %v37, 0.62831855
  %v489 = vmul.f32 %v38, 0.62831855
  %v490 = vmul.f32 %v39, 0.62831855
  %v491 = vmul.f32 %v40, 0.62831855
  %v492 = vmul.f32 %v41, 0.62831855
  %v493 = vmul.f32 %v42, 0.62831855
  %v494 = vand.u32 2147483647, %v462
  %vm495 = vcmp.le.f32.partialorder %v494, 0.7853982
  %vm496 = vcmp.lt.s32.totalorder %v462, 0
  %v497 = vand.u32 %v462, 2139095040
  %v498 = vshrl.u32 %v497, 23
  %v499 = vsub.s32 %v498, 127
  %v500 = vand.u32 2147483647, %v462
  %v501 = vand.u32 %v500, 8388607
  %v502 = vor.u32 %v501, 8388608
  %v503 = vsub.s32 0, %v502
  %v504 = vadd.s32 %v499, 1
  %vm505 = vcmp.gt.s32.totalorder %v504, 0
  %v506 = vsel %vm505, %v504, 0
  %v507 = vshrl.u32 %v506, 5
  %v508 = vand.u32 %v506, 31
  %v509 = vsub.s32 32, %v508
  %v510 = vshrl.u32 683565275, %v509
  %v511 = vshll.u32 683565275, %v508
  %v512 = vshrl.u32 2475754826, %v509
  %v513 = vor.u32 %v511, %v512
  %v514 = vshll.u32 2475754826, %v508
  %v515 = vshrl.u32 2131351028, %v509
  %v516 = vor.u32 %v514, %v515
  %v517 = vshll.u32 2131351028, %v508
  %v518 = vshrl.u32 2102212464, %v509
  %v519 = vor.u32 %v517, %v518
  %v520 = vshll.u32 2102212464, %v508
  %v521 = vshrl.u32 920167782, %v509
  %v522 = vor.u32 %v520, %v521
  %v523 = vshll.u32 920167782, %v508
  %v524 = vshrl.u32 1326507024, %v509
  %v525 = vor.u32 %v523, %v524
  %vm526 = vcmp.lt.s32.totalorder %v507, 1
  %vm527 = vcmp.lt.s32.totalorder %v507, 2
  %vm528 = vcmp.lt.s32.totalorder %v507, 3
  %vm529 = vcmp.lt.s32.totalorder %v507, 4
  %v530 = vsel %vm526, %v510, %v513
  %v531 = vsel %vm529, %v519, 2102212464
  %v532 = vsel %vm528, %v516, %v531
  %v533 = vsel %vm527, %v530, %v532
  %v534 = vsel %vm526, %v513, %v516
  %v535 = vsel %vm529, %v522, 920167782
  %v536 = vsel %vm528, %v519, %v535
  %v537 = vsel %vm527, %v534, %v536
  %v538 = vsel %vm526, %v516, %v519
  %v539 = vsel %vm529, %v525, 1326507024
  %v540 = vsel %vm528, %v522, %v539
  %v541 = vsel %vm527, %v538, %v540
  %v542 = vshll.u32 %v502, 8
  %v543 = vand.u32 %v542, 65535
  %v544 = vshrl.u32 %v542, 16
  %v545 = vand.u32 %v541, 65535
  %v546 = vshrl.u32 %v541, 16
  %v547 = vmul.u32 %v543, %v545
  %v548 = vmul.u32 %v543, %v546
  %v549 = vmul.u32 %v544, %v545
  %v550 = vmul.u32 %v544, %v546
  %v551 = vshll.u32 %v548, 16
  %v552 = vshrl.u32 %v548, 16
  %v553 = vshll.u32 %v549, 16
  %v554 = vshrl.u32 %v549, 16
  %vm555 = vc.u32 %v547, %v551
  %v556 = vsel %vm555, 1, 0
  %v557 = vadd.s32 %v547, %v551
  %v558 = vadd.s32 %v550, %v556
  %vm559 = vc.u32 %v557, %v553
  %v560 = vsel %vm559, 1, 0
  %v561 = vadd.s32 %v557, %v553
  %v562 = vadd.s32 %v558, %v560
  %v563 = vadd.s32 %v562, %v552
  %v564 = vadd.s32 %v563, %v554
  %v565 = vand.u32 %v542, 65535
  %v566 = vshrl.u32 %v542, 16
  %v567 = vand.u32 %v537, 65535
  %v568 = vshrl.u32 %v537, 16
  %v569 = vmul.u32 %v565, %v567
  %v570 = vmul.u32 %v565, %v568
  %v571 = vmul.u32 %v566, %v567
  %v572 = vmul.u32 %v566, %v568
  %v573 = vshll.u32 %v570, 16
  %v574 = vshrl.u32 %v570, 16
  %v575 = vshll.u32 %v571, 16
  %v576 = vshrl.u32 %v571, 16
  %vm577 = vc.u32 %v569, %v573
  %v578 = vsel %vm577, 1, 0
  %v579 = vadd.s32 %v569, %v573
  %v580 = vadd.s32 %v572, %v578
  %vm581 = vc.u32 %v579, %v575
  %v582 = vsel %vm581, 1, 0
  %v583 = vadd.s32 %v579, %v575
  %v584 = vadd.s32 %v580, %v582
  %v585 = vadd.s32 %v584, %v574
  %v586 = vadd.s32 %v585, %v576
  %v587 = vmul.u32 %v542, %v533
  %v588 = vadd.s32 %v564, %v583
  %vm589 = vc.u32 %v564, %v583
  %v590 = vadd.s32 %v586, 1
  %v591 = vsel %vm589, %v590, %v586
  %v592 = vadd.s32 %v587, %v591
  %v593 = vadd.s32 %v592, 536870912
  %v594 = vshrl.u32 %v593, 30
  %v595 = vshll.u32 %v594, 30
  %v596 = vsub.s32 %v592, %v595
  %vm597 = vcmp.lt.s32.totalorder %v596, 0
  %v598 = vsub.s32 0, %v596
  %v599 = vsel %vm597, %v598, %v596
  %v600 = vclz %v599
  %v601 = vsub.s32 %v600, 2
  %vm602 = vcmp.gt.s32.totalorder 0, %v601
  %v603 = vsel %vm602, 0, %v601
  %v604 = vsub.s32 32, %v603
  %v605 = vshll.u32 %v596, %v603
  %v606 = vshrl.u32 %v588, %v604
  %v607 = vor.u32 %v605, %v606
  %v608 = vsub.s32 4294967266, %v603
  %v609 = vadd.s32 %v608, 127
  %v610 = vshll.u32 %v609, 23
  %v611 = vor.u32 4788187, %v610
  %v612 = vand.u32 2147483647, %v611
  %v614 = vcvt.s32.f32 %v607
  %v615 = vmul.f32 %v614, %v612
  %v616 = vxor.u32 %v615, 2147483648
  %v617 = vsel %vm496, %v616, %v615
  %v618 = vsub.s32 4, %v594
  %v619 = vsel %vm496, %v618, %v594
  %v620 = vsel %vm495, %v462, %v617
  %v621 = vsel %vm495, 0, %v619
  %v622 = vmul.f32 %v620, %v620
  %v623 = vmul.f32 %v622, -0.001358992
  %v624 = vadd.f32 %v623, 0.041655596
  %v625 = vmul.f32 %v622, %v624
  %v626 = vadd.f32 %v625, -0.4999988
  %v627 = vmul.f32 %v622, %v626
  %v628 = vadd.f32 1.0, %v627
  %v629 = vmul.f32 %v620, %v620
  %v630 = vmul.f32 %v629, -0.00019511016
  %v631 = vadd.f32 %v630, 0.008332121
  %v632 = vmul.f32 %v629, %v631
  %v633 = vadd.f32 %v632, -0.16666654
  %v634 = vmul.f32 %v629, %v633
  %v635 = vadd.f32 %v634, 1.0
  %v636 = vmul.f32 %v635, %v620
  %vm637 = vweird.f32 %v462
  %v638 = vand.u32 %v621, 3
  %vm639 = vcmp.lt.s32.totalorder %v638, 2
  %vm640 = vcmp.eq.s32.totalorder %v638, 0
  %v641 = vxor.u32 %v636, 2147483648
  %v642 = vsel %vm640, %v628, %v641
  %vm643 = vcmp.eq.s32.totalorder %v638, 2
  %v644 = vxor.u32 %v628, 2147483648
  %v645 = vsel %vm643, %v644, %v636
  %v646 = vsel %vm639, %v642, %v645
  %v647 = vsel %vm637, nan, %v646
  %v648 = vand.u32 2147483647, %v463
  %vm649 = vcmp.le.f32.partialorder %v648, 0.7853982
  %vm650 = vcmp.lt.s32.totalorder %v463, 0
  %v651 = vand.u32 %v463, 2139095040
  %v652 = vshrl.u32 %v651, 23
  %v653 = vsub.s32 %v652, 127
  %v654 = vand.u32 2147483647, %v463
  %v655 = vand.u32 %v654, 8388607
  %v656 = vor.u32 %v655, 8388608
  %v657 = vsub.s32 0, %v656
  %v658 = vadd.s32 %v653, 1
  %vm659 = vcmp.gt.s32.totalorder %v658, 0
  %v660 = vsel %vm659, %v658, 0
  %v661 = vshrl.u32 %v660, 5
  %v662 = vand.u32 %v660, 31
  %v663 = vsub.s32 32, %v662
  %v664 = vshrl.u32 683565275, %v663
  %v665 = vshll.u32 683565275, %v662
  %v666 = vshrl.u32 2475754826, %v663
  %v667 = vor.u32 %v665, %v666
  %v668 = vshll.u32 2475754826, %v662
  %v669 = vshrl.u32 2131351028, %v663
  %v670 = vor.u32 %v668, %v669
  %v671 = vshll.u32 2131351028, %v662
  %v672 = vshrl.u32 2102212464, %v663
  %v673 = vor.u32 %v671, %v672
  %v674 = vshll.u32 2102212464, %v662
  %v675 = vshrl.u32 920167782, %v663
  %v676 = vor.u32 %v674, %v675
  %v677 = vshll.u32 920167782, %v662
  %v678 = vshrl.u32 1326507024, %v663
  %v679 = vor.u32 %v677, %v678
  %vm680 = vcmp.lt.s32.totalorder %v661, 1
  %vm681 = vcmp.lt.s32.totalorder %v661, 2
  %vm682 = vcmp.lt.s32.totalorder %v661, 3
  %vm683 = vcmp.lt.s32.totalorder %v661, 4
  %v684 = vsel %vm680, %v664, %v667
  %v685 = vsel %vm683, %v673, 2102212464
  %v686 = vsel %vm682, %v670, %v685
  %v687 = vsel %vm681, %v684, %v686
  %v688 = vsel %vm680, %v667, %v670
  %v689 = vsel %vm683, %v676, 920167782
  %v690 = vsel %vm682, %v673, %v689
  %v691 = vsel %vm681, %v688, %v690
  %v692 = vsel %vm680, %v670, %v673
  %v693 = vsel %vm683, %v679, 1326507024
  %v694 = vsel %vm682, %v676, %v693
  %v695 = vsel %vm681, %v692, %v694
  %v696 = vshll.u32 %v656, 8
  %v697 = vand.u32 %v696, 65535
  %v698 = vshrl.u32 %v696, 16
  %v699 = vand.u32 %v695, 65535
  %v700 = vshrl.u32 %v695, 16
  %v701 = vmul.u32 %v697, %v699
  %v702 = vmul.u32 %v697, %v700
  %v703 = vmul.u32 %v698, %v699
  %v704 = vmul.u32 %v698, %v700
  %v705 = vshll.u32 %v702, 16
  %v706 = vshrl.u32 %v702, 16
  %v707 = vshll.u32 %v703, 16
  %v708 = vshrl.u32 %v703, 16
  %vm709 = vc.u32 %v701, %v705
  %v710 = vsel %vm709, 1, 0
  %v711 = vadd.s32 %v701, %v705
  %v712 = vadd.s32 %v704, %v710
  %vm713 = vc.u32 %v711, %v707
  %v714 = vsel %vm713, 1, 0
  %v715 = vadd.s32 %v711, %v707
  %v716 = vadd.s32 %v712, %v714
  %v717 = vadd.s32 %v716, %v706
  %v718 = vadd.s32 %v717, %v708
  %v719 = vand.u32 %v696, 65535
  %v720 = vshrl.u32 %v696, 16
  %v721 = vand.u32 %v691, 65535
  %v722 = vshrl.u32 %v691, 16
  %v723 = vmul.u32 %v719, %v721
  %v724 = vmul.u32 %v719, %v722
  %v725 = vmul.u32 %v720, %v721
  %v726 = vmul.u32 %v720, %v722
  %v727 = vshll.u32 %v724, 16
  %v728 = vshrl.u32 %v724, 16
  %v729 = vshll.u32 %v725, 16
  %v730 = vshrl.u32 %v725, 16
  %vm731 = vc.u32 %v723, %v727
  %v732 = vsel %vm731, 1, 0
  %v733 = vadd.s32 %v723, %v727
  %v734 = vadd.s32 %v726, %v732
  %vm735 = vc.u32 %v733, %v729
  %v736 = vsel %vm735, 1, 0
  %v737 = vadd.s32 %v733, %v729
  %v738 = vadd.s32 %v734, %v736
  %v739 = vadd.s32 %v738, %v728
  %v740 = vadd.s32 %v739, %v730
  %v741 = vmul.u32 %v696, %v687
  %v742 = vadd.s32 %v718, %v737
  %vm743 = vc.u32 %v718, %v737
  %v744 = vadd.s32 %v740, 1
  %v745 = vsel %vm743, %v744, %v740
  %v746 = vadd.s32 %v741, %v745
  %v747 = vadd.s32 %v746, 536870912
  %v748 = vshrl.u32 %v747, 30
  %v749 = vshll.u32 %v748, 30
  %v750 = vsub.s32 %v746, %v749
  %vm751 = vcmp.lt.s32.totalorder %v750, 0
  %v752 = vsub.s32 0, %v750
  %v753 = vsel %vm751, %v752, %v750
  %v754 = vclz %v753
  %v755 = vsub.s32 %v754, 2
  %vm756 = vcmp.gt.s32.totalorder 0, %v755
  %v757 = vsel %vm756, 0, %v755
  %v758 = vsub.s32 32, %v757
  %v759 = vshll.u32 %v750, %v757
  %v760 = vshrl.u32 %v742, %v758
  %v761 = vor.u32 %v759, %v760
  %v762 = vsub.s32 4294967266, %v757
  %v763 = vadd.s32 %v762, 127
  %v764 = vshll.u32 %v763, 23
  %v765 = vor.u32 4788187, %v764
  %v766 = vand.u32 2147483647, %v765
  %v768 = vcvt.s32.f32 %v761
  %v769 = vmul.f32 %v768, %v766
  %v770 = vxor.u32 %v769, 2147483648
  %v771 = vsel %vm650, %v770, %v769
  %v772 = vsub.s32 4, %v748
  %v773 = vsel %vm650, %v772, %v748
  %v774 = vsel %vm649, %v463, %v771
  %v775 = vsel %vm649, 0, %v773
  %v776 = vmul.f32 %v774, %v774
  %v777 = vmul.f32 %v776, -0.001358992
  %v778 = vadd.f32 %v777, 0.041655596
  %v779 = vmul.f32 %v776, %v778
  %v780 = vadd.f32 %v779, -0.4999988
  %v781 = vmul.f32 %v776, %v780
  %v782 = vadd.f32 1.0, %v781
  %v783 = vmul.f32 %v774, %v774
  %v784 = vmul.f32 %v783, -0.00019511016
  %v785 = vadd.f32 %v784, 0.008332121
  %v786 = vmul.f32 %v783, %v785
  %v787 = vadd.f32 %v786, -0.16666654
  %v788 = vmul.f32 %v783, %v787
  %v789 = vadd.f32 %v788, 1.0
  %v790 = vmul.f32 %v789, %v774
  %vm791 = vweird.f32 %v463
  %v792 = vand.u32 %v775, 3
  %vm793 = vcmp.lt.s32.totalorder %v792, 2
  %vm794 = vcmp.eq.s32.totalorder %v792, 0
  %v795 = vxor.u32 %v790, 2147483648
  %v796 = vsel %vm794, %v782, %v795
  %vm797 = vcmp.eq.s32.totalorder %v792, 2
  %v798 = vxor.u32 %v782, 2147483648
  %v799 = vsel %vm797, %v798, %v790
  %v800 = vsel %vm793, %v796, %v799
  %v801 = vsel %vm791, nan, %v800
  %v802 = vand.u32 2147483647, %v464
  %vm803 = vcmp.le.f32.partialorder %v802, 0.7853982
  %vm804 = vcmp.lt.s32.totalorder %v464, 0
  %v805 = vand.u32 %v464, 2139095040
  %v806 = vshrl.u32 %v805, 23
  %v807 = vsub.s32 %v806, 127
  %v808 = vand.u32 2147483647, %v464
  %v809 = vand.u32 %v808, 8388607
  %v810 = vor.u32 %v809, 8388608
  %v811 = vsub.s32 0, %v810
  %v812 = vadd.s32 %v807, 1
  %vm813 = vcmp.gt.s32.totalorder %v812, 0
  %v814 = vsel %vm813, %v812, 0
  %v815 = vshrl.u32 %v814, 5
  %v816 = vand.u32 %v814, 31
  %v817 = vsub.s32 32, %v816
  %v818 = vshrl.u32 683565275, %v817
  %v819 = vshll.u32 683565275, %v816
  %v820 = vshrl.u32 2475754826, %v817
  %v821 = vor.u32 %v819, %v820
  %v822 = vshll.u32 2475754826, %v816
  %v823 = vshrl.u32 2131351028, %v817
  %v824 = vor.u32 %v822, %v823
  %v825 = vshll.u32 2131351028, %v816
  %v826 = vshrl.u32 2102212464, %v817
  %v827 = vor.u32 %v825, %v826
  %v828 = vshll.u32 2102212464, %v816
  %v829 = vshrl.u32 920167782, %v817
  %v830 = vor.u32 %v828, %v829
  %v831 = vshll.u32 920167782, %v816
  %v832 = vshrl.u32 1326507024, %v817
  %v833 = vor.u32 %v831, %v832
  %vm834 = vcmp.lt.s32.totalorder %v815, 1
  %vm835 = vcmp.lt.s32.totalorder %v815, 2
  %vm836 = vcmp.lt.s32.totalorder %v815, 3
  %vm837 = vcmp.lt.s32.totalorder %v815, 4
  %v838 = vsel %vm834, %v818, %v821
  %v839 = vsel %vm837, %v827, 2102212464
  %v840 = vsel %vm836, %v824, %v839
  %v841 = vsel %vm835, %v838, %v840
  %v842 = vsel %vm834, %v821, %v824
  %v843 = vsel %vm837, %v830, 920167782
  %v844 = vsel %vm836, %v827, %v843
  %v845 = vsel %vm835, %v842, %v844
  %v846 = vsel %vm834, %v824, %v827
  %v847 = vsel %vm837, %v833, 1326507024
  %v848 = vsel %vm836, %v830, %v847
  %v849 = vsel %vm835, %v846, %v848
  %v850 = vshll.u32 %v810, 8
  %v851 = vand.u32 %v850, 65535
  %v852 = vshrl.u32 %v850, 16
  %v853 = vand.u32 %v849, 65535
  %v854 = vshrl.u32 %v849, 16
  %v855 = vmul.u32 %v851, %v853
  %v856 = vmul.u32 %v851, %v854
  %v857 = vmul.u32 %v852, %v853
  %v858 = vmul.u32 %v852, %v854
  %v859 = vshll.u32 %v856, 16
  %v860 = vshrl.u32 %v856, 16
  %v861 = vshll.u32 %v857, 16
  %v862 = vshrl.u32 %v857, 16
  %vm863 = vc.u32 %v855, %v859
  %v864 = vsel %vm863, 1, 0
  %v865 = vadd.s32 %v855, %v859
  %v866 = vadd.s32 %v858, %v864
  %vm867 = vc.u32 %v865, %v861
  %v868 = vsel %vm867, 1, 0
  %v869 = vadd.s32 %v865, %v861
  %v870 = vadd.s32 %v866, %v868
  %v871 = vadd.s32 %v870, %v860
  %v872 = vadd.s32 %v871, %v862
  %v873 = vand.u32 %v850, 65535
  %v874 = vshrl.u32 %v850, 16
  %v875 = vand.u32 %v845, 65535
  %v876 = vshrl.u32 %v845, 16
  %v877 = vmul.u32 %v873, %v875
  %v878 = vmul.u32 %v873, %v876
  %v879 = vmul.u32 %v874, %v875
  %v880 = vmul.u32 %v874, %v876
  %v881 = vshll.u32 %v878, 16
  %v882 = vshrl.u32 %v878, 16
  %v883 = vshll.u32 %v879, 16
  %v884 = vshrl.u32 %v879, 16
  %vm885 = vc.u32 %v877, %v881
  %v886 = vsel %vm885, 1, 0
  %v887 = vadd.s32 %v877, %v881
  %v888 = vadd.s32 %v880, %v886
  %vm889 = vc.u32 %v887, %v883
  %v890 = vsel %vm889, 1, 0
  %v891 = vadd.s32 %v887, %v883
  %v892 = vadd.s32 %v888, %v890
  %v893 = vadd.s32 %v892, %v882
  %v894 = vadd.s32 %v893, %v884
  %v895 = vmul.u32 %v850, %v841
  %v896 = vadd.s32 %v872, %v891
  %vm897 = vc.u32 %v872, %v891
  %v898 = vadd.s32 %v894, 1
  %v899 = vsel %vm897, %v898, %v894
  %v900 = vadd.s32 %v895, %v899
  %v901 = vadd.s32 %v900, 536870912
  %v902 = vshrl.u32 %v901, 30
  %v903 = vshll.u32 %v902, 30
  %v904 = vsub.s32 %v900, %v903
  %vm905 = vcmp.lt.s32.totalorder %v904, 0
  %v906 = vsub.s32 0, %v904
  %v907 = vsel %vm905, %v906, %v904
  %v908 = vclz %v907
  %v909 = vsub.s32 %v908, 2
  %vm910 = vcmp.gt.s32.totalorder 0, %v909
  %v911 = vsel %vm910, 0, %v909
  %v912 = vsub.s32 32, %v911
  %v913 = vshll.u32 %v904, %v911
  %v914 = vshrl.u32 %v896, %v912
  %v915 = vor.u32 %v913, %v914
  %v916 = vsub.s32 4294967266, %v911
  %v917 = vadd.s32 %v916, 127
  %v918 = vshll.u32 %v917, 23
  %v919 = vor.u32 4788187, %v918
  %v920 = vand.u32 2147483647, %v919
  %v922 = vcvt.s32.f32 %v915
  %v923 = vmul.f32 %v922, %v920
  %v924 = vxor.u32 %v923, 2147483648
  %v925 = vsel %vm804, %v924, %v923
  %v926 = vsub.s32 4, %v902
  %v927 = vsel %vm804, %v926, %v902
  %v928 = vsel %vm803, %v464, %v925
  %v929 = vsel %vm803, 0, %v927
  %v930 = vmul.f32 %v928, %v928
  %v931 = vmul.f32 %v930, -0.001358992
  %v932 = vadd.f32 %v931, 0.041655596
  %v933 = vmul.f32 %v930, %v932
  %v934 = vadd.f32 %v933, -0.4999988
  %v935 = vmul.f32 %v930, %v934
  %v936 = vadd.f32 1.0, %v935
  %v937 = vmul.f32 %v928, %v928
  %v938 = vmul.f32 %v937, -0.00019511016
  %v939 = vadd.f32 %v938, 0.008332121
  %v940 = vmul.f32 %v937, %v939
  %v941 = vadd.f32 %v940, -0.16666654
  %v942 = vmul.f32 %v937, %v941
  %v943 = vadd.f32 %v942, 1.0
  %v944 = vmul.f32 %v943, %v928
  %vm945 = vweird.f32 %v464
  %v946 = vand.u32 %v929, 3
  %vm947 = vcmp.lt.s32.totalorder %v946, 2
  %vm948 = vcmp.eq.s32.totalorder %v946, 0
  %v949 = vxor.u32 %v944, 2147483648
  %v950 = vsel %vm948, %v936, %v949
  %vm951 = vcmp.eq.s32.totalorder %v946, 2
  %v952 = vxor.u32 %v936, 2147483648
  %v953 = vsel %vm951, %v952, %v944
  %v954 = vsel %vm947, %v950, %v953
  %v955 = vsel %vm945, nan, %v954
  %v956 = vand.u32 2147483647, %v465
  %vm957 = vcmp.le.f32.partialorder %v956, 0.7853982
  %vm958 = vcmp.lt.s32.totalorder %v465, 0
  %v959 = vand.u32 %v465, 2139095040
  %v960 = vshrl.u32 %v959, 23
  %v961 = vsub.s32 %v960, 127
  %v962 = vand.u32 2147483647, %v465
  %v963 = vand.u32 %v962, 8388607
  %v964 = vor.u32 %v963, 8388608
  %v965 = vsub.s32 0, %v964
  %v966 = vadd.s32 %v961, 1
  %vm967 = vcmp.gt.s32.totalorder %v966, 0
  %v968 = vsel %vm967, %v966, 0
  %v969 = vshrl.u32 %v968, 5
  %v970 = vand.u32 %v968, 31
  %v971 = vsub.s32 32, %v970
  %v972 = vshrl.u32 683565275, %v971
  %v973 = vshll.u32 683565275, %v970
  %v974 = vshrl.u32 2475754826, %v971
  %v975 = vor.u32 %v973, %v974
  %v976 = vshll.u32 2475754826, %v970
  %v977 = vshrl.u32 2131351028, %v971
  %v978 = vor.u32 %v976, %v977
  %v979 = vshll.u32 2131351028, %v970
  %v980 = vshrl.u32 2102212464, %v971
  %v981 = vor.u32 %v979, %v980
  %v982 = vshll.u32 2102212464, %v970
  %v983 = vshrl.u32 920167782, %v971
  %v984 = vor.u32 %v982, %v983
  %v985 = vshll.u32 920167782, %v970
  %v986 = vshrl.u32 1326507024, %v971
  %v987 = vor.u32 %v985, %v986
  %vm988 = vcmp.lt.s32.totalorder %v969, 1
  %vm989 = vcmp.lt.s32.totalorder %v969, 2
  %vm990 = vcmp.lt.s32.totalorder %v969, 3
  %vm991 = vcmp.lt.s32.totalorder %v969, 4
  %v992 = vsel %vm988, %v972, %v975
  %v993 = vsel %vm991, %v981, 2102212464
  %v994 = vsel %vm990, %v978, %v993
  %v995 = vsel %vm989, %v992, %v994
  %v996 = vsel %vm988, %v975, %v978
  %v997 = vsel %vm991, %v984, 920167782
  %v998 = vsel %vm990, %v981, %v997
  %v999 = vsel %vm989, %v996, %v998
  %v1000 = vsel %vm988, %v978, %v981
  %v1001 = vsel %vm991, %v987, 1326507024
  %v1002 = vsel %vm990, %v984, %v1001
  %v1003 = vsel %vm989, %v1000, %v1002
  %v1004 = vshll.u32 %v964, 8
  %v1005 = vand.u32 %v1004, 65535
  %v1006 = vshrl.u32 %v1004, 16
  %v1007 = vand.u32 %v1003, 65535
  %v1008 = vshrl.u32 %v1003, 16
  %v1009 = vmul.u32 %v1005, %v1007
  %v1010 = vmul.u32 %v1005, %v1008
  %v1011 = vmul.u32 %v1006, %v1007
  %v1012 = vmul.u32 %v1006, %v1008
  %v1013 = vshll.u32 %v1010, 16
  %v1014 = vshrl.u32 %v1010, 16
  %v1015 = vshll.u32 %v1011, 16
  %v1016 = vshrl.u32 %v1011, 16
  %vm1017 = vc.u32 %v1009, %v1013
  %v1018 = vsel %vm1017, 1, 0
  %v1019 = vadd.s32 %v1009, %v1013
  %v1020 = vadd.s32 %v1012, %v1018
  %vm1021 = vc.u32 %v1019, %v1015
  %v1022 = vsel %vm1021, 1, 0
  %v1023 = vadd.s32 %v1019, %v1015
  %v1024 = vadd.s32 %v1020, %v1022
  %v1025 = vadd.s32 %v1024, %v1014
  %v1026 = vadd.s32 %v1025, %v1016
  %v1027 = vand.u32 %v1004, 65535
  %v1028 = vshrl.u32 %v1004, 16
  %v1029 = vand.u32 %v999, 65535
  %v1030 = vshrl.u32 %v999, 16
  %v1031 = vmul.u32 %v1027, %v1029
  %v1032 = vmul.u32 %v1027, %v1030
  %v1033 = vmul.u32 %v1028, %v1029
  %v1034 = vmul.u32 %v1028, %v1030
  %v1035 = vshll.u32 %v1032, 16
  %v1036 = vshrl.u32 %v1032, 16
  %v1037 = vshll.u32 %v1033, 16
  %v1038 = vshrl.u32 %v1033, 16
  %vm1039 = vc.u32 %v1031, %v1035
  %v1040 = vsel %vm1039, 1, 0
  %v1041 = vadd.s32 %v1031, %v1035
  %v1042 = vadd.s32 %v1034, %v1040
  %vm1043 = vc.u32 %v1041, %v1037
  %v1044 = vsel %vm1043, 1, 0
  %v1045 = vadd.s32 %v1041, %v1037
  %v1046 = vadd.s32 %v1042, %v1044
  %v1047 = vadd.s32 %v1046, %v1036
  %v1048 = vadd.s32 %v1047, %v1038
  %v1049 = vmul.u32 %v1004, %v995
  %v1050 = vadd.s32 %v1026, %v1045
  %vm1051 = vc.u32 %v1026, %v1045
  %v1052 = vadd.s32 %v1048, 1
  %v1053 = vsel %vm1051, %v1052, %v1048
  %v1054 = vadd.s32 %v1049, %v1053
  %v1055 = vadd.s32 %v1054, 536870912
  %v1056 = vshrl.u32 %v1055, 30
  %v1057 = vshll.u32 %v1056, 30
  %v1058 = vsub.s32 %v1054, %v1057
  %vm1059 = vcmp.lt.s32.totalorder %v1058, 0
  %v1060 = vsub.s32 0, %v1058
  %v1061 = vsel %vm1059, %v1060, %v1058
  %v1062 = vclz %v1061
  %v1063 = vsub.s32 %v1062, 2
  %vm1064 = vcmp.gt.s32.totalorder 0, %v1063
  %v1065 = vsel %vm1064, 0, %v1063
  %v1066 = vsub.s32 32, %v1065
  %v1067 = vshll.u32 %v1058, %v1065
  %v1068 = vshrl.u32 %v1050, %v1066
  %v1069 = vor.u32 %v1067, %v1068
  %v1070 = vsub.s32 4294967266, %v1065
  %v1071 = vadd.s32 %v1070, 127
  %v1072 = vshll.u32 %v1071, 23
  %v1073 = vor.u32 4788187, %v1072
  %v1074 = vand.u32 2147483647, %v1073
  %v1076 = vcvt.s32.f32 %v1069
  %v1077 = vmul.f32 %v1076, %v1074
  %v1078 = vxor.u32 %v1077, 2147483648
  %v1079 = vsel %vm958, %v1078, %v1077
  %v1080 = vsub.s32 4, %v1056
  %v1081 = vsel %vm958, %v1080, %v1056
  %v1082 = vsel %vm957, %v465, %v1079
  %v1083 = vsel %vm957, 0, %v1081
  %v1084 = vmul.f32 %v1082, %v1082
  %v1085 = vmul.f32 %v1084, -0.001358992
  %v1086 = vadd.f32 %v1085, 0.041655596
  %v1087 = vmul.f32 %v1084, %v1086
  %v1088 = vadd.f32 %v1087, -0.4999988
  %v1089 = vmul.f32 %v1084, %v1088
  %v1090 = vadd.f32 1.0, %v1089
  %v1091 = vmul.f32 %v1082, %v1082
  %v1092 = vmul.f32 %v1091, -0.00019511016
  %v1093 = vadd.f32 %v1092, 0.008332121
  %v1094 = vmul.f32 %v1091, %v1093
  %v1095 = vadd.f32 %v1094, -0.16666654
  %v1096 = vmul.f32 %v1091, %v1095
  %v1097 = vadd.f32 %v1096, 1.0
  %v1098 = vmul.f32 %v1097, %v1082
  %vm1099 = vweird.f32 %v465
  %v1100 = vand.u32 %v1083, 3
  %vm1101 = vcmp.lt.s32.totalorder %v1100, 2
  %vm1102 = vcmp.eq.s32.totalorder %v1100, 0
  %v1103 = vxor.u32 %v1098, 2147483648
  %v1104 = vsel %vm1102, %v1090, %v1103
  %vm1105 = vcmp.eq.s32.totalorder %v1100, 2
  %v1106 = vxor.u32 %v1090, 2147483648
  %v1107 = vsel %vm1105, %v1106, %v1098
  %v1108 = vsel %vm1101, %v1104, %v1107
  %v1109 = vsel %vm1099, nan, %v1108
  %v1110 = vand.u32 2147483647, %v466
  %vm1111 = vcmp.le.f32.partialorder %v1110, 0.7853982
  %vm1112 = vcmp.lt.s32.totalorder %v466, 0
  %v1113 = vand.u32 %v466, 2139095040
  %v1114 = vshrl.u32 %v1113, 23
  %v1115 = vsub.s32 %v1114, 127
  %v1116 = vand.u32 2147483647, %v466
  %v1117 = vand.u32 %v1116, 8388607
  %v1118 = vor.u32 %v1117, 8388608
  %v1119 = vsub.s32 0, %v1118
  %v1120 = vadd.s32 %v1115, 1
  %vm1121 = vcmp.gt.s32.totalorder %v1120, 0
  %v1122 = vsel %vm1121, %v1120, 0
  %v1123 = vshrl.u32 %v1122, 5
  %v1124 = vand.u32 %v1122, 31
  %v1125 = vsub.s32 32, %v1124
  %v1126 = vshrl.u32 683565275, %v1125
  %v1127 = vshll.u32 683565275, %v1124
  %v1128 = vshrl.u32 2475754826, %v1125
  %v1129 = vor.u32 %v1127, %v1128
  %v1130 = vshll.u32 2475754826, %v1124
  %v1131 = vshrl.u32 2131351028, %v1125
  %v1132 = vor.u32 %v1130, %v1131
  %v1133 = vshll.u32 2131351028, %v1124
  %v1134 = vshrl.u32 2102212464, %v1125
  %v1135 = vor.u32 %v1133, %v1134
  %v1136 = vshll.u32 2102212464, %v1124
  %v1137 = vshrl.u32 920167782, %v1125
  %v1138 = vor.u32 %v1136, %v1137
  %v1139 = vshll.u32 920167782, %v1124
  %v1140 = vshrl.u32 1326507024, %v1125
  %v1141 = vor.u32 %v1139, %v1140
  %vm1142 = vcmp.lt.s32.totalorder %v1123, 1
  %vm1143 = vcmp.lt.s32.totalorder %v1123, 2
  %vm1144 = vcmp.lt.s32.totalorder %v1123, 3
  %vm1145 = vcmp.lt.s32.totalorder %v1123, 4
  %v1146 = vsel %vm1142, %v1126, %v1129
  %v1147 = vsel %vm1145, %v1135, 2102212464
  %v1148 = vsel %vm1144, %v1132, %v1147
  %v1149 = vsel %vm1143, %v1146, %v1148
  %v1150 = vsel %vm1142, %v1129, %v1132
  %v1151 = vsel %vm1145, %v1138, 920167782
  %v1152 = vsel %vm1144, %v1135, %v1151
  %v1153 = vsel %vm1143, %v1150, %v1152
  %v1154 = vsel %vm1142, %v1132, %v1135
  %v1155 = vsel %vm1145, %v1141, 1326507024
  %v1156 = vsel %vm1144, %v1138, %v1155
  %v1157 = vsel %vm1143, %v1154, %v1156
  %v1158 = vshll.u32 %v1118, 8
  %v1159 = vand.u32 %v1158, 65535
  %v1160 = vshrl.u32 %v1158, 16
  %v1161 = vand.u32 %v1157, 65535
  %v1162 = vshrl.u32 %v1157, 16
  %v1163 = vmul.u32 %v1159, %v1161
  %v1164 = vmul.u32 %v1159, %v1162
  %v1165 = vmul.u32 %v1160, %v1161
  %v1166 = vmul.u32 %v1160, %v1162
  %v1167 = vshll.u32 %v1164, 16
  %v1168 = vshrl.u32 %v1164, 16
  %v1169 = vshll.u32 %v1165, 16
  %v1170 = vshrl.u32 %v1165, 16
  %vm1171 = vc.u32 %v1163, %v1167
  %v1172 = vsel %vm1171, 1, 0
  %v1173 = vadd.s32 %v1163, %v1167
  %v1174 = vadd.s32 %v1166, %v1172
  %vm1175 = vc.u32 %v1173, %v1169
  %v1176 = vsel %vm1175, 1, 0
  %v1177 = vadd.s32 %v1173, %v1169
  %v1178 = vadd.s32 %v1174, %v1176
  %v1179 = vadd.s32 %v1178, %v1168
  %v1180 = vadd.s32 %v1179, %v1170
  %v1181 = vand.u32 %v1158, 65535
  %v1182 = vshrl.u32 %v1158, 16
  %v1183 = vand.u32 %v1153, 65535
  %v1184 = vshrl.u32 %v1153, 16
  %v1185 = vmul.u32 %v1181, %v1183
  %v1186 = vmul.u32 %v1181, %v1184
  %v1187 = vmul.u32 %v1182, %v1183
  %v1188 = vmul.u32 %v1182, %v1184
  %v1189 = vshll.u32 %v1186, 16
  %v1190 = vshrl.u32 %v1186, 16
  %v1191 = vshll.u32 %v1187, 16
  %v1192 = vshrl.u32 %v1187, 16
  %vm1193 = vc.u32 %v1185, %v1189
  %v1194 = vsel %vm1193, 1, 0
  %v1195 = vadd.s32 %v1185, %v1189
  %v1196 = vadd.s32 %v1188, %v1194
  %vm1197 = vc.u32 %v1195, %v1191
  %v1198 = vsel %vm1197, 1, 0
  %v1199 = vadd.s32 %v1195, %v1191
  %v1200 = vadd.s32 %v1196, %v1198
  %v1201 = vadd.s32 %v1200, %v1190
  %v1202 = vadd.s32 %v1201, %v1192
  %v1203 = vmul.u32 %v1158, %v1149
  %v1204 = vadd.s32 %v1180, %v1199
  %vm1205 = vc.u32 %v1180, %v1199
  %v1206 = vadd.s32 %v1202, 1
  %v1207 = vsel %vm1205, %v1206, %v1202
  %v1208 = vadd.s32 %v1203, %v1207
  %v1209 = vadd.s32 %v1208, 536870912
  %v1210 = vshrl.u32 %v1209, 30
  %v1211 = vshll.u32 %v1210, 30
  %v1212 = vsub.s32 %v1208, %v1211
  %vm1213 = vcmp.lt.s32.totalorder %v1212, 0
  %v1214 = vsub.s32 0, %v1212
  %v1215 = vsel %vm1213, %v1214, %v1212
  %v1216 = vclz %v1215
  %v1217 = vsub.s32 %v1216, 2
  %vm1218 = vcmp.gt.s32.totalorder 0, %v1217
  %v1219 = vsel %vm1218, 0, %v1217
  %v1220 = vsub.s32 32, %v1219
  %v1221 = vshll.u32 %v1212, %v1219
  %v1222 = vshrl.u32 %v1204, %v1220
  %v1223 = vor.u32 %v1221, %v1222
  %v1224 = vsub.s32 4294967266, %v1219
  %v1225 = vadd.s32 %v1224, 127
  %v1226 = vshll.u32 %v1225, 23
  %v1227 = vor.u32 4788187, %v1226
  %v1228 = vand.u32 2147483647, %v1227
  %v1230 = vcvt.s32.f32 %v1223
  %v1231 = vmul.f32 %v1230, %v1228
  %v1232 = vxor.u32 %v1231, 2147483648
  %v1233 = vsel %vm1112, %v1232, %v1231
  %v1234 = vsub.s32 4, %v1210
  %v1235 = vsel %vm1112, %v1234, %v1210
  %v1236 = vsel %vm1111, %v466, %v1233
  %v1237 = vsel %vm1111, 0, %v1235
  %v1238 = vmul.f32 %v1236, %v1236
  %v1239 = vmul.f32 %v1238, -0.001358992
  %v1240 = vadd.f32 %v1239, 0.041655596
  %v1241 = vmul.f32 %v1238, %v1240
  %v1242 = vadd.f32 %v1241, -0.4999988
  %v1243 = vmul.f32 %v1238, %v1242
  %v1244 = vadd.f32 1.0, %v1243
  %v1245 = vmul.f32 %v1236, %v1236
  %v1246 = vmul.f32 %v1245, -0.00019511016
  %v1247 = vadd.f32 %v1246, 0.008332121
  %v1248 = vmul.f32 %v1245, %v1247
  %v1249 = vadd.f32 %v1248, -0.16666654
  %v1250 = vmul.f32 %v1245, %v1249
  %v1251 = vadd.f32 %v1250, 1.0
  %v1252 = vmul.f32 %v1251, %v1236
  %vm1253 = vweird.f32 %v466
  %v1254 = vand.u32 %v1237, 3
  %vm1255 = vcmp.lt.s32.totalorder %v1254, 2
  %vm1256 = vcmp.eq.s32.totalorder %v1254, 0
  %v1257 = vxor.u32 %v1252, 2147483648
  %v1258 = vsel %vm1256, %v1244, %v1257
  %vm1259 = vcmp.eq.s32.totalorder %v1254, 2
  %v1260 = vxor.u32 %v1244, 2147483648
  %v1261 = vsel %vm1259, %v1260, %v1252
  %v1262 = vsel %vm1255, %v1258, %v1261
  %v1263 = vsel %vm1253, nan, %v1262
  %v1264 = vand.u32 2147483647, %v467
  %vm1265 = vcmp.le.f32.partialorder %v1264, 0.7853982
  %vm1266 = vcmp.lt.s32.totalorder %v467, 0
  %v1267 = vand.u32 %v467, 2139095040
  %v1268 = vshrl.u32 %v1267, 23
  %v1269 = vsub.s32 %v1268, 127
  %v1270 = vand.u32 2147483647, %v467
  %v1271 = vand.u32 %v1270, 8388607
  %v1272 = vor.u32 %v1271, 8388608
  %v1273 = vsub.s32 0, %v1272
  %v1274 = vadd.s32 %v1269, 1
  %vm1275 = vcmp.gt.s32.totalorder %v1274, 0
  %v1276 = vsel %vm1275, %v1274, 0
  %v1277 = vshrl.u32 %v1276, 5
  %v1278 = vand.u32 %v1276, 31
  %v1279 = vsub.s32 32, %v1278
  %v1280 = vshrl.u32 683565275, %v1279
  %v1281 = vshll.u32 683565275, %v1278
  %v1282 = vshrl.u32 2475754826, %v1279
  %v1283 = vor.u32 %v1281, %v1282
  %v1284 = vshll.u32 2475754826, %v1278
  %v1285 = vshrl.u32 2131351028, %v1279
  %v1286 = vor.u32 %v1284, %v1285
  %v1287 = vshll.u32 2131351028, %v1278
  %v1288 = vshrl.u32 2102212464, %v1279
  %v1289 = vor.u32 %v1287, %v1288
  %v1290 = vshll.u32 2102212464, %v1278
  %v1291 = vshrl.u32 920167782, %v1279
  %v1292 = vor.u32 %v1290, %v1291
  %v1293 = vshll.u32 920167782, %v1278
  %v1294 = vshrl.u32 1326507024, %v1279
  %v1295 = vor.u32 %v1293, %v1294
  %vm1296 = vcmp.lt.s32.totalorder %v1277, 1
  %vm1297 = vcmp.lt.s32.totalorder %v1277, 2
  %vm1298 = vcmp.lt.s32.totalorder %v1277, 3
  %vm1299 = vcmp.lt.s32.totalorder %v1277, 4
  %v1300 = vsel %vm1296, %v1280, %v1283
  %v1301 = vsel %vm1299, %v1289, 2102212464
  %v1302 = vsel %vm1298, %v1286, %v1301
  %v1303 = vsel %vm1297, %v1300, %v1302
  %v1304 = vsel %vm1296, %v1283, %v1286
  %v1305 = vsel %vm1299, %v1292, 920167782
  %v1306 = vsel %vm1298, %v1289, %v1305
  %v1307 = vsel %vm1297, %v1304, %v1306
  %v1308 = vsel %vm1296, %v1286, %v1289
  %v1309 = vsel %vm1299, %v1295, 1326507024
  %v1310 = vsel %vm1298, %v1292, %v1309
  %v1311 = vsel %vm1297, %v1308, %v1310
  %v1312 = vshll.u32 %v1272, 8
  %v1313 = vand.u32 %v1312, 65535
  %v1314 = vshrl.u32 %v1312, 16
  %v1315 = vand.u32 %v1311, 65535
  %v1316 = vshrl.u32 %v1311, 16
  %v1317 = vmul.u32 %v1313, %v1315
  %v1318 = vmul.u32 %v1313, %v1316
  %v1319 = vmul.u32 %v1314, %v1315
  %v1320 = vmul.u32 %v1314, %v1316
  %v1321 = vshll.u32 %v1318, 16
  %v1322 = vshrl.u32 %v1318, 16
  %v1323 = vshll.u32 %v1319, 16
  %v1324 = vshrl.u32 %v1319, 16
  %vm1325 = vc.u32 %v1317, %v1321
  %v1326 = vsel %vm1325, 1, 0
  %v1327 = vadd.s32 %v1317, %v1321
  %v1328 = vadd.s32 %v1320, %v1326
  %vm1329 = vc.u32 %v1327, %v1323
  %v1330 = vsel %vm1329, 1, 0
  %v1331 = vadd.s32 %v1327, %v1323
  %v1332 = vadd.s32 %v1328, %v1330
  %v1333 = vadd.s32 %v1332, %v1322
  %v1334 = vadd.s32 %v1333, %v1324
  %v1335 = vand.u32 %v1312, 65535
  %v1336 = vshrl.u32 %v1312, 16
  %v1337 = vand.u32 %v1307, 65535
  %v1338 = vshrl.u32 %v1307, 16
  %v1339 = vmul.u32 %v1335, %v1337
  %v1340 = vmul.u32 %v1335, %v1338
  %v1341 = vmul.u32 %v1336, %v1337
  %v1342 = vmul.u32 %v1336, %v1338
  %v1343 = vshll.u32 %v1340, 16
  %v1344 = vshrl.u32 %v1340, 16
  %v1345 = vshll.u32 %v1341, 16
  %v1346 = vshrl.u32 %v1341, 16
  %vm1347 = vc.u32 %v1339, %v1343
  %v1348 = vsel %vm1347, 1, 0
  %v1349 = vadd.s32 %v1339, %v1343
  %v1350 = vadd.s32 %v1342, %v1348
  %vm1351 = vc.u32 %v1349, %v1345
  %v1352 = vsel %vm1351, 1, 0
  %v1353 = vadd.s32 %v1349, %v1345
  %v1354 = vadd.s32 %v1350, %v1352
  %v1355 = vadd.s32 %v1354, %v1344
  %v1356 = vadd.s32 %v1355, %v1346
  %v1357 = vmul.u32 %v1312, %v1303
  %v1358 = vadd.s32 %v1334, %v1353
  %vm1359 = vc.u32 %v1334, %v1353
  %v1360 = vadd.s32 %v1356, 1
  %v1361 = vsel %vm1359, %v1360, %v1356
  %v1362 = vadd.s32 %v1357, %v1361
  %v1363 = vadd.s32 %v1362, 536870912
  %v1364 = vshrl.u32 %v1363, 30
  %v1365 = vshll.u32 %v1364, 30
  %v1366 = vsub.s32 %v1362, %v1365
  %vm1367 = vcmp.lt.s32.totalorder %v1366, 0
  %v1368 = vsub.s32 0, %v1366
  %v1369 = vsel %vm1367, %v1368, %v1366
  %v1370 = vclz %v1369
  %v1371 = vsub.s32 %v1370, 2
  %vm1372 = vcmp.gt.s32.totalorder 0, %v1371
  %v1373 = vsel %vm1372, 0, %v1371
  %v1374 = vsub.s32 32, %v1373
  %v1375 = vshll.u32 %v1366, %v1373
  %v1376 = vshrl.u32 %v1358, %v1374
  %v1377 = vor.u32 %v1375, %v1376
  %v1378 = vsub.s32 4294967266, %v1373
  %v1379 = vadd.s32 %v1378, 127
  %v1380 = vshll.u32 %v1379, 23
  %v1381 = vor.u32 4788187, %v1380
  %v1382 = vand.u32 2147483647, %v1381
  %v1384 = vcvt.s32.f32 %v1377
  %v1385 = vmul.f32 %v1384, %v1382
  %v1386 = vxor.u32 %v1385, 2147483648
  %v1387 = vsel %vm1266, %v1386, %v1385
  %v1388 = vsub.s32 4, %v1364
  %v1389 = vsel %vm1266, %v1388, %v1364
  %v1390 = vsel %vm1265, %v467, %v1387
  %v1391 = vsel %vm1265, 0, %v1389
  %v1392 = vmul.f32 %v1390, %v1390
  %v1393 = vmul.f32 %v1392, -0.001358992
  %v1394 = vadd.f32 %v1393, 0.041655596
  %v1395 = vmul.f32 %v1392, %v1394
  %v1396 = vadd.f32 %v1395, -0.4999988
  %v1397 = vmul.f32 %v1392, %v1396
  %v1398 = vadd.f32 1.0, %v1397
  %v1399 = vmul.f32 %v1390, %v1390
  %v1400 = vmul.f32 %v1399, -0.00019511016
  %v1401 = vadd.f32 %v1400, 0.008332121
  %v1402 = vmul.f32 %v1399, %v1401
  %v1403 = vadd.f32 %v1402, -0.16666654
  %v1404 = vmul.f32 %v1399, %v1403
  %v1405 = vadd.f32 %v1404, 1.0
  %v1406 = vmul.f32 %v1405, %v1390
  %vm1407 = vweird.f32 %v467
  %v1408 = vand.u32 %v1391, 3
  %vm1409 = vcmp.lt.s32.totalorder %v1408, 2
  %vm1410 = vcmp.eq.s32.totalorder %v1408, 0
  %v1411 = vxor.u32 %v1406, 2147483648
  %v1412 = vsel %vm1410, %v1398, %v1411
  %vm1413 = vcmp.eq.s32.totalorder %v1408, 2
  %v1414 = vxor.u32 %v1398, 2147483648
  %v1415 = vsel %vm1413, %v1414, %v1406
  %v1416 = vsel %vm1409, %v1412, %v1415
  %v1417 = vsel %vm1407, nan, %v1416
  %v1418 = vand.u32 2147483647, %v468
  %vm1419 = vcmp.le.f32.partialorder %v1418, 0.7853982
  %vm1420 = vcmp.lt.s32.totalorder %v468, 0
  %v1421 = vand.u32 %v468, 2139095040
  %v1422 = vshrl.u32 %v1421, 23
  %v1423 = vsub.s32 %v1422, 127
  %v1424 = vand.u32 2147483647, %v468
  %v1425 = vand.u32 %v1424, 8388607
  %v1426 = vor.u32 %v1425, 8388608
  %v1427 = vsub.s32 0, %v1426
  %v1428 = vadd.s32 %v1423, 1
  %vm1429 = vcmp.gt.s32.totalorder %v1428, 0
  %v1430 = vsel %vm1429, %v1428, 0
  %v1431 = vshrl.u32 %v1430, 5
  %v1432 = vand.u32 %v1430, 31
  %v1433 = vsub.s32 32, %v1432
  %v1434 = vshrl.u32 683565275, %v1433
  %v1435 = vshll.u32 683565275, %v1432
  %v1436 = vshrl.u32 2475754826, %v1433
  %v1437 = vor.u32 %v1435, %v1436
  %v1438 = vshll.u32 2475754826, %v1432
  %v1439 = vshrl.u32 2131351028, %v1433
  %v1440 = vor.u32 %v1438, %v1439
  %v1441 = vshll.u32 2131351028, %v1432
  %v1442 = vshrl.u32 2102212464, %v1433
  %v1443 = vor.u32 %v1441, %v1442
  %v1444 = vshll.u32 2102212464, %v1432
  %v1445 = vshrl.u32 920167782, %v1433
  %v1446 = vor.u32 %v1444, %v1445
  %v1447 = vshll.u32 920167782, %v1432
  %v1448 = vshrl.u32 1326507024, %v1433
  %v1449 = vor.u32 %v1447, %v1448
  %vm1450 = vcmp.lt.s32.totalorder %v1431, 1
  %vm1451 = vcmp.lt.s32.totalorder %v1431, 2
  %vm1452 = vcmp.lt.s32.totalorder %v1431, 3
  %vm1453 = vcmp.lt.s32.totalorder %v1431, 4
  %v1454 = vsel %vm1450, %v1434, %v1437
  %v1455 = vsel %vm1453, %v1443, 2102212464
  %v1456 = vsel %vm1452, %v1440, %v1455
  %v1457 = vsel %vm1451, %v1454, %v1456
  %v1458 = vsel %vm1450, %v1437, %v1440
  %v1459 = vsel %vm1453, %v1446, 920167782
  %v1460 = vsel %vm1452, %v1443, %v1459
  %v1461 = vsel %vm1451, %v1458, %v1460
  %v1462 = vsel %vm1450, %v1440, %v1443
  %v1463 = vsel %vm1453, %v1449, 1326507024
  %v1464 = vsel %vm1452, %v1446, %v1463
  %v1465 = vsel %vm1451, %v1462, %v1464
  %v1466 = vshll.u32 %v1426, 8
  %v1467 = vand.u32 %v1466, 65535
  %v1468 = vshrl.u32 %v1466, 16
  %v1469 = vand.u32 %v1465, 65535
  %v1470 = vshrl.u32 %v1465, 16
  %v1471 = vmul.u32 %v1467, %v1469
  %v1472 = vmul.u32 %v1467, %v1470
  %v1473 = vmul.u32 %v1468, %v1469
  %v1474 = vmul.u32 %v1468, %v1470
  %v1475 = vshll.u32 %v1472, 16
  %v1476 = vshrl.u32 %v1472, 16
  %v1477 = vshll.u32 %v1473, 16
  %v1478 = vshrl.u32 %v1473, 16
  %vm1479 = vc.u32 %v1471, %v1475
  %v1480 = vsel %vm1479, 1, 0
  %v1481 = vadd.s32 %v1471, %v1475
  %v1482 = vadd.s32 %v1474, %v1480
  %vm1483 = vc.u32 %v1481, %v1477
  %v1484 = vsel %vm1483, 1, 0
  %v1485 = vadd.s32 %v1481, %v1477
  %v1486 = vadd.s32 %v1482, %v1484
  %v1487 = vadd.s32 %v1486, %v1476
  %v1488 = vadd.s32 %v1487, %v1478
  %v1489 = vand.u32 %v1466, 65535
  %v1490 = vshrl.u32 %v1466, 16
  %v1491 = vand.u32 %v1461, 65535
  %v1492 = vshrl.u32 %v1461, 16
  %v1493 = vmul.u32 %v1489, %v1491
  %v1494 = vmul.u32 %v1489, %v1492
  %v1495 = vmul.u32 %v1490, %v1491
  %v1496 = vmul.u32 %v1490, %v1492
  %v1497 = vshll.u32 %v1494, 16
  %v1498 = vshrl.u32 %v1494, 16
  %v1499 = vshll.u32 %v1495, 16
  %v1500 = vshrl.u32 %v1495, 16
  %vm1501 = vc.u32 %v1493, %v1497
  %v1502 = vsel %vm1501, 1, 0
  %v1503 = vadd.s32 %v1493, %v1497
  %v1504 = vadd.s32 %v1496, %v1502
  %vm1505 = vc.u32 %v1503, %v1499
  %v1506 = vsel %vm1505, 1, 0
  %v1507 = vadd.s32 %v1503, %v1499
  %v1508 = vadd.s32 %v1504, %v1506
  %v1509 = vadd.s32 %v1508, %v1498
  %v1510 = vadd.s32 %v1509, %v1500
  %v1511 = vmul.u32 %v1466, %v1457
  %v1512 = vadd.s32 %v1488, %v1507
  %vm1513 = vc.u32 %v1488, %v1507
  %v1514 = vadd.s32 %v1510, 1
  %v1515 = vsel %vm1513, %v1514, %v1510
  %v1516 = vadd.s32 %v1511, %v1515
  %v1517 = vadd.s32 %v1516, 536870912
  %v1518 = vshrl.u32 %v1517, 30
  %v1519 = vshll.u32 %v1518, 30
  %v1520 = vsub.s32 %v1516, %v1519
  %vm1521 = vcmp.lt.s32.totalorder %v1520, 0
  %v1522 = vsub.s32 0, %v1520
  %v1523 = vsel %vm1521, %v1522, %v1520
  %v1524 = vclz %v1523
  %v1525 = vsub.s32 %v1524, 2
  %vm1526 = vcmp.gt.s32.totalorder 0, %v1525
  %v1527 = vsel %vm1526, 0, %v1525
  %v1528 = vsub.s32 32, %v1527
  %v1529 = vshll.u32 %v1520, %v1527
  %v1530 = vshrl.u32 %v1512, %v1528
  %v1531 = vor.u32 %v1529, %v1530
  %v1532 = vsub.s32 4294967266, %v1527
  %v1533 = vadd.s32 %v1532, 127
  %v1534 = vshll.u32 %v1533, 23
  %v1535 = vor.u32 4788187, %v1534
  %v1536 = vand.u32 2147483647, %v1535
  %v1538 = vcvt.s32.f32 %v1531
  %v1539 = vmul.f32 %v1538, %v1536
  %v1540 = vxor.u32 %v1539, 2147483648
  %v1541 = vsel %vm1420, %v1540, %v1539
  %v1542 = vsub.s32 4, %v1518
  %v1543 = vsel %vm1420, %v1542, %v1518
  %v1544 = vsel %vm1419, %v468, %v1541
  %v1545 = vsel %vm1419, 0, %v1543
  %v1546 = vmul.f32 %v1544, %v1544
  %v1547 = vmul.f32 %v1546, -0.001358992
  %v1548 = vadd.f32 %v1547, 0.041655596
  %v1549 = vmul.f32 %v1546, %v1548
  %v1550 = vadd.f32 %v1549, -0.4999988
  %v1551 = vmul.f32 %v1546, %v1550
  %v1552 = vadd.f32 1.0, %v1551
  %v1553 = vmul.f32 %v1544, %v1544
  %v1554 = vmul.f32 %v1553, -0.00019511016
  %v1555 = vadd.f32 %v1554, 0.008332121
  %v1556 = vmul.f32 %v1553, %v1555
  %v1557 = vadd.f32 %v1556, -0.16666654
  %v1558 = vmul.f32 %v1553, %v1557
  %v1559 = vadd.f32 %v1558, 1.0
  %v1560 = vmul.f32 %v1559, %v1544
  %vm1561 = vweird.f32 %v468
  %v1562 = vand.u32 %v1545, 3
  %vm1563 = vcmp.lt.s32.totalorder %v1562, 2
  %vm1564 = vcmp.eq.s32.totalorder %v1562, 0
  %v1565 = vxor.u32 %v1560, 2147483648
  %v1566 = vsel %vm1564, %v1552, %v1565
  %vm1567 = vcmp.eq.s32.totalorder %v1562, 2
  %v1568 = vxor.u32 %v1552, 2147483648
  %v1569 = vsel %vm1567, %v1568, %v1560
  %v1570 = vsel %vm1563, %v1566, %v1569
  %v1571 = vsel %vm1561, nan, %v1570
  %v1572 = vand.u32 2147483647, %v469
  %vm1573 = vcmp.le.f32.partialorder %v1572, 0.7853982
  %vm1574 = vcmp.lt.s32.totalorder %v469, 0
  %v1575 = vand.u32 %v469, 2139095040
  %v1576 = vshrl.u32 %v1575, 23
  %v1577 = vsub.s32 %v1576, 127
  %v1578 = vand.u32 2147483647, %v469
  %v1579 = vand.u32 %v1578, 8388607
  %v1580 = vor.u32 %v1579, 8388608
  %v1581 = vsub.s32 0, %v1580
  %v1582 = vadd.s32 %v1577, 1
  %vm1583 = vcmp.gt.s32.totalorder %v1582, 0
  %v1584 = vsel %vm1583, %v1582, 0
  %v1585 = vshrl.u32 %v1584, 5
  %v1586 = vand.u32 %v1584, 31
  %v1587 = vsub.s32 32, %v1586
  %v1588 = vshrl.u32 683565275, %v1587
  %v1589 = vshll.u32 683565275, %v1586
  %v1590 = vshrl.u32 2475754826, %v1587
  %v1591 = vor.u32 %v1589, %v1590
  %v1592 = vshll.u32 2475754826, %v1586
  %v1593 = vshrl.u32 2131351028, %v1587
  %v1594 = vor.u32 %v1592, %v1593
  %v1595 = vshll.u32 2131351028, %v1586
  %v1596 = vshrl.u32 2102212464, %v1587
  %v1597 = vor.u32 %v1595, %v1596
  %v1598 = vshll.u32 2102212464, %v1586
  %v1599 = vshrl.u32 920167782, %v1587
  %v1600 = vor.u32 %v1598, %v1599
  %v1601 = vshll.u32 920167782, %v1586
  %v1602 = vshrl.u32 1326507024, %v1587
  %v1603 = vor.u32 %v1601, %v1602
  %vm1604 = vcmp.lt.s32.totalorder %v1585, 1
  %vm1605 = vcmp.lt.s32.totalorder %v1585, 2
  %vm1606 = vcmp.lt.s32.totalorder %v1585, 3
  %vm1607 = vcmp.lt.s32.totalorder %v1585, 4
  %v1608 = vsel %vm1604, %v1588, %v1591
  %v1609 = vsel %vm1607, %v1597, 2102212464
  %v1610 = vsel %vm1606, %v1594, %v1609
  %v1611 = vsel %vm1605, %v1608, %v1610
  %v1612 = vsel %vm1604, %v1591, %v1594
  %v1613 = vsel %vm1607, %v1600, 920167782
  %v1614 = vsel %vm1606, %v1597, %v1613
  %v1615 = vsel %vm1605, %v1612, %v1614
  %v1616 = vsel %vm1604, %v1594, %v1597
  %v1617 = vsel %vm1607, %v1603, 1326507024
  %v1618 = vsel %vm1606, %v1600, %v1617
  %v1619 = vsel %vm1605, %v1616, %v1618
  %v1620 = vshll.u32 %v1580, 8
  %v1621 = vand.u32 %v1620, 65535
  %v1622 = vshrl.u32 %v1620, 16
  %v1623 = vand.u32 %v1619, 65535
  %v1624 = vshrl.u32 %v1619, 16
  %v1625 = vmul.u32 %v1621, %v1623
  %v1626 = vmul.u32 %v1621, %v1624
  %v1627 = vmul.u32 %v1622, %v1623
  %v1628 = vmul.u32 %v1622, %v1624
  %v1629 = vshll.u32 %v1626, 16
  %v1630 = vshrl.u32 %v1626, 16
  %v1631 = vshll.u32 %v1627, 16
  %v1632 = vshrl.u32 %v1627, 16
  %vm1633 = vc.u32 %v1625, %v1629
  %v1634 = vsel %vm1633, 1, 0
  %v1635 = vadd.s32 %v1625, %v1629
  %v1636 = vadd.s32 %v1628, %v1634
  %vm1637 = vc.u32 %v1635, %v1631
  %v1638 = vsel %vm1637, 1, 0
  %v1639 = vadd.s32 %v1635, %v1631
  %v1640 = vadd.s32 %v1636, %v1638
  %v1641 = vadd.s32 %v1640, %v1630
  %v1642 = vadd.s32 %v1641, %v1632
  %v1643 = vand.u32 %v1620, 65535
  %v1644 = vshrl.u32 %v1620, 16
  %v1645 = vand.u32 %v1615, 65535
  %v1646 = vshrl.u32 %v1615, 16
  %v1647 = vmul.u32 %v1643, %v1645
  %v1648 = vmul.u32 %v1643, %v1646
  %v1649 = vmul.u32 %v1644, %v1645
  %v1650 = vmul.u32 %v1644, %v1646
  %v1651 = vshll.u32 %v1648, 16
  %v1652 = vshrl.u32 %v1648, 16
  %v1653 = vshll.u32 %v1649, 16
  %v1654 = vshrl.u32 %v1649, 16
  %vm1655 = vc.u32 %v1647, %v1651
  %v1656 = vsel %vm1655, 1, 0
  %v1657 = vadd.s32 %v1647, %v1651
  %v1658 = vadd.s32 %v1650, %v1656
  %vm1659 = vc.u32 %v1657, %v1653
  %v1660 = vsel %vm1659, 1, 0
  %v1661 = vadd.s32 %v1657, %v1653
  %v1662 = vadd.s32 %v1658, %v1660
  %v1663 = vadd.s32 %v1662, %v1652
  %v1664 = vadd.s32 %v1663, %v1654
  %v1665 = vmul.u32 %v1620, %v1611
  %v1666 = vadd.s32 %v1642, %v1661
  %vm1667 = vc.u32 %v1642, %v1661
  %v1668 = vadd.s32 %v1664, 1
  %v1669 = vsel %vm1667, %v1668, %v1664
  %v1670 = vadd.s32 %v1665, %v1669
  %v1671 = vadd.s32 %v1670, 536870912
  %v1672 = vshrl.u32 %v1671, 30
  %v1673 = vshll.u32 %v1672, 30
  %v1674 = vsub.s32 %v1670, %v1673
  %vm1675 = vcmp.lt.s32.totalorder %v1674, 0
  %v1676 = vsub.s32 0, %v1674
  %v1677 = vsel %vm1675, %v1676, %v1674
  %v1678 = vclz %v1677
  %v1679 = vsub.s32 %v1678, 2
  %vm1680 = vcmp.gt.s32.totalorder 0, %v1679
  %v1681 = vsel %vm1680, 0, %v1679
  %v1682 = vsub.s32 32, %v1681
  %v1683 = vshll.u32 %v1674, %v1681
  %v1684 = vshrl.u32 %v1666, %v1682
  %v1685 = vor.u32 %v1683, %v1684
  %v1686 = vsub.s32 4294967266, %v1681
  %v1687 = vadd.s32 %v1686, 127
  %v1688 = vshll.u32 %v1687, 23
  %v1689 = vor.u32 4788187, %v1688
  %v1690 = vand.u32 2147483647, %v1689
  %v1692 = vcvt.s32.f32 %v1685
  %v1693 = vmul.f32 %v1692, %v1690
  %v1694 = vxor.u32 %v1693, 2147483648
  %v1695 = vsel %vm1574, %v1694, %v1693
  %v1696 = vsub.s32 4, %v1672
  %v1697 = vsel %vm1574, %v1696, %v1672
  %v1698 = vsel %vm1573, %v469, %v1695
  %v1699 = vsel %vm1573, 0, %v1697
  %v1700 = vmul.f32 %v1698, %v1698
  %v1701 = vmul.f32 %v1700, -0.001358992
  %v1702 = vadd.f32 %v1701, 0.041655596
  %v1703 = vmul.f32 %v1700, %v1702
  %v1704 = vadd.f32 %v1703, -0.4999988
  %v1705 = vmul.f32 %v1700, %v1704
  %v1706 = vadd.f32 1.0, %v1705
  %v1707 = vmul.f32 %v1698, %v1698
  %v1708 = vmul.f32 %v1707, -0.00019511016
  %v1709 = vadd.f32 %v1708, 0.008332121
  %v1710 = vmul.f32 %v1707, %v1709
  %v1711 = vadd.f32 %v1710, -0.16666654
  %v1712 = vmul.f32 %v1707, %v1711
  %v1713 = vadd.f32 %v1712, 1.0
  %v1714 = vmul.f32 %v1713, %v1698
  %vm1715 = vweird.f32 %v469
  %v1716 = vand.u32 %v1699, 3
  %vm1717 = vcmp.lt.s32.totalorder %v1716, 2
  %vm1718 = vcmp.eq.s32.totalorder %v1716, 0
  %v1719 = vxor.u32 %v1714, 2147483648
  %v1720 = vsel %vm1718, %v1706, %v1719
  %vm1721 = vcmp.eq.s32.totalorder %v1716, 2
  %v1722 = vxor.u32 %v1706, 2147483648
  %v1723 = vsel %vm1721, %v1722, %v1714
  %v1724 = vsel %vm1717, %v1720, %v1723
  %v1725 = vsel %vm1715, nan, %v1724
  %v1726 = vand.u32 2147483647, %v470
  %vm1727 = vcmp.le.f32.partialorder %v1726, 0.7853982
  %vm1728 = vcmp.lt.s32.totalorder %v470, 0
  %v1729 = vand.u32 %v470, 2139095040
  %v1730 = vshrl.u32 %v1729, 23
  %v1731 = vsub.s32 %v1730, 127
  %v1732 = vand.u32 2147483647, %v470
  %v1733 = vand.u32 %v1732, 8388607
  %v1734 = vor.u32 %v1733, 8388608
  %v1735 = vsub.s32 0, %v1734
  %v1736 = vadd.s32 %v1731, 1
  %vm1737 = vcmp.gt.s32.totalorder %v1736, 0
  %v1738 = vsel %vm1737, %v1736, 0
  %v1739 = vshrl.u32 %v1738, 5
  %v1740 = vand.u32 %v1738, 31
  %v1741 = vsub.s32 32, %v1740
  %v1742 = vshrl.u32 683565275, %v1741
  %v1743 = vshll.u32 683565275, %v1740
  %v1744 = vshrl.u32 2475754826, %v1741
  %v1745 = vor.u32 %v1743, %v1744
  %v1746 = vshll.u32 2475754826, %v1740
  %v1747 = vshrl.u32 2131351028, %v1741
  %v1748 = vor.u32 %v1746, %v1747
  %v1749 = vshll.u32 2131351028, %v1740
  %v1750 = vshrl.u32 2102212464, %v1741
  %v1751 = vor.u32 %v1749, %v1750
  %v1752 = vshll.u32 2102212464, %v1740
  %v1753 = vshrl.u32 920167782, %v1741
  %v1754 = vor.u32 %v1752, %v1753
  %v1755 = vshll.u32 920167782, %v1740
  %v1756 = vshrl.u32 1326507024, %v1741
  %v1757 = vor.u32 %v1755, %v1756
  %vm1758 = vcmp.lt.s32.totalorder %v1739, 1
  %vm1759 = vcmp.lt.s32.totalorder %v1739, 2
  %vm1760 = vcmp.lt.s32.totalorder %v1739, 3
  %vm1761 = vcmp.lt.s32.totalorder %v1739, 4
  %v1762 = vsel %vm1758, %v1742, %v1745
  %v1763 = vsel %vm1761, %v1751, 2102212464
  %v1764 = vsel %vm1760, %v1748, %v1763
  %v1765 = vsel %vm1759, %v1762, %v1764
  %v1766 = vsel %vm1758, %v1745, %v1748
  %v1767 = vsel %vm1761, %v1754, 920167782
  %v1768 = vsel %vm1760, %v1751, %v1767
  %v1769 = vsel %vm1759, %v1766, %v1768
  %v1770 = vsel %vm1758, %v1748, %v1751
  %v1771 = vsel %vm1761, %v1757, 1326507024
  %v1772 = vsel %vm1760, %v1754, %v1771
  %v1773 = vsel %vm1759, %v1770, %v1772
  %v1774 = vshll.u32 %v1734, 8
  %v1775 = vand.u32 %v1774, 65535
  %v1776 = vshrl.u32 %v1774, 16
  %v1777 = vand.u32 %v1773, 65535
  %v1778 = vshrl.u32 %v1773, 16
  %v1779 = vmul.u32 %v1775, %v1777
  %v1780 = vmul.u32 %v1775, %v1778
  %v1781 = vmul.u32 %v1776, %v1777
  %v1782 = vmul.u32 %v1776, %v1778
  %v1783 = vshll.u32 %v1780, 16
  %v1784 = vshrl.u32 %v1780, 16
  %v1785 = vshll.u32 %v1781, 16
  %v1786 = vshrl.u32 %v1781, 16
  %vm1787 = vc.u32 %v1779, %v1783
  %v1788 = vsel %vm1787, 1, 0
  %v1789 = vadd.s32 %v1779, %v1783
  %v1790 = vadd.s32 %v1782, %v1788
  %vm1791 = vc.u32 %v1789, %v1785
  %v1792 = vsel %vm1791, 1, 0
  %v1793 = vadd.s32 %v1789, %v1785
  %v1794 = vadd.s32 %v1790, %v1792
  %v1795 = vadd.s32 %v1794, %v1784
  %v1796 = vadd.s32 %v1795, %v1786
  %v1797 = vand.u32 %v1774, 65535
  %v1798 = vshrl.u32 %v1774, 16
  %v1799 = vand.u32 %v1769, 65535
  %v1800 = vshrl.u32 %v1769, 16
  %v1801 = vmul.u32 %v1797, %v1799
  %v1802 = vmul.u32 %v1797, %v1800
  %v1803 = vmul.u32 %v1798, %v1799
  %v1804 = vmul.u32 %v1798, %v1800
  %v1805 = vshll.u32 %v1802, 16
  %v1806 = vshrl.u32 %v1802, 16
  %v1807 = vshll.u32 %v1803, 16
  %v1808 = vshrl.u32 %v1803, 16
  %vm1809 = vc.u32 %v1801, %v1805
  %v1810 = vsel %vm1809, 1, 0
  %v1811 = vadd.s32 %v1801, %v1805
  %v1812 = vadd.s32 %v1804, %v1810
  %vm1813 = vc.u32 %v1811, %v1807
  %v1814 = vsel %vm1813, 1, 0
  %v1815 = vadd.s32 %v1811, %v1807
  %v1816 = vadd.s32 %v1812, %v1814
  %v1817 = vadd.s32 %v1816, %v1806
  %v1818 = vadd.s32 %v1817, %v1808
  %v1819 = vmul.u32 %v1774, %v1765
  %v1820 = vadd.s32 %v1796, %v1815
  %vm1821 = vc.u32 %v1796, %v1815
  %v1822 = vadd.s32 %v1818, 1
  %v1823 = vsel %vm1821, %v1822, %v1818
  %v1824 = vadd.s32 %v1819, %v1823
  %v1825 = vadd.s32 %v1824, 536870912
  %v1826 = vshrl.u32 %v1825, 30
  %v1827 = vshll.u32 %v1826, 30
  %v1828 = vsub.s32 %v1824, %v1827
  %vm1829 = vcmp.lt.s32.totalorder %v1828, 0
  %v1830 = vsub.s32 0, %v1828
  %v1831 = vsel %vm1829, %v1830, %v1828
  %v1832 = vclz %v1831
  %v1833 = vsub.s32 %v1832, 2
  %vm1834 = vcmp.gt.s32.totalorder 0, %v1833
  %v1835 = vsel %vm1834, 0, %v1833
  %v1836 = vsub.s32 32, %v1835
  %v1837 = vshll.u32 %v1828, %v1835
  %v1838 = vshrl.u32 %v1820, %v1836
  %v1839 = vor.u32 %v1837, %v1838
  %v1840 = vsub.s32 4294967266, %v1835
  %v1841 = vadd.s32 %v1840, 127
  %v1842 = vshll.u32 %v1841, 23
  %v1843 = vor.u32 4788187, %v1842
  %v1844 = vand.u32 2147483647, %v1843
  %v1846 = vcvt.s32.f32 %v1839
  %v1847 = vmul.f32 %v1846, %v1844
  %v1848 = vxor.u32 %v1847, 2147483648
  %v1849 = vsel %vm1728, %v1848, %v1847
  %v1850 = vsub.s32 4, %v1826
  %v1851 = vsel %vm1728, %v1850, %v1826
  %v1852 = vsel %vm1727, %v470, %v1849
  %v1853 = vsel %vm1727, 0, %v1851
  %v1854 = vmul.f32 %v1852, %v1852
  %v1855 = vmul.f32 %v1854, -0.001358992
  %v1856 = vadd.f32 %v1855, 0.041655596
  %v1857 = vmul.f32 %v1854, %v1856
  %v1858 = vadd.f32 %v1857, -0.4999988
  %v1859 = vmul.f32 %v1854, %v1858
  %v1860 = vadd.f32 1.0, %v1859
  %v1861 = vmul.f32 %v1852, %v1852
  %v1862 = vmul.f32 %v1861, -0.00019511016
  %v1863 = vadd.f32 %v1862, 0.008332121
  %v1864 = vmul.f32 %v1861, %v1863
  %v1865 = vadd.f32 %v1864, -0.16666654
  %v1866 = vmul.f32 %v1861, %v1865
  %v1867 = vadd.f32 %v1866, 1.0
  %v1868 = vmul.f32 %v1867, %v1852
  %vm1869 = vweird.f32 %v470
  %v1870 = vand.u32 %v1853, 3
  %vm1871 = vcmp.lt.s32.totalorder %v1870, 2
  %vm1872 = vcmp.eq.s32.totalorder %v1870, 0
  %v1873 = vxor.u32 %v1868, 2147483648
  %v1874 = vsel %vm1872, %v1860, %v1873
  %vm1875 = vcmp.eq.s32.totalorder %v1870, 2
  %v1876 = vxor.u32 %v1860, 2147483648
  %v1877 = vsel %vm1875, %v1876, %v1868
  %v1878 = vsel %vm1871, %v1874, %v1877
  %v1879 = vsel %vm1869, nan, %v1878
  %v1880 = vand.u32 2147483647, %v471
  %vm1881 = vcmp.le.f32.partialorder %v1880, 0.7853982
  %vm1882 = vcmp.lt.s32.totalorder %v471, 0
  %v1883 = vand.u32 %v471, 2139095040
  %v1884 = vshrl.u32 %v1883, 23
  %v1885 = vsub.s32 %v1884, 127
  %v1886 = vand.u32 2147483647, %v471
  %v1887 = vand.u32 %v1886, 8388607
  %v1888 = vor.u32 %v1887, 8388608
  %v1889 = vsub.s32 0, %v1888
  %v1890 = vadd.s32 %v1885, 1
  %vm1891 = vcmp.gt.s32.totalorder %v1890, 0
  %v1892 = vsel %vm1891, %v1890, 0
  %v1893 = vshrl.u32 %v1892, 5
  %v1894 = vand.u32 %v1892, 31
  %v1895 = vsub.s32 32, %v1894
  %v1896 = vshrl.u32 683565275, %v1895
  %v1897 = vshll.u32 683565275, %v1894
  %v1898 = vshrl.u32 2475754826, %v1895
  %v1899 = vor.u32 %v1897, %v1898
  %v1900 = vshll.u32 2475754826, %v1894
  %v1901 = vshrl.u32 2131351028, %v1895
  %v1902 = vor.u32 %v1900, %v1901
  %v1903 = vshll.u32 2131351028, %v1894
  %v1904 = vshrl.u32 2102212464, %v1895
  %v1905 = vor.u32 %v1903, %v1904
  %v1906 = vshll.u32 2102212464, %v1894
  %v1907 = vshrl.u32 920167782, %v1895
  %v1908 = vor.u32 %v1906, %v1907
  %v1909 = vshll.u32 920167782, %v1894
  %v1910 = vshrl.u32 1326507024, %v1895
  %v1911 = vor.u32 %v1909, %v1910
  %vm1912 = vcmp.lt.s32.totalorder %v1893, 1
  %vm1913 = vcmp.lt.s32.totalorder %v1893, 2
  %vm1914 = vcmp.lt.s32.totalorder %v1893, 3
  %vm1915 = vcmp.lt.s32.totalorder %v1893, 4
  %v1916 = vsel %vm1912, %v1896, %v1899
  %v1917 = vsel %vm1915, %v1905, 2102212464
  %v1918 = vsel %vm1914, %v1902, %v1917
  %v1919 = vsel %vm1913, %v1916, %v1918
  %v1920 = vsel %vm1912, %v1899, %v1902
  %v1921 = vsel %vm1915, %v1908, 920167782
  %v1922 = vsel %vm1914, %v1905, %v1921
  %v1923 = vsel %vm1913, %v1920, %v1922
  %v1924 = vsel %vm1912, %v1902, %v1905
  %v1925 = vsel %vm1915, %v1911, 1326507024
  %v1926 = vsel %vm1914, %v1908, %v1925
  %v1927 = vsel %vm1913, %v1924, %v1926
  %v1928 = vshll.u32 %v1888, 8
  %v1929 = vand.u32 %v1928, 65535
  %v1930 = vshrl.u32 %v1928, 16
  %v1931 = vand.u32 %v1927, 65535
  %v1932 = vshrl.u32 %v1927, 16
  %v1933 = vmul.u32 %v1929, %v1931
  %v1934 = vmul.u32 %v1929, %v1932
  %v1935 = vmul.u32 %v1930, %v1931
  %v1936 = vmul.u32 %v1930, %v1932
  %v1937 = vshll.u32 %v1934, 16
  %v1938 = vshrl.u32 %v1934, 16
  %v1939 = vshll.u32 %v1935, 16
  %v1940 = vshrl.u32 %v1935, 16
  %vm1941 = vc.u32 %v1933, %v1937
  %v1942 = vsel %vm1941, 1, 0
  %v1943 = vadd.s32 %v1933, %v1937
  %v1944 = vadd.s32 %v1936, %v1942
  %vm1945 = vc.u32 %v1943, %v1939
  %v1946 = vsel %vm1945, 1, 0
  %v1947 = vadd.s32 %v1943, %v1939
  %v1948 = vadd.s32 %v1944, %v1946
  %v1949 = vadd.s32 %v1948, %v1938
  %v1950 = vadd.s32 %v1949, %v1940
  %v1951 = vand.u32 %v1928, 65535
  %v1952 = vshrl.u32 %v1928, 16
  %v1953 = vand.u32 %v1923, 65535
  %v1954 = vshrl.u32 %v1923, 16
  %v1955 = vmul.u32 %v1951, %v1953
  %v1956 = vmul.u32 %v1951, %v1954
  %v1957 = vmul.u32 %v1952, %v1953
  %v1958 = vmul.u32 %v1952, %v1954
  %v1959 = vshll.u32 %v1956, 16
  %v1960 = vshrl.u32 %v1956, 16
  %v1961 = vshll.u32 %v1957, 16
  %v1962 = vshrl.u32 %v1957, 16
  %vm1963 = vc.u32 %v1955, %v1959
  %v1964 = vsel %vm1963, 1, 0
  %v1965 = vadd.s32 %v1955, %v1959
  %v1966 = vadd.s32 %v1958, %v1964
  %vm1967 = vc.u32 %v1965, %v1961
  %v1968 = vsel %vm1967, 1, 0
  %v1969 = vadd.s32 %v1965, %v1961
  %v1970 = vadd.s32 %v1966, %v1968
  %v1971 = vadd.s32 %v1970, %v1960
  %v1972 = vadd.s32 %v1971, %v1962
  %v1973 = vmul.u32 %v1928, %v1919
  %v1974 = vadd.s32 %v1950, %v1969
  %vm1975 = vc.u32 %v1950, %v1969
  %v1976 = vadd.s32 %v1972, 1
  %v1977 = vsel %vm1975, %v1976, %v1972
  %v1978 = vadd.s32 %v1973, %v1977
  %v1979 = vadd.s32 %v1978, 536870912
  %v1980 = vshrl.u32 %v1979, 30
  %v1981 = vshll.u32 %v1980, 30
  %v1982 = vsub.s32 %v1978, %v1981
  %vm1983 = vcmp.lt.s32.totalorder %v1982, 0
  %v1984 = vsub.s32 0, %v1982
  %v1985 = vsel %vm1983, %v1984, %v1982
  %v1986 = vclz %v1985
  %v1987 = vsub.s32 %v1986, 2
  %vm1988 = vcmp.gt.s32.totalorder 0, %v1987
  %v1989 = vsel %vm1988, 0, %v1987
  %v1990 = vsub.s32 32, %v1989
  %v1991 = vshll.u32 %v1982, %v1989
  %v1992 = vshrl.u32 %v1974, %v1990
  %v1993 = vor.u32 %v1991, %v1992
  %v1994 = vsub.s32 4294967266, %v1989
  %v1995 = vadd.s32 %v1994, 127
  %v1996 = vshll.u32 %v1995, 23
  %v1997 = vor.u32 4788187, %v1996
  %v1998 = vand.u32 2147483647, %v1997
  %v2000 = vcvt.s32.f32 %v1993
  %v2001 = vmul.f32 %v2000, %v1998
  %v2002 = vxor.u32 %v2001, 2147483648
  %v2003 = vsel %vm1882, %v2002, %v2001
  %v2004 = vsub.s32 4, %v1980
  %v2005 = vsel %vm1882, %v2004, %v1980
  %v2006 = vsel %vm1881, %v471, %v2003
  %v2007 = vsel %vm1881, 0, %v2005
  %v2008 = vmul.f32 %v2006, %v2006
  %v2009 = vmul.f32 %v2008, -0.001358992
  %v2010 = vadd.f32 %v2009, 0.041655596
  %v2011 = vmul.f32 %v2008, %v2010
  %v2012 = vadd.f32 %v2011, -0.4999988
  %v2013 = vmul.f32 %v2008, %v2012
  %v2014 = vadd.f32 1.0, %v2013
  %v2015 = vmul.f32 %v2006, %v2006
  %v2016 = vmul.f32 %v2015, -0.00019511016
  %v2017 = vadd.f32 %v2016, 0.008332121
  %v2018 = vmul.f32 %v2015, %v2017
  %v2019 = vadd.f32 %v2018, -0.16666654
  %v2020 = vmul.f32 %v2015, %v2019
  %v2021 = vadd.f32 %v2020, 1.0
  %v2022 = vmul.f32 %v2021, %v2006
  %vm2023 = vweird.f32 %v471
  %v2024 = vand.u32 %v2007, 3
  %vm2025 = vcmp.lt.s32.totalorder %v2024, 2
  %vm2026 = vcmp.eq.s32.totalorder %v2024, 0
  %v2027 = vxor.u32 %v2022, 2147483648
  %v2028 = vsel %vm2026, %v2014, %v2027
  %vm2029 = vcmp.eq.s32.totalorder %v2024, 2
  %v2030 = vxor.u32 %v2014, 2147483648
  %v2031 = vsel %vm2029, %v2030, %v2022
  %v2032 = vsel %vm2025, %v2028, %v2031
  %v2033 = vsel %vm2023, nan, %v2032
  %v2034 = vand.u32 2147483647, %v472
  %vm2035 = vcmp.le.f32.partialorder %v2034, 0.7853982
  %vm2036 = vcmp.lt.s32.totalorder %v472, 0
  %v2037 = vand.u32 %v472, 2139095040
  %v2038 = vshrl.u32 %v2037, 23
  %v2039 = vsub.s32 %v2038, 127
  %v2040 = vand.u32 2147483647, %v472
  %v2041 = vand.u32 %v2040, 8388607
  %v2042 = vor.u32 %v2041, 8388608
  %v2043 = vsub.s32 0, %v2042
  %v2044 = vadd.s32 %v2039, 1
  %vm2045 = vcmp.gt.s32.totalorder %v2044, 0
  %v2046 = vsel %vm2045, %v2044, 0
  %v2047 = vshrl.u32 %v2046, 5
  %v2048 = vand.u32 %v2046, 31
  %v2049 = vsub.s32 32, %v2048
  %v2050 = vshrl.u32 683565275, %v2049
  %v2051 = vshll.u32 683565275, %v2048
  %v2052 = vshrl.u32 2475754826, %v2049
  %v2053 = vor.u32 %v2051, %v2052
  %v2054 = vshll.u32 2475754826, %v2048
  %v2055 = vshrl.u32 2131351028, %v2049
  %v2056 = vor.u32 %v2054, %v2055
  %v2057 = vshll.u32 2131351028, %v2048
  %v2058 = vshrl.u32 2102212464, %v2049
  %v2059 = vor.u32 %v2057, %v2058
  %v2060 = vshll.u32 2102212464, %v2048
  %v2061 = vshrl.u32 920167782, %v2049
  %v2062 = vor.u32 %v2060, %v2061
  %v2063 = vshll.u32 920167782, %v2048
  %v2064 = vshrl.u32 1326507024, %v2049
  %v2065 = vor.u32 %v2063, %v2064
  %vm2066 = vcmp.lt.s32.totalorder %v2047, 1
  %vm2067 = vcmp.lt.s32.totalorder %v2047, 2
  %vm2068 = vcmp.lt.s32.totalorder %v2047, 3
  %vm2069 = vcmp.lt.s32.totalorder %v2047, 4
  %v2070 = vsel %vm2066, %v2050, %v2053
  %v2071 = vsel %vm2069, %v2059, 2102212464
  %v2072 = vsel %vm2068, %v2056, %v2071
  %v2073 = vsel %vm2067, %v2070, %v2072
  %v2074 = vsel %vm2066, %v2053, %v2056
  %v2075 = vsel %vm2069, %v2062, 920167782
  %v2076 = vsel %vm2068, %v2059, %v2075
  %v2077 = vsel %vm2067, %v2074, %v2076
  %v2078 = vsel %vm2066, %v2056, %v2059
  %v2079 = vsel %vm2069, %v2065, 1326507024
  %v2080 = vsel %vm2068, %v2062, %v2079
  %v2081 = vsel %vm2067, %v2078, %v2080
  %v2082 = vshll.u32 %v2042, 8
  %v2083 = vand.u32 %v2082, 65535
  %v2084 = vshrl.u32 %v2082, 16
  %v2085 = vand.u32 %v2081, 65535
  %v2086 = vshrl.u32 %v2081, 16
  %v2087 = vmul.u32 %v2083, %v2085
  %v2088 = vmul.u32 %v2083, %v2086
  %v2089 = vmul.u32 %v2084, %v2085
  %v2090 = vmul.u32 %v2084, %v2086
  %v2091 = vshll.u32 %v2088, 16
  %v2092 = vshrl.u32 %v2088, 16
  %v2093 = vshll.u32 %v2089, 16
  %v2094 = vshrl.u32 %v2089, 16
  %vm2095 = vc.u32 %v2087, %v2091
  %v2096 = vsel %vm2095, 1, 0
  %v2097 = vadd.s32 %v2087, %v2091
  %v2098 = vadd.s32 %v2090, %v2096
  %vm2099 = vc.u32 %v2097, %v2093
  %v2100 = vsel %vm2099, 1, 0
  %v2101 = vadd.s32 %v2097, %v2093
  %v2102 = vadd.s32 %v2098, %v2100
  %v2103 = vadd.s32 %v2102, %v2092
  %v2104 = vadd.s32 %v2103, %v2094
  %v2105 = vand.u32 %v2082, 65535
  %v2106 = vshrl.u32 %v2082, 16
  %v2107 = vand.u32 %v2077, 65535
  %v2108 = vshrl.u32 %v2077, 16
  %v2109 = vmul.u32 %v2105, %v2107
  %v2110 = vmul.u32 %v2105, %v2108
  %v2111 = vmul.u32 %v2106, %v2107
  %v2112 = vmul.u32 %v2106, %v2108
  %v2113 = vshll.u32 %v2110, 16
  %v2114 = vshrl.u32 %v2110, 16
  %v2115 = vshll.u32 %v2111, 16
  %v2116 = vshrl.u32 %v2111, 16
  %vm2117 = vc.u32 %v2109, %v2113
  %v2118 = vsel %vm2117, 1, 0
  %v2119 = vadd.s32 %v2109, %v2113
  %v2120 = vadd.s32 %v2112, %v2118
  %vm2121 = vc.u32 %v2119, %v2115
  %v2122 = vsel %vm2121, 1, 0
  %v2123 = vadd.s32 %v2119, %v2115
  %v2124 = vadd.s32 %v2120, %v2122
  %v2125 = vadd.s32 %v2124, %v2114
  %v2126 = vadd.s32 %v2125, %v2116
  %v2127 = vmul.u32 %v2082, %v2073
  %v2128 = vadd.s32 %v2104, %v2123
  %vm2129 = vc.u32 %v2104, %v2123
  %v2130 = vadd.s32 %v2126, 1
  %v2131 = vsel %vm2129, %v2130, %v2126
  %v2132 = vadd.s32 %v2127, %v2131
  %v2133 = vadd.s32 %v2132, 536870912
  %v2134 = vshrl.u32 %v2133, 30
  %v2135 = vshll.u32 %v2134, 30
  %v2136 = vsub.s32 %v2132, %v2135
  %vm2137 = vcmp.lt.s32.totalorder %v2136, 0
  %v2138 = vsub.s32 0, %v2136
  %v2139 = vsel %vm2137, %v2138, %v2136
  %v2140 = vclz %v2139
  %v2141 = vsub.s32 %v2140, 2
  %vm2142 = vcmp.gt.s32.totalorder 0, %v2141
  %v2143 = vsel %vm2142, 0, %v2141
  %v2144 = vsub.s32 32, %v2143
  %v2145 = vshll.u32 %v2136, %v2143
  %v2146 = vshrl.u32 %v2128, %v2144
  %v2147 = vor.u32 %v2145, %v2146
  %v2148 = vsub.s32 4294967266, %v2143
  %v2149 = vadd.s32 %v2148, 127
  %v2150 = vshll.u32 %v2149, 23
  %v2151 = vor.u32 4788187, %v2150
  %v2152 = vand.u32 2147483647, %v2151
  %v2154 = vcvt.s32.f32 %v2147
  %v2155 = vmul.f32 %v2154, %v2152
  %v2156 = vxor.u32 %v2155, 2147483648
  %v2157 = vsel %vm2036, %v2156, %v2155
  %v2158 = vsub.s32 4, %v2134
  %v2159 = vsel %vm2036, %v2158, %v2134
  %v2160 = vsel %vm2035, %v472, %v2157
  %v2161 = vsel %vm2035, 0, %v2159
  %v2162 = vmul.f32 %v2160, %v2160
  %v2163 = vmul.f32 %v2162, -0.001358992
  %v2164 = vadd.f32 %v2163, 0.041655596
  %v2165 = vmul.f32 %v2162, %v2164
  %v2166 = vadd.f32 %v2165, -0.4999988
  %v2167 = vmul.f32 %v2162, %v2166
  %v2168 = vadd.f32 1.0, %v2167
  %v2169 = vmul.f32 %v2160, %v2160
  %v2170 = vmul.f32 %v2169, -0.00019511016
  %v2171 = vadd.f32 %v2170, 0.008332121
  %v2172 = vmul.f32 %v2169, %v2171
  %v2173 = vadd.f32 %v2172, -0.16666654
  %v2174 = vmul.f32 %v2169, %v2173
  %v2175 = vadd.f32 %v2174, 1.0
  %v2176 = vmul.f32 %v2175, %v2160
  %vm2177 = vweird.f32 %v472
  %v2178 = vand.u32 %v2161, 3
  %vm2179 = vcmp.lt.s32.totalorder %v2178, 2
  %vm2180 = vcmp.eq.s32.totalorder %v2178, 0
  %v2181 = vxor.u32 %v2176, 2147483648
  %v2182 = vsel %vm2180, %v2168, %v2181
  %vm2183 = vcmp.eq.s32.totalorder %v2178, 2
  %v2184 = vxor.u32 %v2168, 2147483648
  %v2185 = vsel %vm2183, %v2184, %v2176
  %v2186 = vsel %vm2179, %v2182, %v2185
  %v2187 = vsel %vm2177, nan, %v2186
  %v2188 = vand.u32 2147483647, %v473
  %vm2189 = vcmp.le.f32.partialorder %v2188, 0.7853982
  %vm2190 = vcmp.lt.s32.totalorder %v473, 0
  %v2191 = vand.u32 %v473, 2139095040
  %v2192 = vshrl.u32 %v2191, 23
  %v2193 = vsub.s32 %v2192, 127
  %v2194 = vand.u32 2147483647, %v473
  %v2195 = vand.u32 %v2194, 8388607
  %v2196 = vor.u32 %v2195, 8388608
  %v2197 = vsub.s32 0, %v2196
  %v2198 = vadd.s32 %v2193, 1
  %vm2199 = vcmp.gt.s32.totalorder %v2198, 0
  %v2200 = vsel %vm2199, %v2198, 0
  %v2201 = vshrl.u32 %v2200, 5
  %v2202 = vand.u32 %v2200, 31
  %v2203 = vsub.s32 32, %v2202
  %v2204 = vshrl.u32 683565275, %v2203
  %v2205 = vshll.u32 683565275, %v2202
  %v2206 = vshrl.u32 2475754826, %v2203
  %v2207 = vor.u32 %v2205, %v2206
  %v2208 = vshll.u32 2475754826, %v2202
  %v2209 = vshrl.u32 2131351028, %v2203
  %v2210 = vor.u32 %v2208, %v2209
  %v2211 = vshll.u32 2131351028, %v2202
  %v2212 = vshrl.u32 2102212464, %v2203
  %v2213 = vor.u32 %v2211, %v2212
  %v2214 = vshll.u32 2102212464, %v2202
  %v2215 = vshrl.u32 920167782, %v2203
  %v2216 = vor.u32 %v2214, %v2215
  %v2217 = vshll.u32 920167782, %v2202
  %v2218 = vshrl.u32 1326507024, %v2203
  %v2219 = vor.u32 %v2217, %v2218
  %vm2220 = vcmp.lt.s32.totalorder %v2201, 1
  %vm2221 = vcmp.lt.s32.totalorder %v2201, 2
  %vm2222 = vcmp.lt.s32.totalorder %v2201, 3
  %vm2223 = vcmp.lt.s32.totalorder %v2201, 4
  %v2224 = vsel %vm2220, %v2204, %v2207
  %v2225 = vsel %vm2223, %v2213, 2102212464
  %v2226 = vsel %vm2222, %v2210, %v2225
  %v2227 = vsel %vm2221, %v2224, %v2226
  %v2228 = vsel %vm2220, %v2207, %v2210
  %v2229 = vsel %vm2223, %v2216, 920167782
  %v2230 = vsel %vm2222, %v2213, %v2229
  %v2231 = vsel %vm2221, %v2228, %v2230
  %v2232 = vsel %vm2220, %v2210, %v2213
  %v2233 = vsel %vm2223, %v2219, 1326507024
  %v2234 = vsel %vm2222, %v2216, %v2233
  %v2235 = vsel %vm2221, %v2232, %v2234
  %v2236 = vshll.u32 %v2196, 8
  %v2237 = vand.u32 %v2236, 65535
  %v2238 = vshrl.u32 %v2236, 16
  %v2239 = vand.u32 %v2235, 65535
  %v2240 = vshrl.u32 %v2235, 16
  %v2241 = vmul.u32 %v2237, %v2239
  %v2242 = vmul.u32 %v2237, %v2240
  %v2243 = vmul.u32 %v2238, %v2239
  %v2244 = vmul.u32 %v2238, %v2240
  %v2245 = vshll.u32 %v2242, 16
  %v2246 = vshrl.u32 %v2242, 16
  %v2247 = vshll.u32 %v2243, 16
  %v2248 = vshrl.u32 %v2243, 16
  %vm2249 = vc.u32 %v2241, %v2245
  %v2250 = vsel %vm2249, 1, 0
  %v2251 = vadd.s32 %v2241, %v2245
  %v2252 = vadd.s32 %v2244, %v2250
  %vm2253 = vc.u32 %v2251, %v2247
  %v2254 = vsel %vm2253, 1, 0
  %v2255 = vadd.s32 %v2251, %v2247
  %v2256 = vadd.s32 %v2252, %v2254
  %v2257 = vadd.s32 %v2256, %v2246
  %v2258 = vadd.s32 %v2257, %v2248
  %v2259 = vand.u32 %v2236, 65535
  %v2260 = vshrl.u32 %v2236, 16
  %v2261 = vand.u32 %v2231, 65535
  %v2262 = vshrl.u32 %v2231, 16
  %v2263 = vmul.u32 %v2259, %v2261
  %v2264 = vmul.u32 %v2259, %v2262
  %v2265 = vmul.u32 %v2260, %v2261
  %v2266 = vmul.u32 %v2260, %v2262
  %v2267 = vshll.u32 %v2264, 16
  %v2268 = vshrl.u32 %v2264, 16
  %v2269 = vshll.u32 %v2265, 16
  %v2270 = vshrl.u32 %v2265, 16
  %vm2271 = vc.u32 %v2263, %v2267
  %v2272 = vsel %vm2271, 1, 0
  %v2273 = vadd.s32 %v2263, %v2267
  %v2274 = vadd.s32 %v2266, %v2272
  %vm2275 = vc.u32 %v2273, %v2269
  %v2276 = vsel %vm2275, 1, 0
  %v2277 = vadd.s32 %v2273, %v2269
  %v2278 = vadd.s32 %v2274, %v2276
  %v2279 = vadd.s32 %v2278, %v2268
  %v2280 = vadd.s32 %v2279, %v2270
  %v2281 = vmul.u32 %v2236, %v2227
  %v2282 = vadd.s32 %v2258, %v2277
  %vm2283 = vc.u32 %v2258, %v2277
  %v2284 = vadd.s32 %v2280, 1
  %v2285 = vsel %vm2283, %v2284, %v2280
  %v2286 = vadd.s32 %v2281, %v2285
  %v2287 = vadd.s32 %v2286, 536870912
  %v2288 = vshrl.u32 %v2287, 30
  %v2289 = vshll.u32 %v2288, 30
  %v2290 = vsub.s32 %v2286, %v2289
  %vm2291 = vcmp.lt.s32.totalorder %v2290, 0
  %v2292 = vsub.s32 0, %v2290
  %v2293 = vsel %vm2291, %v2292, %v2290
  %v2294 = vclz %v2293
  %v2295 = vsub.s32 %v2294, 2
  %vm2296 = vcmp.gt.s32.totalorder 0, %v2295
  %v2297 = vsel %vm2296, 0, %v2295
  %v2298 = vsub.s32 32, %v2297
  %v2299 = vshll.u32 %v2290, %v2297
  %v2300 = vshrl.u32 %v2282, %v2298
  %v2301 = vor.u32 %v2299, %v2300
  %v2302 = vsub.s32 4294967266, %v2297
  %v2303 = vadd.s32 %v2302, 127
  %v2304 = vshll.u32 %v2303, 23
  %v2305 = vor.u32 4788187, %v2304
  %v2306 = vand.u32 2147483647, %v2305
  %v2308 = vcvt.s32.f32 %v2301
  %v2309 = vmul.f32 %v2308, %v2306
  %v2310 = vxor.u32 %v2309, 2147483648
  %v2311 = vsel %vm2190, %v2310, %v2309
  %v2312 = vsub.s32 4, %v2288
  %v2313 = vsel %vm2190, %v2312, %v2288
  %v2314 = vsel %vm2189, %v473, %v2311
  %v2315 = vsel %vm2189, 0, %v2313
  %v2316 = vmul.f32 %v2314, %v2314
  %v2317 = vmul.f32 %v2316, -0.001358992
  %v2318 = vadd.f32 %v2317, 0.041655596
  %v2319 = vmul.f32 %v2316, %v2318
  %v2320 = vadd.f32 %v2319, -0.4999988
  %v2321 = vmul.f32 %v2316, %v2320
  %v2322 = vadd.f32 1.0, %v2321
  %v2323 = vmul.f32 %v2314, %v2314
  %v2324 = vmul.f32 %v2323, -0.00019511016
  %v2325 = vadd.f32 %v2324, 0.008332121
  %v2326 = vmul.f32 %v2323, %v2325
  %v2327 = vadd.f32 %v2326, -0.16666654
  %v2328 = vmul.f32 %v2323, %v2327
  %v2329 = vadd.f32 %v2328, 1.0
  %v2330 = vmul.f32 %v2329, %v2314
  %vm2331 = vweird.f32 %v473
  %v2332 = vand.u32 %v2315, 3
  %vm2333 = vcmp.lt.s32.totalorder %v2332, 2
  %vm2334 = vcmp.eq.s32.totalorder %v2332, 0
  %v2335 = vxor.u32 %v2330, 2147483648
  %v2336 = vsel %vm2334, %v2322, %v2335
  %vm2337 = vcmp.eq.s32.totalorder %v2332, 2
  %v2338 = vxor.u32 %v2322, 2147483648
  %v2339 = vsel %vm2337, %v2338, %v2330
  %v2340 = vsel %vm2333, %v2336, %v2339
  %v2341 = vsel %vm2331, nan, %v2340
  %v2342 = vand.u32 2147483647, %v474
  %vm2343 = vcmp.le.f32.partialorder %v2342, 0.7853982
  %vm2344 = vcmp.lt.s32.totalorder %v474, 0
  %v2345 = vand.u32 %v474, 2139095040
  %v2346 = vshrl.u32 %v2345, 23
  %v2347 = vsub.s32 %v2346, 127
  %v2348 = vand.u32 2147483647, %v474
  %v2349 = vand.u32 %v2348, 8388607
  %v2350 = vor.u32 %v2349, 8388608
  %v2351 = vsub.s32 0, %v2350
  %v2352 = vadd.s32 %v2347, 1
  %vm2353 = vcmp.gt.s32.totalorder %v2352, 0
  %v2354 = vsel %vm2353, %v2352, 0
  %v2355 = vshrl.u32 %v2354, 5
  %v2356 = vand.u32 %v2354, 31
  %v2357 = vsub.s32 32, %v2356
  %v2358 = vshrl.u32 683565275, %v2357
  %v2359 = vshll.u32 683565275, %v2356
  %v2360 = vshrl.u32 2475754826, %v2357
  %v2361 = vor.u32 %v2359, %v2360
  %v2362 = vshll.u32 2475754826, %v2356
  %v2363 = vshrl.u32 2131351028, %v2357
  %v2364 = vor.u32 %v2362, %v2363
  %v2365 = vshll.u32 2131351028, %v2356
  %v2366 = vshrl.u32 2102212464, %v2357
  %v2367 = vor.u32 %v2365, %v2366
  %v2368 = vshll.u32 2102212464, %v2356
  %v2369 = vshrl.u32 920167782, %v2357
  %v2370 = vor.u32 %v2368, %v2369
  %v2371 = vshll.u32 920167782, %v2356
  %v2372 = vshrl.u32 1326507024, %v2357
  %v2373 = vor.u32 %v2371, %v2372
  %vm2374 = vcmp.lt.s32.totalorder %v2355, 1
  %vm2375 = vcmp.lt.s32.totalorder %v2355, 2
  %vm2376 = vcmp.lt.s32.totalorder %v2355, 3
  %vm2377 = vcmp.lt.s32.totalorder %v2355, 4
  %v2378 = vsel %vm2374, %v2358, %v2361
  %v2379 = vsel %vm2377, %v2367, 2102212464
  %v2380 = vsel %vm2376, %v2364, %v2379
  %v2381 = vsel %vm2375, %v2378, %v2380
  %v2382 = vsel %vm2374, %v2361, %v2364
  %v2383 = vsel %vm2377, %v2370, 920167782
  %v2384 = vsel %vm2376, %v2367, %v2383
  %v2385 = vsel %vm2375, %v2382, %v2384
  %v2386 = vsel %vm2374, %v2364, %v2367
  %v2387 = vsel %vm2377, %v2373, 1326507024
  %v2388 = vsel %vm2376, %v2370, %v2387
  %v2389 = vsel %vm2375, %v2386, %v2388
  %v2390 = vshll.u32 %v2350, 8
  %v2391 = vand.u32 %v2390, 65535
  %v2392 = vshrl.u32 %v2390, 16
  %v2393 = vand.u32 %v2389, 65535
  %v2394 = vshrl.u32 %v2389, 16
  %v2395 = vmul.u32 %v2391, %v2393
  %v2396 = vmul.u32 %v2391, %v2394
  %v2397 = vmul.u32 %v2392, %v2393
  %v2398 = vmul.u32 %v2392, %v2394
  %v2399 = vshll.u32 %v2396, 16
  %v2400 = vshrl.u32 %v2396, 16
  %v2401 = vshll.u32 %v2397, 16
  %v2402 = vshrl.u32 %v2397, 16
  %vm2403 = vc.u32 %v2395, %v2399
  %v2404 = vsel %vm2403, 1, 0
  %v2405 = vadd.s32 %v2395, %v2399
  %v2406 = vadd.s32 %v2398, %v2404
  %vm2407 = vc.u32 %v2405, %v2401
  %v2408 = vsel %vm2407, 1, 0
  %v2409 = vadd.s32 %v2405, %v2401
  %v2410 = vadd.s32 %v2406, %v2408
  %v2411 = vadd.s32 %v2410, %v2400
  %v2412 = vadd.s32 %v2411, %v2402
  %v2413 = vand.u32 %v2390, 65535
  %v2414 = vshrl.u32 %v2390, 16
  %v2415 = vand.u32 %v2385, 65535
  %v2416 = vshrl.u32 %v2385, 16
  %v2417 = vmul.u32 %v2413, %v2415
  %v2418 = vmul.u32 %v2413, %v2416
  %v2419 = vmul.u32 %v2414, %v2415
  %v2420 = vmul.u32 %v2414, %v2416
  %v2421 = vshll.u32 %v2418, 16
  %v2422 = vshrl.u32 %v2418, 16
  %v2423 = vshll.u32 %v2419, 16
  %v2424 = vshrl.u32 %v2419, 16
  %vm2425 = vc.u32 %v2417, %v2421
  %v2426 = vsel %vm2425, 1, 0
  %v2427 = vadd.s32 %v2417, %v2421
  %v2428 = vadd.s32 %v2420, %v2426
  %vm2429 = vc.u32 %v2427, %v2423
  %v2430 = vsel %vm2429, 1, 0
  %v2431 = vadd.s32 %v2427, %v2423
  %v2432 = vadd.s32 %v2428, %v2430
  %v2433 = vadd.s32 %v2432, %v2422
  %v2434 = vadd.s32 %v2433, %v2424
  %v2435 = vmul.u32 %v2390, %v2381
  %v2436 = vadd.s32 %v2412, %v2431
  %vm2437 = vc.u32 %v2412, %v2431
  %v2438 = vadd.s32 %v2434, 1
  %v2439 = vsel %vm2437, %v2438, %v2434
  %v2440 = vadd.s32 %v2435, %v2439
  %v2441 = vadd.s32 %v2440, 536870912
  %v2442 = vshrl.u32 %v2441, 30
  %v2443 = vshll.u32 %v2442, 30
  %v2444 = vsub.s32 %v2440, %v2443
  %vm2445 = vcmp.lt.s32.totalorder %v2444, 0
  %v2446 = vsub.s32 0, %v2444
  %v2447 = vsel %vm2445, %v2446, %v2444
  %v2448 = vclz %v2447
  %v2449 = vsub.s32 %v2448, 2
  %vm2450 = vcmp.gt.s32.totalorder 0, %v2449
  %v2451 = vsel %vm2450, 0, %v2449
  %v2452 = vsub.s32 32, %v2451
  %v2453 = vshll.u32 %v2444, %v2451
  %v2454 = vshrl.u32 %v2436, %v2452
  %v2455 = vor.u32 %v2453, %v2454
  %v2456 = vsub.s32 4294967266, %v2451
  %v2457 = vadd.s32 %v2456, 127
  %v2458 = vshll.u32 %v2457, 23
  %v2459 = vor.u32 4788187, %v2458
  %v2460 = vand.u32 2147483647, %v2459
  %v2462 = vcvt.s32.f32 %v2455
  %v2463 = vmul.f32 %v2462, %v2460
  %v2464 = vxor.u32 %v2463, 2147483648
  %v2465 = vsel %vm2344, %v2464, %v2463
  %v2466 = vsub.s32 4, %v2442
  %v2467 = vsel %vm2344, %v2466, %v2442
  %v2468 = vsel %vm2343, %v474, %v2465
  %v2469 = vsel %vm2343, 0, %v2467
  %v2470 = vmul.f32 %v2468, %v2468
  %v2471 = vmul.f32 %v2470, -0.001358992
  %v2472 = vadd.f32 %v2471, 0.041655596
  %v2473 = vmul.f32 %v2470, %v2472
  %v2474 = vadd.f32 %v2473, -0.4999988
  %v2475 = vmul.f32 %v2470, %v2474
  %v2476 = vadd.f32 1.0, %v2475
  %v2477 = vmul.f32 %v2468, %v2468
  %v2478 = vmul.f32 %v2477, -0.00019511016
  %v2479 = vadd.f32 %v2478, 0.008332121
  %v2480 = vmul.f32 %v2477, %v2479
  %v2481 = vadd.f32 %v2480, -0.16666654
  %v2482 = vmul.f32 %v2477, %v2481
  %v2483 = vadd.f32 %v2482, 1.0
  %v2484 = vmul.f32 %v2483, %v2468
  %vm2485 = vweird.f32 %v474
  %v2486 = vand.u32 %v2469, 3
  %vm2487 = vcmp.lt.s32.totalorder %v2486, 2
  %vm2488 = vcmp.eq.s32.totalorder %v2486, 0
  %v2489 = vxor.u32 %v2484, 2147483648
  %v2490 = vsel %vm2488, %v2476, %v2489
  %vm2491 = vcmp.eq.s32.totalorder %v2486, 2
  %v2492 = vxor.u32 %v2476, 2147483648
  %v2493 = vsel %vm2491, %v2492, %v2484
  %v2494 = vsel %vm2487, %v2490, %v2493
  %v2495 = vsel %vm2485, nan, %v2494
  %v2496 = vand.u32 2147483647, %v475
  %vm2497 = vcmp.le.f32.partialorder %v2496, 0.7853982
  %vm2498 = vcmp.lt.s32.totalorder %v475, 0
  %v2499 = vand.u32 %v475, 2139095040
  %v2500 = vshrl.u32 %v2499, 23
  %v2501 = vsub.s32 %v2500, 127
  %v2502 = vand.u32 2147483647, %v475
  %v2503 = vand.u32 %v2502, 8388607
  %v2504 = vor.u32 %v2503, 8388608
  %v2505 = vsub.s32 0, %v2504
  %v2506 = vadd.s32 %v2501, 1
  %vm2507 = vcmp.gt.s32.totalorder %v2506, 0
  %v2508 = vsel %vm2507, %v2506, 0
  %v2509 = vshrl.u32 %v2508, 5
  %v2510 = vand.u32 %v2508, 31
  %v2511 = vsub.s32 32, %v2510
  %v2512 = vshrl.u32 683565275, %v2511
  %v2513 = vshll.u32 683565275, %v2510
  %v2514 = vshrl.u32 2475754826, %v2511
  %v2515 = vor.u32 %v2513, %v2514
  %v2516 = vshll.u32 2475754826, %v2510
  %v2517 = vshrl.u32 2131351028, %v2511
  %v2518 = vor.u32 %v2516, %v2517
  %v2519 = vshll.u32 2131351028, %v2510
  %v2520 = vshrl.u32 2102212464, %v2511
  %v2521 = vor.u32 %v2519, %v2520
  %v2522 = vshll.u32 2102212464, %v2510
  %v2523 = vshrl.u32 920167782, %v2511
  %v2524 = vor.u32 %v2522, %v2523
  %v2525 = vshll.u32 920167782, %v2510
  %v2526 = vshrl.u32 1326507024, %v2511
  %v2527 = vor.u32 %v2525, %v2526
  %vm2528 = vcmp.lt.s32.totalorder %v2509, 1
  %vm2529 = vcmp.lt.s32.totalorder %v2509, 2
  %vm2530 = vcmp.lt.s32.totalorder %v2509, 3
  %vm2531 = vcmp.lt.s32.totalorder %v2509, 4
  %v2532 = vsel %vm2528, %v2512, %v2515
  %v2533 = vsel %vm2531, %v2521, 2102212464
  %v2534 = vsel %vm2530, %v2518, %v2533
  %v2535 = vsel %vm2529, %v2532, %v2534
  %v2536 = vsel %vm2528, %v2515, %v2518
  %v2537 = vsel %vm2531, %v2524, 920167782
  %v2538 = vsel %vm2530, %v2521, %v2537
  %v2539 = vsel %vm2529, %v2536, %v2538
  %v2540 = vsel %vm2528, %v2518, %v2521
  %v2541 = vsel %vm2531, %v2527, 1326507024
  %v2542 = vsel %vm2530, %v2524, %v2541
  %v2543 = vsel %vm2529, %v2540, %v2542
  %v2544 = vshll.u32 %v2504, 8
  %v2545 = vand.u32 %v2544, 65535
  %v2546 = vshrl.u32 %v2544, 16
  %v2547 = vand.u32 %v2543, 65535
  %v2548 = vshrl.u32 %v2543, 16
  %v2549 = vmul.u32 %v2545, %v2547
  %v2550 = vmul.u32 %v2545, %v2548
  %v2551 = vmul.u32 %v2546, %v2547
  %v2552 = vmul.u32 %v2546, %v2548
  %v2553 = vshll.u32 %v2550, 16
  %v2554 = vshrl.u32 %v2550, 16
  %v2555 = vshll.u32 %v2551, 16
  %v2556 = vshrl.u32 %v2551, 16
  %vm2557 = vc.u32 %v2549, %v2553
  %v2558 = vsel %vm2557, 1, 0
  %v2559 = vadd.s32 %v2549, %v2553
  %v2560 = vadd.s32 %v2552, %v2558
  %vm2561 = vc.u32 %v2559, %v2555
  %v2562 = vsel %vm2561, 1, 0
  %v2563 = vadd.s32 %v2559, %v2555
  %v2564 = vadd.s32 %v2560, %v2562
  %v2565 = vadd.s32 %v2564, %v2554
  %v2566 = vadd.s32 %v2565, %v2556
  %v2567 = vand.u32 %v2544, 65535
  %v2568 = vshrl.u32 %v2544, 16
  %v2569 = vand.u32 %v2539, 65535
  %v2570 = vshrl.u32 %v2539, 16
  %v2571 = vmul.u32 %v2567, %v2569
  %v2572 = vmul.u32 %v2567, %v2570
  %v2573 = vmul.u32 %v2568, %v2569
  %v2574 = vmul.u32 %v2568, %v2570
  %v2575 = vshll.u32 %v2572, 16
  %v2576 = vshrl.u32 %v2572, 16
  %v2577 = vshll.u32 %v2573, 16
  %v2578 = vshrl.u32 %v2573, 16
  %vm2579 = vc.u32 %v2571, %v2575
  %v2580 = vsel %vm2579, 1, 0
  %v2581 = vadd.s32 %v2571, %v2575
  %v2582 = vadd.s32 %v2574, %v2580
  %vm2583 = vc.u32 %v2581, %v2577
  %v2584 = vsel %vm2583, 1, 0
  %v2585 = vadd.s32 %v2581, %v2577
  %v2586 = vadd.s32 %v2582, %v2584
  %v2587 = vadd.s32 %v2586, %v2576
  %v2588 = vadd.s32 %v2587, %v2578
  %v2589 = vmul.u32 %v2544, %v2535
  %v2590 = vadd.s32 %v2566, %v2585
  %vm2591 = vc.u32 %v2566, %v2585
  %v2592 = vadd.s32 %v2588, 1
  %v2593 = vsel %vm2591, %v2592, %v2588
  %v2594 = vadd.s32 %v2589, %v2593
  %v2595 = vadd.s32 %v2594, 536870912
  %v2596 = vshrl.u32 %v2595, 30
  %v2597 = vshll.u32 %v2596, 30
  %v2598 = vsub.s32 %v2594, %v2597
  %vm2599 = vcmp.lt.s32.totalorder %v2598, 0
  %v2600 = vsub.s32 0, %v2598
  %v2601 = vsel %vm2599, %v2600, %v2598
  %v2602 = vclz %v2601
  %v2603 = vsub.s32 %v2602, 2
  %vm2604 = vcmp.gt.s32.totalorder 0, %v2603
  %v2605 = vsel %vm2604, 0, %v2603
  %v2606 = vsub.s32 32, %v2605
  %v2607 = vshll.u32 %v2598, %v2605
  %v2608 = vshrl.u32 %v2590, %v2606
  %v2609 = vor.u32 %v2607, %v2608
  %v2610 = vsub.s32 4294967266, %v2605
  %v2611 = vadd.s32 %v2610, 127
  %v2612 = vshll.u32 %v2611, 23
  %v2613 = vor.u32 4788187, %v2612
  %v2614 = vand.u32 2147483647, %v2613
  %v2616 = vcvt.s32.f32 %v2609
  %v2617 = vmul.f32 %v2616, %v2614
  %v2618 = vxor.u32 %v2617, 2147483648
  %v2619 = vsel %vm2498, %v2618, %v2617
  %v2620 = vsub.s32 4, %v2596
  %v2621 = vsel %vm2498, %v2620, %v2596
  %v2622 = vsel %vm2497, %v475, %v2619
  %v2623 = vsel %vm2497, 0, %v2621
  %v2624 = vmul.f32 %v2622, %v2622
  %v2625 = vmul.f32 %v2624, -0.001358992
  %v2626 = vadd.f32 %v2625, 0.041655596
  %v2627 = vmul.f32 %v2624, %v2626
  %v2628 = vadd.f32 %v2627, -0.4999988
  %v2629 = vmul.f32 %v2624, %v2628
  %v2630 = vadd.f32 1.0, %v2629
  %v2631 = vmul.f32 %v2622, %v2622
  %v2632 = vmul.f32 %v2631, -0.00019511016
  %v2633 = vadd.f32 %v2632, 0.008332121
  %v2634 = vmul.f32 %v2631, %v2633
  %v2635 = vadd.f32 %v2634, -0.16666654
  %v2636 = vmul.f32 %v2631, %v2635
  %v2637 = vadd.f32 %v2636, 1.0
  %v2638 = vmul.f32 %v2637, %v2622
  %vm2639 = vweird.f32 %v475
  %v2640 = vand.u32 %v2623, 3
  %vm2641 = vcmp.lt.s32.totalorder %v2640, 2
  %vm2642 = vcmp.eq.s32.totalorder %v2640, 0
  %v2643 = vxor.u32 %v2638, 2147483648
  %v2644 = vsel %vm2642, %v2630, %v2643
  %vm2645 = vcmp.eq.s32.totalorder %v2640, 2
  %v2646 = vxor.u32 %v2630, 2147483648
  %v2647 = vsel %vm2645, %v2646, %v2638
  %v2648 = vsel %vm2641, %v2644, %v2647
  %v2649 = vsel %vm2639, nan, %v2648
  %v2650 = vand.u32 2147483647, %v476
  %vm2651 = vcmp.le.f32.partialorder %v2650, 0.7853982
  %vm2652 = vcmp.lt.s32.totalorder %v476, 0
  %v2653 = vand.u32 %v476, 2139095040
  %v2654 = vshrl.u32 %v2653, 23
  %v2655 = vsub.s32 %v2654, 127
  %v2656 = vand.u32 2147483647, %v476
  %v2657 = vand.u32 %v2656, 8388607
  %v2658 = vor.u32 %v2657, 8388608
  %v2659 = vsub.s32 0, %v2658
  %v2660 = vadd.s32 %v2655, 1
  %vm2661 = vcmp.gt.s32.totalorder %v2660, 0
  %v2662 = vsel %vm2661, %v2660, 0
  %v2663 = vshrl.u32 %v2662, 5
  %v2664 = vand.u32 %v2662, 31
  %v2665 = vsub.s32 32, %v2664
  %v2666 = vshrl.u32 683565275, %v2665
  %v2667 = vshll.u32 683565275, %v2664
  %v2668 = vshrl.u32 2475754826, %v2665
  %v2669 = vor.u32 %v2667, %v2668
  %v2670 = vshll.u32 2475754826, %v2664
  %v2671 = vshrl.u32 2131351028, %v2665
  %v2672 = vor.u32 %v2670, %v2671
  %v2673 = vshll.u32 2131351028, %v2664
  %v2674 = vshrl.u32 2102212464, %v2665
  %v2675 = vor.u32 %v2673, %v2674
  %v2676 = vshll.u32 2102212464, %v2664
  %v2677 = vshrl.u32 920167782, %v2665
  %v2678 = vor.u32 %v2676, %v2677
  %v2679 = vshll.u32 920167782, %v2664
  %v2680 = vshrl.u32 1326507024, %v2665
  %v2681 = vor.u32 %v2679, %v2680
  %vm2682 = vcmp.lt.s32.totalorder %v2663, 1
  %vm2683 = vcmp.lt.s32.totalorder %v2663, 2
  %vm2684 = vcmp.lt.s32.totalorder %v2663, 3
  %vm2685 = vcmp.lt.s32.totalorder %v2663, 4
  %v2686 = vsel %vm2682, %v2666, %v2669
  %v2687 = vsel %vm2685, %v2675, 2102212464
  %v2688 = vsel %vm2684, %v2672, %v2687
  %v2689 = vsel %vm2683, %v2686, %v2688
  %v2690 = vsel %vm2682, %v2669, %v2672
  %v2691 = vsel %vm2685, %v2678, 920167782
  %v2692 = vsel %vm2684, %v2675, %v2691
  %v2693 = vsel %vm2683, %v2690, %v2692
  %v2694 = vsel %vm2682, %v2672, %v2675
  %v2695 = vsel %vm2685, %v2681, 1326507024
  %v2696 = vsel %vm2684, %v2678, %v2695
  %v2697 = vsel %vm2683, %v2694, %v2696
  %v2698 = vshll.u32 %v2658, 8
  %v2699 = vand.u32 %v2698, 65535
  %v2700 = vshrl.u32 %v2698, 16
  %v2701 = vand.u32 %v2697, 65535
  %v2702 = vshrl.u32 %v2697, 16
  %v2703 = vmul.u32 %v2699, %v2701
  %v2704 = vmul.u32 %v2699, %v2702
  %v2705 = vmul.u32 %v2700, %v2701
  %v2706 = vmul.u32 %v2700, %v2702
  %v2707 = vshll.u32 %v2704, 16
  %v2708 = vshrl.u32 %v2704, 16
  %v2709 = vshll.u32 %v2705, 16
  %v2710 = vshrl.u32 %v2705, 16
  %vm2711 = vc.u32 %v2703, %v2707
  %v2712 = vsel %vm2711, 1, 0
  %v2713 = vadd.s32 %v2703, %v2707
  %v2714 = vadd.s32 %v2706, %v2712
  %vm2715 = vc.u32 %v2713, %v2709
  %v2716 = vsel %vm2715, 1, 0
  %v2717 = vadd.s32 %v2713, %v2709
  %v2718 = vadd.s32 %v2714, %v2716
  %v2719 = vadd.s32 %v2718, %v2708
  %v2720 = vadd.s32 %v2719, %v2710
  %v2721 = vand.u32 %v2698, 65535
  %v2722 = vshrl.u32 %v2698, 16
  %v2723 = vand.u32 %v2693, 65535
  %v2724 = vshrl.u32 %v2693, 16
  %v2725 = vmul.u32 %v2721, %v2723
  %v2726 = vmul.u32 %v2721, %v2724
  %v2727 = vmul.u32 %v2722, %v2723
  %v2728 = vmul.u32 %v2722, %v2724
  %v2729 = vshll.u32 %v2726, 16
  %v2730 = vshrl.u32 %v2726, 16
  %v2731 = vshll.u32 %v2727, 16
  %v2732 = vshrl.u32 %v2727, 16
  %vm2733 = vc.u32 %v2725, %v2729
  %v2734 = vsel %vm2733, 1, 0
  %v2735 = vadd.s32 %v2725, %v2729
  %v2736 = vadd.s32 %v2728, %v2734
  %vm2737 = vc.u32 %v2735, %v2731
  %v2738 = vsel %vm2737, 1, 0
  %v2739 = vadd.s32 %v2735, %v2731
  %v2740 = vadd.s32 %v2736, %v2738
  %v2741 = vadd.s32 %v2740, %v2730
  %v2742 = vadd.s32 %v2741, %v2732
  %v2743 = vmul.u32 %v2698, %v2689
  %v2744 = vadd.s32 %v2720, %v2739
  %vm2745 = vc.u32 %v2720, %v2739
  %v2746 = vadd.s32 %v2742, 1
  %v2747 = vsel %vm2745, %v2746, %v2742
  %v2748 = vadd.s32 %v2743, %v2747
  %v2749 = vadd.s32 %v2748, 536870912
  %v2750 = vshrl.u32 %v2749, 30
  %v2751 = vshll.u32 %v2750, 30
  %v2752 = vsub.s32 %v2748, %v2751
  %vm2753 = vcmp.lt.s32.totalorder %v2752, 0
  %v2754 = vsub.s32 0, %v2752
  %v2755 = vsel %vm2753, %v2754, %v2752
  %v2756 = vclz %v2755
  %v2757 = vsub.s32 %v2756, 2
  %vm2758 = vcmp.gt.s32.totalorder 0, %v2757
  %v2759 = vsel %vm2758, 0, %v2757
  %v2760 = vsub.s32 32, %v2759
  %v2761 = vshll.u32 %v2752, %v2759
  %v2762 = vshrl.u32 %v2744, %v2760
  %v2763 = vor.u32 %v2761, %v2762
  %v2764 = vsub.s32 4294967266, %v2759
  %v2765 = vadd.s32 %v2764, 127
  %v2766 = vshll.u32 %v2765, 23
  %v2767 = vor.u32 4788187, %v2766
  %v2768 = vand.u32 2147483647, %v2767
  %v2770 = vcvt.s32.f32 %v2763
  %v2771 = vmul.f32 %v2770, %v2768
  %v2772 = vxor.u32 %v2771, 2147483648
  %v2773 = vsel %vm2652, %v2772, %v2771
  %v2774 = vsub.s32 4, %v2750
  %v2775 = vsel %vm2652, %v2774, %v2750
  %v2776 = vsel %vm2651, %v476, %v2773
  %v2777 = vsel %vm2651, 0, %v2775
  %v2778 = vmul.f32 %v2776, %v2776
  %v2779 = vmul.f32 %v2778, -0.001358992
  %v2780 = vadd.f32 %v2779, 0.041655596
  %v2781 = vmul.f32 %v2778, %v2780
  %v2782 = vadd.f32 %v2781, -0.4999988
  %v2783 = vmul.f32 %v2778, %v2782
  %v2784 = vadd.f32 1.0, %v2783
  %v2785 = vmul.f32 %v2776, %v2776
  %v2786 = vmul.f32 %v2785, -0.00019511016
  %v2787 = vadd.f32 %v2786, 0.008332121
  %v2788 = vmul.f32 %v2785, %v2787
  %v2789 = vadd.f32 %v2788, -0.16666654
  %v2790 = vmul.f32 %v2785, %v2789
  %v2791 = vadd.f32 %v2790, 1.0
  %v2792 = vmul.f32 %v2791, %v2776
  %vm2793 = vweird.f32 %v476
  %v2794 = vand.u32 %v2777, 3
  %vm2795 = vcmp.lt.s32.totalorder %v2794, 2
  %vm2796 = vcmp.eq.s32.totalorder %v2794, 0
  %v2797 = vxor.u32 %v2792, 2147483648
  %v2798 = vsel %vm2796, %v2784, %v2797
  %vm2799 = vcmp.eq.s32.totalorder %v2794, 2
  %v2800 = vxor.u32 %v2784, 2147483648
  %v2801 = vsel %vm2799, %v2800, %v2792
  %v2802 = vsel %vm2795, %v2798, %v2801
  %v2803 = vsel %vm2793, nan, %v2802
  %v2804 = vand.u32 2147483647, %v477
  %vm2805 = vcmp.le.f32.partialorder %v2804, 0.7853982
  %vm2806 = vcmp.lt.s32.totalorder %v477, 0
  %v2807 = vand.u32 %v477, 2139095040
  %v2808 = vshrl.u32 %v2807, 23
  %v2809 = vsub.s32 %v2808, 127
  %v2810 = vand.u32 2147483647, %v477
  %v2811 = vand.u32 %v2810, 8388607
  %v2812 = vor.u32 %v2811, 8388608
  %v2813 = vsub.s32 0, %v2812
  %v2814 = vadd.s32 %v2809, 1
  %vm2815 = vcmp.gt.s32.totalorder %v2814, 0
  %v2816 = vsel %vm2815, %v2814, 0
  %v2817 = vshrl.u32 %v2816, 5
  %v2818 = vand.u32 %v2816, 31
  %v2819 = vsub.s32 32, %v2818
  %v2820 = vshrl.u32 683565275, %v2819
  %v2821 = vshll.u32 683565275, %v2818
  %v2822 = vshrl.u32 2475754826, %v2819
  %v2823 = vor.u32 %v2821, %v2822
  %v2824 = vshll.u32 2475754826, %v2818
  %v2825 = vshrl.u32 2131351028, %v2819
  %v2826 = vor.u32 %v2824, %v2825
  %v2827 = vshll.u32 2131351028, %v2818
  %v2828 = vshrl.u32 2102212464, %v2819
  %v2829 = vor.u32 %v2827, %v2828
  %v2830 = vshll.u32 2102212464, %v2818
  %v2831 = vshrl.u32 920167782, %v2819
  %v2832 = vor.u32 %v2830, %v2831
  %v2833 = vshll.u32 920167782, %v2818
  %v2834 = vshrl.u32 1326507024, %v2819
  %v2835 = vor.u32 %v2833, %v2834
  %vm2836 = vcmp.lt.s32.totalorder %v2817, 1
  %vm2837 = vcmp.lt.s32.totalorder %v2817, 2
  %vm2838 = vcmp.lt.s32.totalorder %v2817, 3
  %vm2839 = vcmp.lt.s32.totalorder %v2817, 4
  %v2840 = vsel %vm2836, %v2820, %v2823
  %v2841 = vsel %vm2839, %v2829, 2102212464
  %v2842 = vsel %vm2838, %v2826, %v2841
  %v2843 = vsel %vm2837, %v2840, %v2842
  %v2844 = vsel %vm2836, %v2823, %v2826
  %v2845 = vsel %vm2839, %v2832, 920167782
  %v2846 = vsel %vm2838, %v2829, %v2845
  %v2847 = vsel %vm2837, %v2844, %v2846
  %v2848 = vsel %vm2836, %v2826, %v2829
  %v2849 = vsel %vm2839, %v2835, 1326507024
  %v2850 = vsel %vm2838, %v2832, %v2849
  %v2851 = vsel %vm2837, %v2848, %v2850
  %v2852 = vshll.u32 %v2812, 8
  %v2853 = vand.u32 %v2852, 65535
  %v2854 = vshrl.u32 %v2852, 16
  %v2855 = vand.u32 %v2851, 65535
  %v2856 = vshrl.u32 %v2851, 16
  %v2857 = vmul.u32 %v2853, %v2855
  %v2858 = vmul.u32 %v2853, %v2856
  %v2859 = vmul.u32 %v2854, %v2855
  %v2860 = vmul.u32 %v2854, %v2856
  %v2861 = vshll.u32 %v2858, 16
  %v2862 = vshrl.u32 %v2858, 16
  %v2863 = vshll.u32 %v2859, 16
  %v2864 = vshrl.u32 %v2859, 16
  %vm2865 = vc.u32 %v2857, %v2861
  %v2866 = vsel %vm2865, 1, 0
  %v2867 = vadd.s32 %v2857, %v2861
  %v2868 = vadd.s32 %v2860, %v2866
  %vm2869 = vc.u32 %v2867, %v2863
  %v2870 = vsel %vm2869, 1, 0
  %v2871 = vadd.s32 %v2867, %v2863
  %v2872 = vadd.s32 %v2868, %v2870
  %v2873 = vadd.s32 %v2872, %v2862
  %v2874 = vadd.s32 %v2873, %v2864
  %v2875 = vand.u32 %v2852, 65535
  %v2876 = vshrl.u32 %v2852, 16
  %v2877 = vand.u32 %v2847, 65535
  %v2878 = vshrl.u32 %v2847, 16
  %v2879 = vmul.u32 %v2875, %v2877
  %v2880 = vmul.u32 %v2875, %v2878
  %v2881 = vmul.u32 %v2876, %v2877
  %v2882 = vmul.u32 %v2876, %v2878
  %v2883 = vshll.u32 %v2880, 16
  %v2884 = vshrl.u32 %v2880, 16
  %v2885 = vshll.u32 %v2881, 16
  %v2886 = vshrl.u32 %v2881, 16
  %vm2887 = vc.u32 %v2879, %v2883
  %v2888 = vsel %vm2887, 1, 0
  %v2889 = vadd.s32 %v2879, %v2883
  %v2890 = vadd.s32 %v2882, %v2888
  %vm2891 = vc.u32 %v2889, %v2885
  %v2892 = vsel %vm2891, 1, 0
  %v2893 = vadd.s32 %v2889, %v2885
  %v2894 = vadd.s32 %v2890, %v2892
  %v2895 = vadd.s32 %v2894, %v2884
  %v2896 = vadd.s32 %v2895, %v2886
  %v2897 = vmul.u32 %v2852, %v2843
  %v2898 = vadd.s32 %v2874, %v2893
  %vm2899 = vc.u32 %v2874, %v2893
  %v2900 = vadd.s32 %v2896, 1
  %v2901 = vsel %vm2899, %v2900, %v2896
  %v2902 = vadd.s32 %v2897, %v2901
  %v2903 = vadd.s32 %v2902, 536870912
  %v2904 = vshrl.u32 %v2903, 30
  %v2905 = vshll.u32 %v2904, 30
  %v2906 = vsub.s32 %v2902, %v2905
  %vm2907 = vcmp.lt.s32.totalorder %v2906, 0
  %v2908 = vsub.s32 0, %v2906
  %v2909 = vsel %vm2907, %v2908, %v2906
  %v2910 = vclz %v2909
  %v2911 = vsub.s32 %v2910, 2
  %vm2912 = vcmp.gt.s32.totalorder 0, %v2911
  %v2913 = vsel %vm2912, 0, %v2911
  %v2914 = vsub.s32 32, %v2913
  %v2915 = vshll.u32 %v2906, %v2913
  %v2916 = vshrl.u32 %v2898, %v2914
  %v2917 = vor.u32 %v2915, %v2916
  %v2918 = vsub.s32 4294967266, %v2913
  %v2919 = vadd.s32 %v2918, 127
  %v2920 = vshll.u32 %v2919, 23
  %v2921 = vor.u32 4788187, %v2920
  %v2922 = vand.u32 2147483647, %v2921
  %v2924 = vcvt.s32.f32 %v2917
  %v2925 = vmul.f32 %v2924, %v2922
  %v2926 = vxor.u32 %v2925, 2147483648
  %v2927 = vsel %vm2806, %v2926, %v2925
  %v2928 = vsub.s32 4, %v2904
  %v2929 = vsel %vm2806, %v2928, %v2904
  %v2930 = vsel %vm2805, %v477, %v2927
  %v2931 = vsel %vm2805, 0, %v2929
  %v2932 = vmul.f32 %v2930, %v2930
  %v2933 = vmul.f32 %v2932, -0.001358992
  %v2934 = vadd.f32 %v2933, 0.041655596
  %v2935 = vmul.f32 %v2932, %v2934
  %v2936 = vadd.f32 %v2935, -0.4999988
  %v2937 = vmul.f32 %v2932, %v2936
  %v2938 = vadd.f32 1.0, %v2937
  %v2939 = vmul.f32 %v2930, %v2930
  %v2940 = vmul.f32 %v2939, -0.00019511016
  %v2941 = vadd.f32 %v2940, 0.008332121
  %v2942 = vmul.f32 %v2939, %v2941
  %v2943 = vadd.f32 %v2942, -0.16666654
  %v2944 = vmul.f32 %v2939, %v2943
  %v2945 = vadd.f32 %v2944, 1.0
  %v2946 = vmul.f32 %v2945, %v2930
  %vm2947 = vweird.f32 %v477
  %v2948 = vand.u32 %v2931, 3
  %vm2949 = vcmp.lt.s32.totalorder %v2948, 2
  %vm2950 = vcmp.eq.s32.totalorder %v2948, 0
  %v2951 = vxor.u32 %v2946, 2147483648
  %v2952 = vsel %vm2950, %v2938, %v2951
  %vm2953 = vcmp.eq.s32.totalorder %v2948, 2
  %v2954 = vxor.u32 %v2938, 2147483648
  %v2955 = vsel %vm2953, %v2954, %v2946
  %v2956 = vsel %vm2949, %v2952, %v2955
  %v2957 = vsel %vm2947, nan, %v2956
  %v2958 = vand.u32 2147483647, %v478
  %vm2959 = vcmp.le.f32.partialorder %v2958, 0.7853982
  %vm2960 = vcmp.lt.s32.totalorder %v478, 0
  %v2961 = vand.u32 %v478, 2139095040
  %v2962 = vshrl.u32 %v2961, 23
  %v2963 = vsub.s32 %v2962, 127
  %v2964 = vand.u32 2147483647, %v478
  %v2965 = vand.u32 %v2964, 8388607
  %v2966 = vor.u32 %v2965, 8388608
  %v2967 = vsub.s32 0, %v2966
  %v2968 = vadd.s32 %v2963, 1
  %vm2969 = vcmp.gt.s32.totalorder %v2968, 0
  %v2970 = vsel %vm2969, %v2968, 0
  %v2971 = vshrl.u32 %v2970, 5
  %v2972 = vand.u32 %v2970, 31
  %v2973 = vsub.s32 32, %v2972
  %v2974 = vshrl.u32 683565275, %v2973
  %v2975 = vshll.u32 683565275, %v2972
  %v2976 = vshrl.u32 2475754826, %v2973
  %v2977 = vor.u32 %v2975, %v2976
  %v2978 = vshll.u32 2475754826, %v2972
  %v2979 = vshrl.u32 2131351028, %v2973
  %v2980 = vor.u32 %v2978, %v2979
  %v2981 = vshll.u32 2131351028, %v2972
  %v2982 = vshrl.u32 2102212464, %v2973
  %v2983 = vor.u32 %v2981, %v2982
  %v2984 = vshll.u32 2102212464, %v2972
  %v2985 = vshrl.u32 920167782, %v2973
  %v2986 = vor.u32 %v2984, %v2985
  %v2987 = vshll.u32 920167782, %v2972
  %v2988 = vshrl.u32 1326507024, %v2973
  %v2989 = vor.u32 %v2987, %v2988
  %vm2990 = vcmp.lt.s32.totalorder %v2971, 1
  %vm2991 = vcmp.lt.s32.totalorder %v2971, 2
  %vm2992 = vcmp.lt.s32.totalorder %v2971, 3
  %vm2993 = vcmp.lt.s32.totalorder %v2971, 4
  %v2994 = vsel %vm2990, %v2974, %v2977
  %v2995 = vsel %vm2993, %v2983, 2102212464
  %v2996 = vsel %vm2992, %v2980, %v2995
  %v2997 = vsel %vm2991, %v2994, %v2996
  %v2998 = vsel %vm2990, %v2977, %v2980
  %v2999 = vsel %vm2993, %v2986, 920167782
  %v3000 = vsel %vm2992, %v2983, %v2999
  %v3001 = vsel %vm2991, %v2998, %v3000
  %v3002 = vsel %vm2990, %v2980, %v2983
  %v3003 = vsel %vm2993, %v2989, 1326507024
  %v3004 = vsel %vm2992, %v2986, %v3003
  %v3005 = vsel %vm2991, %v3002, %v3004
  %v3006 = vshll.u32 %v2966, 8
  %v3007 = vand.u32 %v3006, 65535
  %v3008 = vshrl.u32 %v3006, 16
  %v3009 = vand.u32 %v3005, 65535
  %v3010 = vshrl.u32 %v3005, 16
  %v3011 = vmul.u32 %v3007, %v3009
  %v3012 = vmul.u32 %v3007, %v3010
  %v3013 = vmul.u32 %v3008, %v3009
  %v3014 = vmul.u32 %v3008, %v3010
  %v3015 = vshll.u32 %v3012, 16
  %v3016 = vshrl.u32 %v3012, 16
  %v3017 = vshll.u32 %v3013, 16
  %v3018 = vshrl.u32 %v3013, 16
  %vm3019 = vc.u32 %v3011, %v3015
  %v3020 = vsel %vm3019, 1, 0
  %v3021 = vadd.s32 %v3011, %v3015
  %v3022 = vadd.s32 %v3014, %v3020
  %vm3023 = vc.u32 %v3021, %v3017
  %v3024 = vsel %vm3023, 1, 0
  %v3025 = vadd.s32 %v3021, %v3017
  %v3026 = vadd.s32 %v3022, %v3024
  %v3027 = vadd.s32 %v3026, %v3016
  %v3028 = vadd.s32 %v3027, %v3018
  %v3029 = vand.u32 %v3006, 65535
  %v3030 = vshrl.u32 %v3006, 16
  %v3031 = vand.u32 %v3001, 65535
  %v3032 = vshrl.u32 %v3001, 16
  %v3033 = vmul.u32 %v3029, %v3031
  %v3034 = vmul.u32 %v3029, %v3032
  %v3035 = vmul.u32 %v3030, %v3031
  %v3036 = vmul.u32 %v3030, %v3032
  %v3037 = vshll.u32 %v3034, 16
  %v3038 = vshrl.u32 %v3034, 16
  %v3039 = vshll.u32 %v3035, 16
  %v3040 = vshrl.u32 %v3035, 16
  %vm3041 = vc.u32 %v3033, %v3037
  %v3042 = vsel %vm3041, 1, 0
  %v3043 = vadd.s32 %v3033, %v3037
  %v3044 = vadd.s32 %v3036, %v3042
  %vm3045 = vc.u32 %v3043, %v3039
  %v3046 = vsel %vm3045, 1, 0
  %v3047 = vadd.s32 %v3043, %v3039
  %v3048 = vadd.s32 %v3044, %v3046
  %v3049 = vadd.s32 %v3048, %v3038
  %v3050 = vadd.s32 %v3049, %v3040
  %v3051 = vmul.u32 %v3006, %v2997
  %v3052 = vadd.s32 %v3028, %v3047
  %vm3053 = vc.u32 %v3028, %v3047
  %v3054 = vadd.s32 %v3050, 1
  %v3055 = vsel %vm3053, %v3054, %v3050
  %v3056 = vadd.s32 %v3051, %v3055
  %v3057 = vadd.s32 %v3056, 536870912
  %v3058 = vshrl.u32 %v3057, 30
  %v3059 = vshll.u32 %v3058, 30
  %v3060 = vsub.s32 %v3056, %v3059
  %vm3061 = vcmp.lt.s32.totalorder %v3060, 0
  %v3062 = vsub.s32 0, %v3060
  %v3063 = vsel %vm3061, %v3062, %v3060
  %v3064 = vclz %v3063
  %v3065 = vsub.s32 %v3064, 2
  %vm3066 = vcmp.gt.s32.totalorder 0, %v3065
  %v3067 = vsel %vm3066, 0, %v3065
  %v3068 = vsub.s32 32, %v3067
  %v3069 = vshll.u32 %v3060, %v3067
  %v3070 = vshrl.u32 %v3052, %v3068
  %v3071 = vor.u32 %v3069, %v3070
  %v3072 = vsub.s32 4294967266, %v3067
  %v3073 = vadd.s32 %v3072, 127
  %v3074 = vshll.u32 %v3073, 23
  %v3075 = vor.u32 4788187, %v3074
  %v3076 = vand.u32 2147483647, %v3075
  %v3078 = vcvt.s32.f32 %v3071
  %v3079 = vmul.f32 %v3078, %v3076
  %v3080 = vxor.u32 %v3079, 2147483648
  %v3081 = vsel %vm2960, %v3080, %v3079
  %v3082 = vsub.s32 4, %v3058
  %v3083 = vsel %vm2960, %v3082, %v3058
  %v3084 = vsel %vm2959, %v478, %v3081
  %v3085 = vsel %vm2959, 0, %v3083
  %v3086 = vmul.f32 %v3084, %v3084
  %v3087 = vmul.f32 %v3086, -0.001358992
  %v3088 = vadd.f32 %v3087, 0.041655596
  %v3089 = vmul.f32 %v3086, %v3088
  %v3090 = vadd.f32 %v3089, -0.4999988
  %v3091 = vmul.f32 %v3086, %v3090
  %v3092 = vadd.f32 1.0, %v3091
  %v3093 = vmul.f32 %v3084, %v3084
  %v3094 = vmul.f32 %v3093, -0.00019511016
  %v3095 = vadd.f32 %v3094, 0.008332121
  %v3096 = vmul.f32 %v3093, %v3095
  %v3097 = vadd.f32 %v3096, -0.16666654
  %v3098 = vmul.f32 %v3093, %v3097
  %v3099 = vadd.f32 %v3098, 1.0
  %v3100 = vmul.f32 %v3099, %v3084
  %vm3101 = vweird.f32 %v478
  %v3102 = vand.u32 %v3085, 3
  %vm3103 = vcmp.lt.s32.totalorder %v3102, 2
  %vm3104 = vcmp.eq.s32.totalorder %v3102, 0
  %v3105 = vxor.u32 %v3100, 2147483648
  %v3106 = vsel %vm3104, %v3092, %v3105
  %vm3107 = vcmp.eq.s32.totalorder %v3102, 2
  %v3108 = vxor.u32 %v3092, 2147483648
  %v3109 = vsel %vm3107, %v3108, %v3100
  %v3110 = vsel %vm3103, %v3106, %v3109
  %v3111 = vsel %vm3101, nan, %v3110
  %v3112 = vand.u32 2147483647, %v479
  %vm3113 = vcmp.le.f32.partialorder %v3112, 0.7853982
  %vm3114 = vcmp.lt.s32.totalorder %v479, 0
  %v3115 = vand.u32 %v479, 2139095040
  %v3116 = vshrl.u32 %v3115, 23
  %v3117 = vsub.s32 %v3116, 127
  %v3118 = vand.u32 2147483647, %v479
  %v3119 = vand.u32 %v3118, 8388607
  %v3120 = vor.u32 %v3119, 8388608
  %v3121 = vsub.s32 0, %v3120
  %v3122 = vadd.s32 %v3117, 1
  %vm3123 = vcmp.gt.s32.totalorder %v3122, 0
  %v3124 = vsel %vm3123, %v3122, 0
  %v3125 = vshrl.u32 %v3124, 5
  %v3126 = vand.u32 %v3124, 31
  %v3127 = vsub.s32 32, %v3126
  %v3128 = vshrl.u32 683565275, %v3127
  %v3129 = vshll.u32 683565275, %v3126
  %v3130 = vshrl.u32 2475754826, %v3127
  %v3131 = vor.u32 %v3129, %v3130
  %v3132 = vshll.u32 2475754826, %v3126
  %v3133 = vshrl.u32 2131351028, %v3127
  %v3134 = vor.u32 %v3132, %v3133
  %v3135 = vshll.u32 2131351028, %v3126
  %v3136 = vshrl.u32 2102212464, %v3127
  %v3137 = vor.u32 %v3135, %v3136
  %v3138 = vshll.u32 2102212464, %v3126
  %v3139 = vshrl.u32 920167782, %v3127
  %v3140 = vor.u32 %v3138, %v3139
  %v3141 = vshll.u32 920167782, %v3126
  %v3142 = vshrl.u32 1326507024, %v3127
  %v3143 = vor.u32 %v3141, %v3142
  %vm3144 = vcmp.lt.s32.totalorder %v3125, 1
  %vm3145 = vcmp.lt.s32.totalorder %v3125, 2
  %vm3146 = vcmp.lt.s32.totalorder %v3125, 3
  %vm3147 = vcmp.lt.s32.totalorder %v3125, 4
  %v3148 = vsel %vm3144, %v3128, %v3131
  %v3149 = vsel %vm3147, %v3137, 2102212464
  %v3150 = vsel %vm3146, %v3134, %v3149
  %v3151 = vsel %vm3145, %v3148, %v3150
  %v3152 = vsel %vm3144, %v3131, %v3134
  %v3153 = vsel %vm3147, %v3140, 920167782
  %v3154 = vsel %vm3146, %v3137, %v3153
  %v3155 = vsel %vm3145, %v3152, %v3154
  %v3156 = vsel %vm3144, %v3134, %v3137
  %v3157 = vsel %vm3147, %v3143, 1326507024
  %v3158 = vsel %vm3146, %v3140, %v3157
  %v3159 = vsel %vm3145, %v3156, %v3158
  %v3160 = vshll.u32 %v3120, 8
  %v3161 = vand.u32 %v3160, 65535
  %v3162 = vshrl.u32 %v3160, 16
  %v3163 = vand.u32 %v3159, 65535
  %v3164 = vshrl.u32 %v3159, 16
  %v3165 = vmul.u32 %v3161, %v3163
  %v3166 = vmul.u32 %v3161, %v3164
  %v3167 = vmul.u32 %v3162, %v3163
  %v3168 = vmul.u32 %v3162, %v3164
  %v3169 = vshll.u32 %v3166, 16
  %v3170 = vshrl.u32 %v3166, 16
  %v3171 = vshll.u32 %v3167, 16
  %v3172 = vshrl.u32 %v3167, 16
  %vm3173 = vc.u32 %v3165, %v3169
  %v3174 = vsel %vm3173, 1, 0
  %v3175 = vadd.s32 %v3165, %v3169
  %v3176 = vadd.s32 %v3168, %v3174
  %vm3177 = vc.u32 %v3175, %v3171
  %v3178 = vsel %vm3177, 1, 0
  %v3179 = vadd.s32 %v3175, %v3171
  %v3180 = vadd.s32 %v3176, %v3178
  %v3181 = vadd.s32 %v3180, %v3170
  %v3182 = vadd.s32 %v3181, %v3172
  %v3183 = vand.u32 %v3160, 65535
  %v3184 = vshrl.u32 %v3160, 16
  %v3185 = vand.u32 %v3155, 65535
  %v3186 = vshrl.u32 %v3155, 16
  %v3187 = vmul.u32 %v3183, %v3185
  %v3188 = vmul.u32 %v3183, %v3186
  %v3189 = vmul.u32 %v3184, %v3185
  %v3190 = vmul.u32 %v3184, %v3186
  %v3191 = vshll.u32 %v3188, 16
  %v3192 = vshrl.u32 %v3188, 16
  %v3193 = vshll.u32 %v3189, 16
  %v3194 = vshrl.u32 %v3189, 16
  %vm3195 = vc.u32 %v3187, %v3191
  %v3196 = vsel %vm3195, 1, 0
  %v3197 = vadd.s32 %v3187, %v3191
  %v3198 = vadd.s32 %v3190, %v3196
  %vm3199 = vc.u32 %v3197, %v3193
  %v3200 = vsel %vm3199, 1, 0
  %v3201 = vadd.s32 %v3197, %v3193
  %v3202 = vadd.s32 %v3198, %v3200
  %v3203 = vadd.s32 %v3202, %v3192
  %v3204 = vadd.s32 %v3203, %v3194
  %v3205 = vmul.u32 %v3160, %v3151
  %v3206 = vadd.s32 %v3182, %v3201
  %vm3207 = vc.u32 %v3182, %v3201
  %v3208 = vadd.s32 %v3204, 1
  %v3209 = vsel %vm3207, %v3208, %v3204
  %v3210 = vadd.s32 %v3205, %v3209
  %v3211 = vadd.s32 %v3210, 536870912
  %v3212 = vshrl.u32 %v3211, 30
  %v3213 = vshll.u32 %v3212, 30
  %v3214 = vsub.s32 %v3210, %v3213
  %vm3215 = vcmp.lt.s32.totalorder %v3214, 0
  %v3216 = vsub.s32 0, %v3214
  %v3217 = vsel %vm3215, %v3216, %v3214
  %v3218 = vclz %v3217
  %v3219 = vsub.s32 %v3218, 2
  %vm3220 = vcmp.gt.s32.totalorder 0, %v3219
  %v3221 = vsel %vm3220, 0, %v3219
  %v3222 = vsub.s32 32, %v3221
  %v3223 = vshll.u32 %v3214, %v3221
  %v3224 = vshrl.u32 %v3206, %v3222
  %v3225 = vor.u32 %v3223, %v3224
  %v3226 = vsub.s32 4294967266, %v3221
  %v3227 = vadd.s32 %v3226, 127
  %v3228 = vshll.u32 %v3227, 23
  %v3229 = vor.u32 4788187, %v3228
  %v3230 = vand.u32 2147483647, %v3229
  %v3232 = vcvt.s32.f32 %v3225
  %v3233 = vmul.f32 %v3232, %v3230
  %v3234 = vxor.u32 %v3233, 2147483648
  %v3235 = vsel %vm3114, %v3234, %v3233
  %v3236 = vsub.s32 4, %v3212
  %v3237 = vsel %vm3114, %v3236, %v3212
  %v3238 = vsel %vm3113, %v479, %v3235
  %v3239 = vsel %vm3113, 0, %v3237
  %v3240 = vmul.f32 %v3238, %v3238
  %v3241 = vmul.f32 %v3240, -0.001358992
  %v3242 = vadd.f32 %v3241, 0.041655596
  %v3243 = vmul.f32 %v3240, %v3242
  %v3244 = vadd.f32 %v3243, -0.4999988
  %v3245 = vmul.f32 %v3240, %v3244
  %v3246 = vadd.f32 1.0, %v3245
  %v3247 = vmul.f32 %v3238, %v3238
  %v3248 = vmul.f32 %v3247, -0.00019511016
  %v3249 = vadd.f32 %v3248, 0.008332121
  %v3250 = vmul.f32 %v3247, %v3249
  %v3251 = vadd.f32 %v3250, -0.16666654
  %v3252 = vmul.f32 %v3247, %v3251
  %v3253 = vadd.f32 %v3252, 1.0
  %v3254 = vmul.f32 %v3253, %v3238
  %vm3255 = vweird.f32 %v479
  %v3256 = vand.u32 %v3239, 3
  %vm3257 = vcmp.lt.s32.totalorder %v3256, 2
  %vm3258 = vcmp.eq.s32.totalorder %v3256, 0
  %v3259 = vxor.u32 %v3254, 2147483648
  %v3260 = vsel %vm3258, %v3246, %v3259
  %vm3261 = vcmp.eq.s32.totalorder %v3256, 2
  %v3262 = vxor.u32 %v3246, 2147483648
  %v3263 = vsel %vm3261, %v3262, %v3254
  %v3264 = vsel %vm3257, %v3260, %v3263
  %v3265 = vsel %vm3255, nan, %v3264
  %v3266 = vand.u32 2147483647, %v480
  %vm3267 = vcmp.le.f32.partialorder %v3266, 0.7853982
  %vm3268 = vcmp.lt.s32.totalorder %v480, 0
  %v3269 = vand.u32 %v480, 2139095040
  %v3270 = vshrl.u32 %v3269, 23
  %v3271 = vsub.s32 %v3270, 127
  %v3272 = vand.u32 2147483647, %v480
  %v3273 = vand.u32 %v3272, 8388607
  %v3274 = vor.u32 %v3273, 8388608
  %v3275 = vsub.s32 0, %v3274
  %v3276 = vadd.s32 %v3271, 1
  %vm3277 = vcmp.gt.s32.totalorder %v3276, 0
  %v3278 = vsel %vm3277, %v3276, 0
  %v3279 = vshrl.u32 %v3278, 5
  %v3280 = vand.u32 %v3278, 31
  %v3281 = vsub.s32 32, %v3280
  %v3282 = vshrl.u32 683565275, %v3281
  %v3283 = vshll.u32 683565275, %v3280
  %v3284 = vshrl.u32 2475754826, %v3281
  %v3285 = vor.u32 %v3283, %v3284
  %v3286 = vshll.u32 2475754826, %v3280
  %v3287 = vshrl.u32 2131351028, %v3281
  %v3288 = vor.u32 %v3286, %v3287
  %v3289 = vshll.u32 2131351028, %v3280
  %v3290 = vshrl.u32 2102212464, %v3281
  %v3291 = vor.u32 %v3289, %v3290
  %v3292 = vshll.u32 2102212464, %v3280
  %v3293 = vshrl.u32 920167782, %v3281
  %v3294 = vor.u32 %v3292, %v3293
  %v3295 = vshll.u32 920167782, %v3280
  %v3296 = vshrl.u32 1326507024, %v3281
  %v3297 = vor.u32 %v3295, %v3296
  %vm3298 = vcmp.lt.s32.totalorder %v3279, 1
  %vm3299 = vcmp.lt.s32.totalorder %v3279, 2
  %vm3300 = vcmp.lt.s32.totalorder %v3279, 3
  %vm3301 = vcmp.lt.s32.totalorder %v3279, 4
  %v3302 = vsel %vm3298, %v3282, %v3285
  %v3303 = vsel %vm3301, %v3291, 2102212464
  %v3304 = vsel %vm3300, %v3288, %v3303
  %v3305 = vsel %vm3299, %v3302, %v3304
  %v3306 = vsel %vm3298, %v3285, %v3288
  %v3307 = vsel %vm3301, %v3294, 920167782
  %v3308 = vsel %vm3300, %v3291, %v3307
  %v3309 = vsel %vm3299, %v3306, %v3308
  %v3310 = vsel %vm3298, %v3288, %v3291
  %v3311 = vsel %vm3301, %v3297, 1326507024
  %v3312 = vsel %vm3300, %v3294, %v3311
  %v3313 = vsel %vm3299, %v3310, %v3312
  %v3314 = vshll.u32 %v3274, 8
  %v3315 = vand.u32 %v3314, 65535
  %v3316 = vshrl.u32 %v3314, 16
  %v3317 = vand.u32 %v3313, 65535
  %v3318 = vshrl.u32 %v3313, 16
  %v3319 = vmul.u32 %v3315, %v3317
  %v3320 = vmul.u32 %v3315, %v3318
  %v3321 = vmul.u32 %v3316, %v3317
  %v3322 = vmul.u32 %v3316, %v3318
  %v3323 = vshll.u32 %v3320, 16
  %v3324 = vshrl.u32 %v3320, 16
  %v3325 = vshll.u32 %v3321, 16
  %v3326 = vshrl.u32 %v3321, 16
  %vm3327 = vc.u32 %v3319, %v3323
  %v3328 = vsel %vm3327, 1, 0
  %v3329 = vadd.s32 %v3319, %v3323
  %v3330 = vadd.s32 %v3322, %v3328
  %vm3331 = vc.u32 %v3329, %v3325
  %v3332 = vsel %vm3331, 1, 0
  %v3333 = vadd.s32 %v3329, %v3325
  %v3334 = vadd.s32 %v3330, %v3332
  %v3335 = vadd.s32 %v3334, %v3324
  %v3336 = vadd.s32 %v3335, %v3326
  %v3337 = vand.u32 %v3314, 65535
  %v3338 = vshrl.u32 %v3314, 16
  %v3339 = vand.u32 %v3309, 65535
  %v3340 = vshrl.u32 %v3309, 16
  %v3341 = vmul.u32 %v3337, %v3339
  %v3342 = vmul.u32 %v3337, %v3340
  %v3343 = vmul.u32 %v3338, %v3339
  %v3344 = vmul.u32 %v3338, %v3340
  %v3345 = vshll.u32 %v3342, 16
  %v3346 = vshrl.u32 %v3342, 16
  %v3347 = vshll.u32 %v3343, 16
  %v3348 = vshrl.u32 %v3343, 16
  %vm3349 = vc.u32 %v3341, %v3345
  %v3350 = vsel %vm3349, 1, 0
  %v3351 = vadd.s32 %v3341, %v3345
  %v3352 = vadd.s32 %v3344, %v3350
  %vm3353 = vc.u32 %v3351, %v3347
  %v3354 = vsel %vm3353, 1, 0
  %v3355 = vadd.s32 %v3351, %v3347
  %v3356 = vadd.s32 %v3352, %v3354
  %v3357 = vadd.s32 %v3356, %v3346
  %v3358 = vadd.s32 %v3357, %v3348
  %v3359 = vmul.u32 %v3314, %v3305
  %v3360 = vadd.s32 %v3336, %v3355
  %vm3361 = vc.u32 %v3336, %v3355
  %v3362 = vadd.s32 %v3358, 1
  %v3363 = vsel %vm3361, %v3362, %v3358
  %v3364 = vadd.s32 %v3359, %v3363
  %v3365 = vadd.s32 %v3364, 536870912
  %v3366 = vshrl.u32 %v3365, 30
  %v3367 = vshll.u32 %v3366, 30
  %v3368 = vsub.s32 %v3364, %v3367
  %vm3369 = vcmp.lt.s32.totalorder %v3368, 0
  %v3370 = vsub.s32 0, %v3368
  %v3371 = vsel %vm3369, %v3370, %v3368
  %v3372 = vclz %v3371
  %v3373 = vsub.s32 %v3372, 2
  %vm3374 = vcmp.gt.s32.totalorder 0, %v3373
  %v3375 = vsel %vm3374, 0, %v3373
  %v3376 = vsub.s32 32, %v3375
  %v3377 = vshll.u32 %v3368, %v3375
  %v3378 = vshrl.u32 %v3360, %v3376
  %v3379 = vor.u32 %v3377, %v3378
  %v3380 = vsub.s32 4294967266, %v3375
  %v3381 = vadd.s32 %v3380, 127
  %v3382 = vshll.u32 %v3381, 23
  %v3383 = vor.u32 4788187, %v3382
  %v3384 = vand.u32 2147483647, %v3383
  %v3386 = vcvt.s32.f32 %v3379
  %v3387 = vmul.f32 %v3386, %v3384
  %v3388 = vxor.u32 %v3387, 2147483648
  %v3389 = vsel %vm3268, %v3388, %v3387
  %v3390 = vsub.s32 4, %v3366
  %v3391 = vsel %vm3268, %v3390, %v3366
  %v3392 = vsel %vm3267, %v480, %v3389
  %v3393 = vsel %vm3267, 0, %v3391
  %v3394 = vmul.f32 %v3392, %v3392
  %v3395 = vmul.f32 %v3394, -0.001358992
  %v3396 = vadd.f32 %v3395, 0.041655596
  %v3397 = vmul.f32 %v3394, %v3396
  %v3398 = vadd.f32 %v3397, -0.4999988
  %v3399 = vmul.f32 %v3394, %v3398
  %v3400 = vadd.f32 1.0, %v3399
  %v3401 = vmul.f32 %v3392, %v3392
  %v3402 = vmul.f32 %v3401, -0.00019511016
  %v3403 = vadd.f32 %v3402, 0.008332121
  %v3404 = vmul.f32 %v3401, %v3403
  %v3405 = vadd.f32 %v3404, -0.16666654
  %v3406 = vmul.f32 %v3401, %v3405
  %v3407 = vadd.f32 %v3406, 1.0
  %v3408 = vmul.f32 %v3407, %v3392
  %vm3409 = vweird.f32 %v480
  %v3410 = vand.u32 %v3393, 3
  %vm3411 = vcmp.lt.s32.totalorder %v3410, 2
  %vm3412 = vcmp.eq.s32.totalorder %v3410, 0
  %v3413 = vxor.u32 %v3408, 2147483648
  %v3414 = vsel %vm3412, %v3400, %v3413
  %vm3415 = vcmp.eq.s32.totalorder %v3410, 2
  %v3416 = vxor.u32 %v3400, 2147483648
  %v3417 = vsel %vm3415, %v3416, %v3408
  %v3418 = vsel %vm3411, %v3414, %v3417
  %v3419 = vsel %vm3409, nan, %v3418
  %v3420 = vand.u32 2147483647, %v481
  %vm3421 = vcmp.le.f32.partialorder %v3420, 0.7853982
  %vm3422 = vcmp.lt.s32.totalorder %v481, 0
  %v3423 = vand.u32 %v481, 2139095040
  %v3424 = vshrl.u32 %v3423, 23
  %v3425 = vsub.s32 %v3424, 127
  %v3426 = vand.u32 2147483647, %v481
  %v3427 = vand.u32 %v3426, 8388607
  %v3428 = vor.u32 %v3427, 8388608
  %v3429 = vsub.s32 0, %v3428
  %v3430 = vadd.s32 %v3425, 1
  %vm3431 = vcmp.gt.s32.totalorder %v3430, 0
  %v3432 = vsel %vm3431, %v3430, 0
  %v3433 = vshrl.u32 %v3432, 5
  %v3434 = vand.u32 %v3432, 31
  %v3435 = vsub.s32 32, %v3434
  %v3436 = vshrl.u32 683565275, %v3435
  %v3437 = vshll.u32 683565275, %v3434
  %v3438 = vshrl.u32 2475754826, %v3435
  %v3439 = vor.u32 %v3437, %v3438
  %v3440 = vshll.u32 2475754826, %v3434
  %v3441 = vshrl.u32 2131351028, %v3435
  %v3442 = vor.u32 %v3440, %v3441
  %v3443 = vshll.u32 2131351028, %v3434
  %v3444 = vshrl.u32 2102212464, %v3435
  %v3445 = vor.u32 %v3443, %v3444
  %v3446 = vshll.u32 2102212464, %v3434
  %v3447 = vshrl.u32 920167782, %v3435
  %v3448 = vor.u32 %v3446, %v3447
  %v3449 = vshll.u32 920167782, %v3434
  %v3450 = vshrl.u32 1326507024, %v3435
  %v3451 = vor.u32 %v3449, %v3450
  %vm3452 = vcmp.lt.s32.totalorder %v3433, 1
  %vm3453 = vcmp.lt.s32.totalorder %v3433, 2
  %vm3454 = vcmp.lt.s32.totalorder %v3433, 3
  %vm3455 = vcmp.lt.s32.totalorder %v3433, 4
  %v3456 = vsel %vm3452, %v3436, %v3439
  %v3457 = vsel %vm3455, %v3445, 2102212464
  %v3458 = vsel %vm3454, %v3442, %v3457
  %v3459 = vsel %vm3453, %v3456, %v3458
  %v3460 = vsel %vm3452, %v3439, %v3442
  %v3461 = vsel %vm3455, %v3448, 920167782
  %v3462 = vsel %vm3454, %v3445, %v3461
  %v3463 = vsel %vm3453, %v3460, %v3462
  %v3464 = vsel %vm3452, %v3442, %v3445
  %v3465 = vsel %vm3455, %v3451, 1326507024
  %v3466 = vsel %vm3454, %v3448, %v3465
  %v3467 = vsel %vm3453, %v3464, %v3466
  %v3468 = vshll.u32 %v3428, 8
  %v3469 = vand.u32 %v3468, 65535
  %v3470 = vshrl.u32 %v3468, 16
  %v3471 = vand.u32 %v3467, 65535
  %v3472 = vshrl.u32 %v3467, 16
  %v3473 = vmul.u32 %v3469, %v3471
  %v3474 = vmul.u32 %v3469, %v3472
  %v3475 = vmul.u32 %v3470, %v3471
  %v3476 = vmul.u32 %v3470, %v3472
  %v3477 = vshll.u32 %v3474, 16
  %v3478 = vshrl.u32 %v3474, 16
  %v3479 = vshll.u32 %v3475, 16
  %v3480 = vshrl.u32 %v3475, 16
  %vm3481 = vc.u32 %v3473, %v3477
  %v3482 = vsel %vm3481, 1, 0
  %v3483 = vadd.s32 %v3473, %v3477
  %v3484 = vadd.s32 %v3476, %v3482
  %vm3485 = vc.u32 %v3483, %v3479
  %v3486 = vsel %vm3485, 1, 0
  %v3487 = vadd.s32 %v3483, %v3479
  %v3488 = vadd.s32 %v3484, %v3486
  %v3489 = vadd.s32 %v3488, %v3478
  %v3490 = vadd.s32 %v3489, %v3480
  %v3491 = vand.u32 %v3468, 65535
  %v3492 = vshrl.u32 %v3468, 16
  %v3493 = vand.u32 %v3463, 65535
  %v3494 = vshrl.u32 %v3463, 16
  %v3495 = vmul.u32 %v3491, %v3493
  %v3496 = vmul.u32 %v3491, %v3494
  %v3497 = vmul.u32 %v3492, %v3493
  %v3498 = vmul.u32 %v3492, %v3494
  %v3499 = vshll.u32 %v3496, 16
  %v3500 = vshrl.u32 %v3496, 16
  %v3501 = vshll.u32 %v3497, 16
  %v3502 = vshrl.u32 %v3497, 16
  %vm3503 = vc.u32 %v3495, %v3499
  %v3504 = vsel %vm3503, 1, 0
  %v3505 = vadd.s32 %v3495, %v3499
  %v3506 = vadd.s32 %v3498, %v3504
  %vm3507 = vc.u32 %v3505, %v3501
  %v3508 = vsel %vm3507, 1, 0
  %v3509 = vadd.s32 %v3505, %v3501
  %v3510 = vadd.s32 %v3506, %v3508
  %v3511 = vadd.s32 %v3510, %v3500
  %v3512 = vadd.s32 %v3511, %v3502
  %v3513 = vmul.u32 %v3468, %v3459
  %v3514 = vadd.s32 %v3490, %v3509
  %vm3515 = vc.u32 %v3490, %v3509
  %v3516 = vadd.s32 %v3512, 1
  %v3517 = vsel %vm3515, %v3516, %v3512
  %v3518 = vadd.s32 %v3513, %v3517
  %v3519 = vadd.s32 %v3518, 536870912
  %v3520 = vshrl.u32 %v3519, 30
  %v3521 = vshll.u32 %v3520, 30
  %v3522 = vsub.s32 %v3518, %v3521
  %vm3523 = vcmp.lt.s32.totalorder %v3522, 0
  %v3524 = vsub.s32 0, %v3522
  %v3525 = vsel %vm3523, %v3524, %v3522
  %v3526 = vclz %v3525
  %v3527 = vsub.s32 %v3526, 2
  %vm3528 = vcmp.gt.s32.totalorder 0, %v3527
  %v3529 = vsel %vm3528, 0, %v3527
  %v3530 = vsub.s32 32, %v3529
  %v3531 = vshll.u32 %v3522, %v3529
  %v3532 = vshrl.u32 %v3514, %v3530
  %v3533 = vor.u32 %v3531, %v3532
  %v3534 = vsub.s32 4294967266, %v3529
  %v3535 = vadd.s32 %v3534, 127
  %v3536 = vshll.u32 %v3535, 23
  %v3537 = vor.u32 4788187, %v3536
  %v3538 = vand.u32 2147483647, %v3537
  %v3540 = vcvt.s32.f32 %v3533
  %v3541 = vmul.f32 %v3540, %v3538
  %v3542 = vxor.u32 %v3541, 2147483648
  %v3543 = vsel %vm3422, %v3542, %v3541
  %v3544 = vsub.s32 4, %v3520
  %v3545 = vsel %vm3422, %v3544, %v3520
  %v3546 = vsel %vm3421, %v481, %v3543
  %v3547 = vsel %vm3421, 0, %v3545
  %v3548 = vmul.f32 %v3546, %v3546
  %v3549 = vmul.f32 %v3548, -0.001358992
  %v3550 = vadd.f32 %v3549, 0.041655596
  %v3551 = vmul.f32 %v3548, %v3550
  %v3552 = vadd.f32 %v3551, -0.4999988
  %v3553 = vmul.f32 %v3548, %v3552
  %v3554 = vadd.f32 1.0, %v3553
  %v3555 = vmul.f32 %v3546, %v3546
  %v3556 = vmul.f32 %v3555, -0.00019511016
  %v3557 = vadd.f32 %v3556, 0.008332121
  %v3558 = vmul.f32 %v3555, %v3557
  %v3559 = vadd.f32 %v3558, -0.16666654
  %v3560 = vmul.f32 %v3555, %v3559
  %v3561 = vadd.f32 %v3560, 1.0
  %v3562 = vmul.f32 %v3561, %v3546
  %vm3563 = vweird.f32 %v481
  %v3564 = vand.u32 %v3547, 3
  %vm3565 = vcmp.lt.s32.totalorder %v3564, 2
  %vm3566 = vcmp.eq.s32.totalorder %v3564, 0
  %v3567 = vxor.u32 %v3562, 2147483648
  %v3568 = vsel %vm3566, %v3554, %v3567
  %vm3569 = vcmp.eq.s32.totalorder %v3564, 2
  %v3570 = vxor.u32 %v3554, 2147483648
  %v3571 = vsel %vm3569, %v3570, %v3562
  %v3572 = vsel %vm3565, %v3568, %v3571
  %v3573 = vsel %vm3563, nan, %v3572
  %v3574 = vand.u32 2147483647, %v482
  %vm3575 = vcmp.le.f32.partialorder %v3574, 0.7853982
  %vm3576 = vcmp.lt.s32.totalorder %v482, 0
  %v3577 = vand.u32 %v482, 2139095040
  %v3578 = vshrl.u32 %v3577, 23
  %v3579 = vsub.s32 %v3578, 127
  %v3580 = vand.u32 2147483647, %v482
  %v3581 = vand.u32 %v3580, 8388607
  %v3582 = vor.u32 %v3581, 8388608
  %v3583 = vsub.s32 0, %v3582
  %v3584 = vadd.s32 %v3579, 1
  %vm3585 = vcmp.gt.s32.totalorder %v3584, 0
  %v3586 = vsel %vm3585, %v3584, 0
  %v3587 = vshrl.u32 %v3586, 5
  %v3588 = vand.u32 %v3586, 31
  %v3589 = vsub.s32 32, %v3588
  %v3590 = vshrl.u32 683565275, %v3589
  %v3591 = vshll.u32 683565275, %v3588
  %v3592 = vshrl.u32 2475754826, %v3589
  %v3593 = vor.u32 %v3591, %v3592
  %v3594 = vshll.u32 2475754826, %v3588
  %v3595 = vshrl.u32 2131351028, %v3589
  %v3596 = vor.u32 %v3594, %v3595
  %v3597 = vshll.u32 2131351028, %v3588
  %v3598 = vshrl.u32 2102212464, %v3589
  %v3599 = vor.u32 %v3597, %v3598
  %v3600 = vshll.u32 2102212464, %v3588
  %v3601 = vshrl.u32 920167782, %v3589
  %v3602 = vor.u32 %v3600, %v3601
  %v3603 = vshll.u32 920167782, %v3588
  %v3604 = vshrl.u32 1326507024, %v3589
  %v3605 = vor.u32 %v3603, %v3604
  %vm3606 = vcmp.lt.s32.totalorder %v3587, 1
  %vm3607 = vcmp.lt.s32.totalorder %v3587, 2
  %vm3608 = vcmp.lt.s32.totalorder %v3587, 3
  %vm3609 = vcmp.lt.s32.totalorder %v3587, 4
  %v3610 = vsel %vm3606, %v3590, %v3593
  %v3611 = vsel %vm3609, %v3599, 2102212464
  %v3612 = vsel %vm3608, %v3596, %v3611
  %v3613 = vsel %vm3607, %v3610, %v3612
  %v3614 = vsel %vm3606, %v3593, %v3596
  %v3615 = vsel %vm3609, %v3602, 920167782
  %v3616 = vsel %vm3608, %v3599, %v3615
  %v3617 = vsel %vm3607, %v3614, %v3616
  %v3618 = vsel %vm3606, %v3596, %v3599
  %v3619 = vsel %vm3609, %v3605, 1326507024
  %v3620 = vsel %vm3608, %v3602, %v3619
  %v3621 = vsel %vm3607, %v3618, %v3620
  %v3622 = vshll.u32 %v3582, 8
  %v3623 = vand.u32 %v3622, 65535
  %v3624 = vshrl.u32 %v3622, 16
  %v3625 = vand.u32 %v3621, 65535
  %v3626 = vshrl.u32 %v3621, 16
  %v3627 = vmul.u32 %v3623, %v3625
  %v3628 = vmul.u32 %v3623, %v3626
  %v3629 = vmul.u32 %v3624, %v3625
  %v3630 = vmul.u32 %v3624, %v3626
  %v3631 = vshll.u32 %v3628, 16
  %v3632 = vshrl.u32 %v3628, 16
  %v3633 = vshll.u32 %v3629, 16
  %v3634 = vshrl.u32 %v3629, 16
  %vm3635 = vc.u32 %v3627, %v3631
  %v3636 = vsel %vm3635, 1, 0
  %v3637 = vadd.s32 %v3627, %v3631
  %v3638 = vadd.s32 %v3630, %v3636
  %vm3639 = vc.u32 %v3637, %v3633
  %v3640 = vsel %vm3639, 1, 0
  %v3641 = vadd.s32 %v3637, %v3633
  %v3642 = vadd.s32 %v3638, %v3640
  %v3643 = vadd.s32 %v3642, %v3632
  %v3644 = vadd.s32 %v3643, %v3634
  %v3645 = vand.u32 %v3622, 65535
  %v3646 = vshrl.u32 %v3622, 16
  %v3647 = vand.u32 %v3617, 65535
  %v3648 = vshrl.u32 %v3617, 16
  %v3649 = vmul.u32 %v3645, %v3647
  %v3650 = vmul.u32 %v3645, %v3648
  %v3651 = vmul.u32 %v3646, %v3647
  %v3652 = vmul.u32 %v3646, %v3648
  %v3653 = vshll.u32 %v3650, 16
  %v3654 = vshrl.u32 %v3650, 16
  %v3655 = vshll.u32 %v3651, 16
  %v3656 = vshrl.u32 %v3651, 16
  %vm3657 = vc.u32 %v3649, %v3653
  %v3658 = vsel %vm3657, 1, 0
  %v3659 = vadd.s32 %v3649, %v3653
  %v3660 = vadd.s32 %v3652, %v3658
  %vm3661 = vc.u32 %v3659, %v3655
  %v3662 = vsel %vm3661, 1, 0
  %v3663 = vadd.s32 %v3659, %v3655
  %v3664 = vadd.s32 %v3660, %v3662
  %v3665 = vadd.s32 %v3664, %v3654
  %v3666 = vadd.s32 %v3665, %v3656
  %v3667 = vmul.u32 %v3622, %v3613
  %v3668 = vadd.s32 %v3644, %v3663
  %vm3669 = vc.u32 %v3644, %v3663
  %v3670 = vadd.s32 %v3666, 1
  %v3671 = vsel %vm3669, %v3670, %v3666
  %v3672 = vadd.s32 %v3667, %v3671
  %v3673 = vadd.s32 %v3672, 536870912
  %v3674 = vshrl.u32 %v3673, 30
  %v3675 = vshll.u32 %v3674, 30
  %v3676 = vsub.s32 %v3672, %v3675
  %vm3677 = vcmp.lt.s32.totalorder %v3676, 0
  %v3678 = vsub.s32 0, %v3676
  %v3679 = vsel %vm3677, %v3678, %v3676
  %v3680 = vclz %v3679
  %v3681 = vsub.s32 %v3680, 2
  %vm3682 = vcmp.gt.s32.totalorder 0, %v3681
  %v3683 = vsel %vm3682, 0, %v3681
  %v3684 = vsub.s32 32, %v3683
  %v3685 = vshll.u32 %v3676, %v3683
  %v3686 = vshrl.u32 %v3668, %v3684
  %v3687 = vor.u32 %v3685, %v3686
  %v3688 = vsub.s32 4294967266, %v3683
  %v3689 = vadd.s32 %v3688, 127
  %v3690 = vshll.u32 %v3689, 23
  %v3691 = vor.u32 4788187, %v3690
  %v3692 = vand.u32 2147483647, %v3691
  %v3694 = vcvt.s32.f32 %v3687
  %v3695 = vmul.f32 %v3694, %v3692
  %v3696 = vxor.u32 %v3695, 2147483648
  %v3697 = vsel %vm3576, %v3696, %v3695
  %v3698 = vsub.s32 4, %v3674
  %v3699 = vsel %vm3576, %v3698, %v3674
  %v3700 = vsel %vm3575, %v482, %v3697
  %v3701 = vsel %vm3575, 0, %v3699
  %v3702 = vmul.f32 %v3700, %v3700
  %v3703 = vmul.f32 %v3702, -0.001358992
  %v3704 = vadd.f32 %v3703, 0.041655596
  %v3705 = vmul.f32 %v3702, %v3704
  %v3706 = vadd.f32 %v3705, -0.4999988
  %v3707 = vmul.f32 %v3702, %v3706
  %v3708 = vadd.f32 1.0, %v3707
  %v3709 = vmul.f32 %v3700, %v3700
  %v3710 = vmul.f32 %v3709, -0.00019511016
  %v3711 = vadd.f32 %v3710, 0.008332121
  %v3712 = vmul.f32 %v3709, %v3711
  %v3713 = vadd.f32 %v3712, -0.16666654
  %v3714 = vmul.f32 %v3709, %v3713
  %v3715 = vadd.f32 %v3714, 1.0
  %v3716 = vmul.f32 %v3715, %v3700
  %vm3717 = vweird.f32 %v482
  %v3718 = vand.u32 %v3701, 3
  %vm3719 = vcmp.lt.s32.totalorder %v3718, 2
  %vm3720 = vcmp.eq.s32.totalorder %v3718, 0
  %v3721 = vxor.u32 %v3716, 2147483648
  %v3722 = vsel %vm3720, %v3708, %v3721
  %vm3723 = vcmp.eq.s32.totalorder %v3718, 2
  %v3724 = vxor.u32 %v3708, 2147483648
  %v3725 = vsel %vm3723, %v3724, %v3716
  %v3726 = vsel %vm3719, %v3722, %v3725
  %v3727 = vsel %vm3717, nan, %v3726
  %v3728 = vand.u32 2147483647, %v483
  %vm3729 = vcmp.le.f32.partialorder %v3728, 0.7853982
  %vm3730 = vcmp.lt.s32.totalorder %v483, 0
  %v3731 = vand.u32 %v483, 2139095040
  %v3732 = vshrl.u32 %v3731, 23
  %v3733 = vsub.s32 %v3732, 127
  %v3734 = vand.u32 2147483647, %v483
  %v3735 = vand.u32 %v3734, 8388607
  %v3736 = vor.u32 %v3735, 8388608
  %v3737 = vsub.s32 0, %v3736
  %v3738 = vadd.s32 %v3733, 1
  %vm3739 = vcmp.gt.s32.totalorder %v3738, 0
  %v3740 = vsel %vm3739, %v3738, 0
  %v3741 = vshrl.u32 %v3740, 5
  %v3742 = vand.u32 %v3740, 31
  %v3743 = vsub.s32 32, %v3742
  %v3744 = vshrl.u32 683565275, %v3743
  %v3745 = vshll.u32 683565275, %v3742
  %v3746 = vshrl.u32 2475754826, %v3743
  %v3747 = vor.u32 %v3745, %v3746
  %v3748 = vshll.u32 2475754826, %v3742
  %v3749 = vshrl.u32 2131351028, %v3743
  %v3750 = vor.u32 %v3748, %v3749
  %v3751 = vshll.u32 2131351028, %v3742
  %v3752 = vshrl.u32 2102212464, %v3743
  %v3753 = vor.u32 %v3751, %v3752
  %v3754 = vshll.u32 2102212464, %v3742
  %v3755 = vshrl.u32 920167782, %v3743
  %v3756 = vor.u32 %v3754, %v3755
  %v3757 = vshll.u32 920167782, %v3742
  %v3758 = vshrl.u32 1326507024, %v3743
  %v3759 = vor.u32 %v3757, %v3758
  %vm3760 = vcmp.lt.s32.totalorder %v3741, 1
  %vm3761 = vcmp.lt.s32.totalorder %v3741, 2
  %vm3762 = vcmp.lt.s32.totalorder %v3741, 3
  %vm3763 = vcmp.lt.s32.totalorder %v3741, 4
  %v3764 = vsel %vm3760, %v3744, %v3747
  %v3765 = vsel %vm3763, %v3753, 2102212464
  %v3766 = vsel %vm3762, %v3750, %v3765
  %v3767 = vsel %vm3761, %v3764, %v3766
  %v3768 = vsel %vm3760, %v3747, %v3750
  %v3769 = vsel %vm3763, %v3756, 920167782
  %v3770 = vsel %vm3762, %v3753, %v3769
  %v3771 = vsel %vm3761, %v3768, %v3770
  %v3772 = vsel %vm3760, %v3750, %v3753
  %v3773 = vsel %vm3763, %v3759, 1326507024
  %v3774 = vsel %vm3762, %v3756, %v3773
  %v3775 = vsel %vm3761, %v3772, %v3774
  %v3776 = vshll.u32 %v3736, 8
  %v3777 = vand.u32 %v3776, 65535
  %v3778 = vshrl.u32 %v3776, 16
  %v3779 = vand.u32 %v3775, 65535
  %v3780 = vshrl.u32 %v3775, 16
  %v3781 = vmul.u32 %v3777, %v3779
  %v3782 = vmul.u32 %v3777, %v3780
  %v3783 = vmul.u32 %v3778, %v3779
  %v3784 = vmul.u32 %v3778, %v3780
  %v3785 = vshll.u32 %v3782, 16
  %v3786 = vshrl.u32 %v3782, 16
  %v3787 = vshll.u32 %v3783, 16
  %v3788 = vshrl.u32 %v3783, 16
  %vm3789 = vc.u32 %v3781, %v3785
  %v3790 = vsel %vm3789, 1, 0
  %v3791 = vadd.s32 %v3781, %v3785
  %v3792 = vadd.s32 %v3784, %v3790
  %vm3793 = vc.u32 %v3791, %v3787
  %v3794 = vsel %vm3793, 1, 0
  %v3795 = vadd.s32 %v3791, %v3787
  %v3796 = vadd.s32 %v3792, %v3794
  %v3797 = vadd.s32 %v3796, %v3786
  %v3798 = vadd.s32 %v3797, %v3788
  %v3799 = vand.u32 %v3776, 65535
  %v3800 = vshrl.u32 %v3776, 16
  %v3801 = vand.u32 %v3771, 65535
  %v3802 = vshrl.u32 %v3771, 16
  %v3803 = vmul.u32 %v3799, %v3801
  %v3804 = vmul.u32 %v3799, %v3802
  %v3805 = vmul.u32 %v3800, %v3801
  %v3806 = vmul.u32 %v3800, %v3802
  %v3807 = vshll.u32 %v3804, 16
  %v3808 = vshrl.u32 %v3804, 16
  %v3809 = vshll.u32 %v3805, 16
  %v3810 = vshrl.u32 %v3805, 16
  %vm3811 = vc.u32 %v3803, %v3807
  %v3812 = vsel %vm3811, 1, 0
  %v3813 = vadd.s32 %v3803, %v3807
  %v3814 = vadd.s32 %v3806, %v3812
  %vm3815 = vc.u32 %v3813, %v3809
  %v3816 = vsel %vm3815, 1, 0
  %v3817 = vadd.s32 %v3813, %v3809
  %v3818 = vadd.s32 %v3814, %v3816
  %v3819 = vadd.s32 %v3818, %v3808
  %v3820 = vadd.s32 %v3819, %v3810
  %v3821 = vmul.u32 %v3776, %v3767
  %v3822 = vadd.s32 %v3798, %v3817
  %vm3823 = vc.u32 %v3798, %v3817
  %v3824 = vadd.s32 %v3820, 1
  %v3825 = vsel %vm3823, %v3824, %v3820
  %v3826 = vadd.s32 %v3821, %v3825
  %v3827 = vadd.s32 %v3826, 536870912
  %v3828 = vshrl.u32 %v3827, 30
  %v3829 = vshll.u32 %v3828, 30
  %v3830 = vsub.s32 %v3826, %v3829
  %vm3831 = vcmp.lt.s32.totalorder %v3830, 0
  %v3832 = vsub.s32 0, %v3830
  %v3833 = vsel %vm3831, %v3832, %v3830
  %v3834 = vclz %v3833
  %v3835 = vsub.s32 %v3834, 2
  %vm3836 = vcmp.gt.s32.totalorder 0, %v3835
  %v3837 = vsel %vm3836, 0, %v3835
  %v3838 = vsub.s32 32, %v3837
  %v3839 = vshll.u32 %v3830, %v3837
  %v3840 = vshrl.u32 %v3822, %v3838
  %v3841 = vor.u32 %v3839, %v3840
  %v3842 = vsub.s32 4294967266, %v3837
  %v3843 = vadd.s32 %v3842, 127
  %v3844 = vshll.u32 %v3843, 23
  %v3845 = vor.u32 4788187, %v3844
  %v3846 = vand.u32 2147483647, %v3845
  %v3848 = vcvt.s32.f32 %v3841
  %v3849 = vmul.f32 %v3848, %v3846
  %v3850 = vxor.u32 %v3849, 2147483648
  %v3851 = vsel %vm3730, %v3850, %v3849
  %v3852 = vsub.s32 4, %v3828
  %v3853 = vsel %vm3730, %v3852, %v3828
  %v3854 = vsel %vm3729, %v483, %v3851
  %v3855 = vsel %vm3729, 0, %v3853
  %v3856 = vmul.f32 %v3854, %v3854
  %v3857 = vmul.f32 %v3856, -0.001358992
  %v3858 = vadd.f32 %v3857, 0.041655596
  %v3859 = vmul.f32 %v3856, %v3858
  %v3860 = vadd.f32 %v3859, -0.4999988
  %v3861 = vmul.f32 %v3856, %v3860
  %v3862 = vadd.f32 1.0, %v3861
  %v3863 = vmul.f32 %v3854, %v3854
  %v3864 = vmul.f32 %v3863, -0.00019511016
  %v3865 = vadd.f32 %v3864, 0.008332121
  %v3866 = vmul.f32 %v3863, %v3865
  %v3867 = vadd.f32 %v3866, -0.16666654
  %v3868 = vmul.f32 %v3863, %v3867
  %v3869 = vadd.f32 %v3868, 1.0
  %v3870 = vmul.f32 %v3869, %v3854
  %vm3871 = vweird.f32 %v483
  %v3872 = vand.u32 %v3855, 3
  %vm3873 = vcmp.lt.s32.totalorder %v3872, 2
  %vm3874 = vcmp.eq.s32.totalorder %v3872, 0
  %v3875 = vxor.u32 %v3870, 2147483648
  %v3876 = vsel %vm3874, %v3862, %v3875
  %vm3877 = vcmp.eq.s32.totalorder %v3872, 2
  %v3878 = vxor.u32 %v3862, 2147483648
  %v3879 = vsel %vm3877, %v3878, %v3870
  %v3880 = vsel %vm3873, %v3876, %v3879
  %v3881 = vsel %vm3871, nan, %v3880
  %v3882 = vand.u32 2147483647, %v484
  %vm3883 = vcmp.le.f32.partialorder %v3882, 0.7853982
  %vm3884 = vcmp.lt.s32.totalorder %v484, 0
  %v3885 = vand.u32 %v484, 2139095040
  %v3886 = vshrl.u32 %v3885, 23
  %v3887 = vsub.s32 %v3886, 127
  %v3888 = vand.u32 2147483647, %v484
  %v3889 = vand.u32 %v3888, 8388607
  %v3890 = vor.u32 %v3889, 8388608
  %v3891 = vsub.s32 0, %v3890
  %v3892 = vadd.s32 %v3887, 1
  %vm3893 = vcmp.gt.s32.totalorder %v3892, 0
  %v3894 = vsel %vm3893, %v3892, 0
  %v3895 = vshrl.u32 %v3894, 5
  %v3896 = vand.u32 %v3894, 31
  %v3897 = vsub.s32 32, %v3896
  %v3898 = vshrl.u32 683565275, %v3897
  %v3899 = vshll.u32 683565275, %v3896
  %v3900 = vshrl.u32 2475754826, %v3897
  %v3901 = vor.u32 %v3899, %v3900
  %v3902 = vshll.u32 2475754826, %v3896
  %v3903 = vshrl.u32 2131351028, %v3897
  %v3904 = vor.u32 %v3902, %v3903
  %v3905 = vshll.u32 2131351028, %v3896
  %v3906 = vshrl.u32 2102212464, %v3897
  %v3907 = vor.u32 %v3905, %v3906
  %v3908 = vshll.u32 2102212464, %v3896
  %v3909 = vshrl.u32 920167782, %v3897
  %v3910 = vor.u32 %v3908, %v3909
  %v3911 = vshll.u32 920167782, %v3896
  %v3912 = vshrl.u32 1326507024, %v3897
  %v3913 = vor.u32 %v3911, %v3912
  %vm3914 = vcmp.lt.s32.totalorder %v3895, 1
  %vm3915 = vcmp.lt.s32.totalorder %v3895, 2
  %vm3916 = vcmp.lt.s32.totalorder %v3895, 3
  %vm3917 = vcmp.lt.s32.totalorder %v3895, 4
  %v3918 = vsel %vm3914, %v3898, %v3901
  %v3919 = vsel %vm3917, %v3907, 2102212464
  %v3920 = vsel %vm3916, %v3904, %v3919
  %v3921 = vsel %vm3915, %v3918, %v3920
  %v3922 = vsel %vm3914, %v3901, %v3904
  %v3923 = vsel %vm3917, %v3910, 920167782
  %v3924 = vsel %vm3916, %v3907, %v3923
  %v3925 = vsel %vm3915, %v3922, %v3924
  %v3926 = vsel %vm3914, %v3904, %v3907
  %v3927 = vsel %vm3917, %v3913, 1326507024
  %v3928 = vsel %vm3916, %v3910, %v3927
  %v3929 = vsel %vm3915, %v3926, %v3928
  %v3930 = vshll.u32 %v3890, 8
  %v3931 = vand.u32 %v3930, 65535
  %v3932 = vshrl.u32 %v3930, 16
  %v3933 = vand.u32 %v3929, 65535
  %v3934 = vshrl.u32 %v3929, 16
  %v3935 = vmul.u32 %v3931, %v3933
  %v3936 = vmul.u32 %v3931, %v3934
  %v3937 = vmul.u32 %v3932, %v3933
  %v3938 = vmul.u32 %v3932, %v3934
  %v3939 = vshll.u32 %v3936, 16
  %v3940 = vshrl.u32 %v3936, 16
  %v3941 = vshll.u32 %v3937, 16
  %v3942 = vshrl.u32 %v3937, 16
  %vm3943 = vc.u32 %v3935, %v3939
  %v3944 = vsel %vm3943, 1, 0
  %v3945 = vadd.s32 %v3935, %v3939
  %v3946 = vadd.s32 %v3938, %v3944
  %vm3947 = vc.u32 %v3945, %v3941
  %v3948 = vsel %vm3947, 1, 0
  %v3949 = vadd.s32 %v3945, %v3941
  %v3950 = vadd.s32 %v3946, %v3948
  %v3951 = vadd.s32 %v3950, %v3940
  %v3952 = vadd.s32 %v3951, %v3942
  %v3953 = vand.u32 %v3930, 65535
  %v3954 = vshrl.u32 %v3930, 16
  %v3955 = vand.u32 %v3925, 65535
  %v3956 = vshrl.u32 %v3925, 16
  %v3957 = vmul.u32 %v3953, %v3955
  %v3958 = vmul.u32 %v3953, %v3956
  %v3959 = vmul.u32 %v3954, %v3955
  %v3960 = vmul.u32 %v3954, %v3956
  %v3961 = vshll.u32 %v3958, 16
  %v3962 = vshrl.u32 %v3958, 16
  %v3963 = vshll.u32 %v3959, 16
  %v3964 = vshrl.u32 %v3959, 16
  %vm3965 = vc.u32 %v3957, %v3961
  %v3966 = vsel %vm3965, 1, 0
  %v3967 = vadd.s32 %v3957, %v3961
  %v3968 = vadd.s32 %v3960, %v3966
  %vm3969 = vc.u32 %v3967, %v3963
  %v3970 = vsel %vm3969, 1, 0
  %v3971 = vadd.s32 %v3967, %v3963
  %v3972 = vadd.s32 %v3968, %v3970
  %v3973 = vadd.s32 %v3972, %v3962
  %v3974 = vadd.s32 %v3973, %v3964
  %v3975 = vmul.u32 %v3930, %v3921
  %v3976 = vadd.s32 %v3952, %v3971
  %vm3977 = vc.u32 %v3952, %v3971
  %v3978 = vadd.s32 %v3974, 1
  %v3979 = vsel %vm3977, %v3978, %v3974
  %v3980 = vadd.s32 %v3975, %v3979
  %v3981 = vadd.s32 %v3980, 536870912
  %v3982 = vshrl.u32 %v3981, 30
  %v3983 = vshll.u32 %v3982, 30
  %v3984 = vsub.s32 %v3980, %v3983
  %vm3985 = vcmp.lt.s32.totalorder %v3984, 0
  %v3986 = vsub.s32 0, %v3984
  %v3987 = vsel %vm3985, %v3986, %v3984
  %v3988 = vclz %v3987
  %v3989 = vsub.s32 %v3988, 2
  %vm3990 = vcmp.gt.s32.totalorder 0, %v3989
  %v3991 = vsel %vm3990, 0, %v3989
  %v3992 = vsub.s32 32, %v3991
  %v3993 = vshll.u32 %v3984, %v3991
  %v3994 = vshrl.u32 %v3976, %v3992
  %v3995 = vor.u32 %v3993, %v3994
  %v3996 = vsub.s32 4294967266, %v3991
  %v3997 = vadd.s32 %v3996, 127
  %v3998 = vshll.u32 %v3997, 23
  %v3999 = vor.u32 4788187, %v3998
  %v4000 = vand.u32 2147483647, %v3999
  %v4002 = vcvt.s32.f32 %v3995
  %v4003 = vmul.f32 %v4002, %v4000
  %v4004 = vxor.u32 %v4003, 2147483648
  %v4005 = vsel %vm3884, %v4004, %v4003
  %v4006 = vsub.s32 4, %v3982
  %v4007 = vsel %vm3884, %v4006, %v3982
  %v4008 = vsel %vm3883, %v484, %v4005
  %v4009 = vsel %vm3883, 0, %v4007
  %v4010 = vmul.f32 %v4008, %v4008
  %v4011 = vmul.f32 %v4010, -0.001358992
  %v4012 = vadd.f32 %v4011, 0.041655596
  %v4013 = vmul.f32 %v4010, %v4012
  %v4014 = vadd.f32 %v4013, -0.4999988
  %v4015 = vmul.f32 %v4010, %v4014
  %v4016 = vadd.f32 1.0, %v4015
  %v4017 = vmul.f32 %v4008, %v4008
  %v4018 = vmul.f32 %v4017, -0.00019511016
  %v4019 = vadd.f32 %v4018, 0.008332121
  %v4020 = vmul.f32 %v4017, %v4019
  %v4021 = vadd.f32 %v4020, -0.16666654
  %v4022 = vmul.f32 %v4017, %v4021
  %v4023 = vadd.f32 %v4022, 1.0
  %v4024 = vmul.f32 %v4023, %v4008
  %vm4025 = vweird.f32 %v484
  %v4026 = vand.u32 %v4009, 3
  %vm4027 = vcmp.lt.s32.totalorder %v4026, 2
  %vm4028 = vcmp.eq.s32.totalorder %v4026, 0
  %v4029 = vxor.u32 %v4024, 2147483648
  %v4030 = vsel %vm4028, %v4016, %v4029
  %vm4031 = vcmp.eq.s32.totalorder %v4026, 2
  %v4032 = vxor.u32 %v4016, 2147483648
  %v4033 = vsel %vm4031, %v4032, %v4024
  %v4034 = vsel %vm4027, %v4030, %v4033
  %v4035 = vsel %vm4025, nan, %v4034
  %v4036 = vand.u32 2147483647, %v485
  %vm4037 = vcmp.le.f32.partialorder %v4036, 0.7853982
  %vm4038 = vcmp.lt.s32.totalorder %v485, 0
  %v4039 = vand.u32 %v485, 2139095040
  %v4040 = vshrl.u32 %v4039, 23
  %v4041 = vsub.s32 %v4040, 127
  %v4042 = vand.u32 2147483647, %v485
  %v4043 = vand.u32 %v4042, 8388607
  %v4044 = vor.u32 %v4043, 8388608
  %v4045 = vsub.s32 0, %v4044
  %v4046 = vadd.s32 %v4041, 1
  %vm4047 = vcmp.gt.s32.totalorder %v4046, 0
  %v4048 = vsel %vm4047, %v4046, 0
  %v4049 = vshrl.u32 %v4048, 5
  %v4050 = vand.u32 %v4048, 31
  %v4051 = vsub.s32 32, %v4050
  %v4052 = vshrl.u32 683565275, %v4051
  %v4053 = vshll.u32 683565275, %v4050
  %v4054 = vshrl.u32 2475754826, %v4051
  %v4055 = vor.u32 %v4053, %v4054
  %v4056 = vshll.u32 2475754826, %v4050
  %v4057 = vshrl.u32 2131351028, %v4051
  %v4058 = vor.u32 %v4056, %v4057
  %v4059 = vshll.u32 2131351028, %v4050
  %v4060 = vshrl.u32 2102212464, %v4051
  %v4061 = vor.u32 %v4059, %v4060
  %v4062 = vshll.u32 2102212464, %v4050
  %v4063 = vshrl.u32 920167782, %v4051
  %v4064 = vor.u32 %v4062, %v4063
  %v4065 = vshll.u32 920167782, %v4050
  %v4066 = vshrl.u32 1326507024, %v4051
  %v4067 = vor.u32 %v4065, %v4066
  %vm4068 = vcmp.lt.s32.totalorder %v4049, 1
  %vm4069 = vcmp.lt.s32.totalorder %v4049, 2
  %vm4070 = vcmp.lt.s32.totalorder %v4049, 3
  %vm4071 = vcmp.lt.s32.totalorder %v4049, 4
  %v4072 = vsel %vm4068, %v4052, %v4055
  %v4073 = vsel %vm4071, %v4061, 2102212464
  %v4074 = vsel %vm4070, %v4058, %v4073
  %v4075 = vsel %vm4069, %v4072, %v4074
  %v4076 = vsel %vm4068, %v4055, %v4058
  %v4077 = vsel %vm4071, %v4064, 920167782
  %v4078 = vsel %vm4070, %v4061, %v4077
  %v4079 = vsel %vm4069, %v4076, %v4078
  %v4080 = vsel %vm4068, %v4058, %v4061
  %v4081 = vsel %vm4071, %v4067, 1326507024
  %v4082 = vsel %vm4070, %v4064, %v4081
  %v4083 = vsel %vm4069, %v4080, %v4082
  %v4084 = vshll.u32 %v4044, 8
  %v4085 = vand.u32 %v4084, 65535
  %v4086 = vshrl.u32 %v4084, 16
  %v4087 = vand.u32 %v4083, 65535
  %v4088 = vshrl.u32 %v4083, 16
  %v4089 = vmul.u32 %v4085, %v4087
  %v4090 = vmul.u32 %v4085, %v4088
  %v4091 = vmul.u32 %v4086, %v4087
  %v4092 = vmul.u32 %v4086, %v4088
  %v4093 = vshll.u32 %v4090, 16
  %v4094 = vshrl.u32 %v4090, 16
  %v4095 = vshll.u32 %v4091, 16
  %v4096 = vshrl.u32 %v4091, 16
  %vm4097 = vc.u32 %v4089, %v4093
  %v4098 = vsel %vm4097, 1, 0
  %v4099 = vadd.s32 %v4089, %v4093
  %v4100 = vadd.s32 %v4092, %v4098
  %vm4101 = vc.u32 %v4099, %v4095
  %v4102 = vsel %vm4101, 1, 0
  %v4103 = vadd.s32 %v4099, %v4095
  %v4104 = vadd.s32 %v4100, %v4102
  %v4105 = vadd.s32 %v4104, %v4094
  %v4106 = vadd.s32 %v4105, %v4096
  %v4107 = vand.u32 %v4084, 65535
  %v4108 = vshrl.u32 %v4084, 16
  %v4109 = vand.u32 %v4079, 65535
  %v4110 = vshrl.u32 %v4079, 16
  %v4111 = vmul.u32 %v4107, %v4109
  %v4112 = vmul.u32 %v4107, %v4110
  %v4113 = vmul.u32 %v4108, %v4109
  %v4114 = vmul.u32 %v4108, %v4110
  %v4115 = vshll.u32 %v4112, 16
  %v4116 = vshrl.u32 %v4112, 16
  %v4117 = vshll.u32 %v4113, 16
  %v4118 = vshrl.u32 %v4113, 16
  %vm4119 = vc.u32 %v4111, %v4115
  %v4120 = vsel %vm4119, 1, 0
  %v4121 = vadd.s32 %v4111, %v4115
  %v4122 = vadd.s32 %v4114, %v4120
  %vm4123 = vc.u32 %v4121, %v4117
  %v4124 = vsel %vm4123, 1, 0
  %v4125 = vadd.s32 %v4121, %v4117
  %v4126 = vadd.s32 %v4122, %v4124
  %v4127 = vadd.s32 %v4126, %v4116
  %v4128 = vadd.s32 %v4127, %v4118
  %v4129 = vmul.u32 %v4084, %v4075
  %v4130 = vadd.s32 %v4106, %v4125
  %vm4131 = vc.u32 %v4106, %v4125
  %v4132 = vadd.s32 %v4128, 1
  %v4133 = vsel %vm4131, %v4132, %v4128
  %v4134 = vadd.s32 %v4129, %v4133
  %v4135 = vadd.s32 %v4134, 536870912
  %v4136 = vshrl.u32 %v4135, 30
  %v4137 = vshll.u32 %v4136, 30
  %v4138 = vsub.s32 %v4134, %v4137
  %vm4139 = vcmp.lt.s32.totalorder %v4138, 0
  %v4140 = vsub.s32 0, %v4138
  %v4141 = vsel %vm4139, %v4140, %v4138
  %v4142 = vclz %v4141
  %v4143 = vsub.s32 %v4142, 2
  %vm4144 = vcmp.gt.s32.totalorder 0, %v4143
  %v4145 = vsel %vm4144, 0, %v4143
  %v4146 = vsub.s32 32, %v4145
  %v4147 = vshll.u32 %v4138, %v4145
  %v4148 = vshrl.u32 %v4130, %v4146
  %v4149 = vor.u32 %v4147, %v4148
  %v4150 = vsub.s32 4294967266, %v4145
  %v4151 = vadd.s32 %v4150, 127
  %v4152 = vshll.u32 %v4151, 23
  %v4153 = vor.u32 4788187, %v4152
  %v4154 = vand.u32 2147483647, %v4153
  %v4156 = vcvt.s32.f32 %v4149
  %v4157 = vmul.f32 %v4156, %v4154
  %v4158 = vxor.u32 %v4157, 2147483648
  %v4159 = vsel %vm4038, %v4158, %v4157
  %v4160 = vsub.s32 4, %v4136
  %v4161 = vsel %vm4038, %v4160, %v4136
  %v4162 = vsel %vm4037, %v485, %v4159
  %v4163 = vsel %vm4037, 0, %v4161
  %v4164 = vmul.f32 %v4162, %v4162
  %v4165 = vmul.f32 %v4164, -0.001358992
  %v4166 = vadd.f32 %v4165, 0.041655596
  %v4167 = vmul.f32 %v4164, %v4166
  %v4168 = vadd.f32 %v4167, -0.4999988
  %v4169 = vmul.f32 %v4164, %v4168
  %v4170 = vadd.f32 1.0, %v4169
  %v4171 = vmul.f32 %v4162, %v4162
  %v4172 = vmul.f32 %v4171, -0.00019511016
  %v4173 = vadd.f32 %v4172, 0.008332121
  %v4174 = vmul.f32 %v4171, %v4173
  %v4175 = vadd.f32 %v4174, -0.16666654
  %v4176 = vmul.f32 %v4171, %v4175
  %v4177 = vadd.f32 %v4176, 1.0
  %v4178 = vmul.f32 %v4177, %v4162
  %vm4179 = vweird.f32 %v485
  %v4180 = vand.u32 %v4163, 3
  %vm4181 = vcmp.lt.s32.totalorder %v4180, 2
  %vm4182 = vcmp.eq.s32.totalorder %v4180, 0
  %v4183 = vxor.u32 %v4178, 2147483648
  %v4184 = vsel %vm4182, %v4170, %v4183
  %vm4185 = vcmp.eq.s32.totalorder %v4180, 2
  %v4186 = vxor.u32 %v4170, 2147483648
  %v4187 = vsel %vm4185, %v4186, %v4178
  %v4188 = vsel %vm4181, %v4184, %v4187
  %v4189 = vsel %vm4179, nan, %v4188
  %v4190 = vand.u32 2147483647, %v486
  %vm4191 = vcmp.le.f32.partialorder %v4190, 0.7853982
  %vm4192 = vcmp.lt.s32.totalorder %v486, 0
  %v4193 = vand.u32 %v486, 2139095040
  %v4194 = vshrl.u32 %v4193, 23
  %v4195 = vsub.s32 %v4194, 127
  %v4196 = vand.u32 2147483647, %v486
  %v4197 = vand.u32 %v4196, 8388607
  %v4198 = vor.u32 %v4197, 8388608
  %v4199 = vsub.s32 0, %v4198
  %v4200 = vadd.s32 %v4195, 1
  %vm4201 = vcmp.gt.s32.totalorder %v4200, 0
  %v4202 = vsel %vm4201, %v4200, 0
  %v4203 = vshrl.u32 %v4202, 5
  %v4204 = vand.u32 %v4202, 31
  %v4205 = vsub.s32 32, %v4204
  %v4206 = vshrl.u32 683565275, %v4205
  %v4207 = vshll.u32 683565275, %v4204
  %v4208 = vshrl.u32 2475754826, %v4205
  %v4209 = vor.u32 %v4207, %v4208
  %v4210 = vshll.u32 2475754826, %v4204
  %v4211 = vshrl.u32 2131351028, %v4205
  %v4212 = vor.u32 %v4210, %v4211
  %v4213 = vshll.u32 2131351028, %v4204
  %v4214 = vshrl.u32 2102212464, %v4205
  %v4215 = vor.u32 %v4213, %v4214
  %v4216 = vshll.u32 2102212464, %v4204
  %v4217 = vshrl.u32 920167782, %v4205
  %v4218 = vor.u32 %v4216, %v4217
  %v4219 = vshll.u32 920167782, %v4204
  %v4220 = vshrl.u32 1326507024, %v4205
  %v4221 = vor.u32 %v4219, %v4220
  %vm4222 = vcmp.lt.s32.totalorder %v4203, 1
  %vm4223 = vcmp.lt.s32.totalorder %v4203, 2
  %vm4224 = vcmp.lt.s32.totalorder %v4203, 3
  %vm4225 = vcmp.lt.s32.totalorder %v4203, 4
  %v4226 = vsel %vm4222, %v4206, %v4209
  %v4227 = vsel %vm4225, %v4215, 2102212464
  %v4228 = vsel %vm4224, %v4212, %v4227
  %v4229 = vsel %vm4223, %v4226, %v4228
  %v4230 = vsel %vm4222, %v4209, %v4212
  %v4231 = vsel %vm4225, %v4218, 920167782
  %v4232 = vsel %vm4224, %v4215, %v4231
  %v4233 = vsel %vm4223, %v4230, %v4232
  %v4234 = vsel %vm4222, %v4212, %v4215
  %v4235 = vsel %vm4225, %v4221, 1326507024
  %v4236 = vsel %vm4224, %v4218, %v4235
  %v4237 = vsel %vm4223, %v4234, %v4236
  %v4238 = vshll.u32 %v4198, 8
  %v4239 = vand.u32 %v4238, 65535
  %v4240 = vshrl.u32 %v4238, 16
  %v4241 = vand.u32 %v4237, 65535
  %v4242 = vshrl.u32 %v4237, 16
  %v4243 = vmul.u32 %v4239, %v4241
  %v4244 = vmul.u32 %v4239, %v4242
  %v4245 = vmul.u32 %v4240, %v4241
  %v4246 = vmul.u32 %v4240, %v4242
  %v4247 = vshll.u32 %v4244, 16
  %v4248 = vshrl.u32 %v4244, 16
  %v4249 = vshll.u32 %v4245, 16
  %v4250 = vshrl.u32 %v4245, 16
  %vm4251 = vc.u32 %v4243, %v4247
  %v4252 = vsel %vm4251, 1, 0
  %v4253 = vadd.s32 %v4243, %v4247
  %v4254 = vadd.s32 %v4246, %v4252
  %vm4255 = vc.u32 %v4253, %v4249
  %v4256 = vsel %vm4255, 1, 0
  %v4257 = vadd.s32 %v4253, %v4249
  %v4258 = vadd.s32 %v4254, %v4256
  %v4259 = vadd.s32 %v4258, %v4248
  %v4260 = vadd.s32 %v4259, %v4250
  %v4261 = vand.u32 %v4238, 65535
  %v4262 = vshrl.u32 %v4238, 16
  %v4263 = vand.u32 %v4233, 65535
  %v4264 = vshrl.u32 %v4233, 16
  %v4265 = vmul.u32 %v4261, %v4263
  %v4266 = vmul.u32 %v4261, %v4264
  %v4267 = vmul.u32 %v4262, %v4263
  %v4268 = vmul.u32 %v4262, %v4264
  %v4269 = vshll.u32 %v4266, 16
  %v4270 = vshrl.u32 %v4266, 16
  %v4271 = vshll.u32 %v4267, 16
  %v4272 = vshrl.u32 %v4267, 16
  %vm4273 = vc.u32 %v4265, %v4269
  %v4274 = vsel %vm4273, 1, 0
  %v4275 = vadd.s32 %v4265, %v4269
  %v4276 = vadd.s32 %v4268, %v4274
  %vm4277 = vc.u32 %v4275, %v4271
  %v4278 = vsel %vm4277, 1, 0
  %v4279 = vadd.s32 %v4275, %v4271
  %v4280 = vadd.s32 %v4276, %v4278
  %v4281 = vadd.s32 %v4280, %v4270
  %v4282 = vadd.s32 %v4281, %v4272
  %v4283 = vmul.u32 %v4238, %v4229
  %v4284 = vadd.s32 %v4260, %v4279
  %vm4285 = vc.u32 %v4260, %v4279
  %v4286 = vadd.s32 %v4282, 1
  %v4287 = vsel %vm4285, %v4286, %v4282
  %v4288 = vadd.s32 %v4283, %v4287
  %v4289 = vadd.s32 %v4288, 536870912
  %v4290 = vshrl.u32 %v4289, 30
  %v4291 = vshll.u32 %v4290, 30
  %v4292 = vsub.s32 %v4288, %v4291
  %vm4293 = vcmp.lt.s32.totalorder %v4292, 0
  %v4294 = vsub.s32 0, %v4292
  %v4295 = vsel %vm4293, %v4294, %v4292
  %v4296 = vclz %v4295
  %v4297 = vsub.s32 %v4296, 2
  %vm4298 = vcmp.gt.s32.totalorder 0, %v4297
  %v4299 = vsel %vm4298, 0, %v4297
  %v4300 = vsub.s32 32, %v4299
  %v4301 = vshll.u32 %v4292, %v4299
  %v4302 = vshrl.u32 %v4284, %v4300
  %v4303 = vor.u32 %v4301, %v4302
  %v4304 = vsub.s32 4294967266, %v4299
  %v4305 = vadd.s32 %v4304, 127
  %v4306 = vshll.u32 %v4305, 23
  %v4307 = vor.u32 4788187, %v4306
  %v4308 = vand.u32 2147483647, %v4307
  %v4310 = vcvt.s32.f32 %v4303
  %v4311 = vmul.f32 %v4310, %v4308
  %v4312 = vxor.u32 %v4311, 2147483648
  %v4313 = vsel %vm4192, %v4312, %v4311
  %v4314 = vsub.s32 4, %v4290
  %v4315 = vsel %vm4192, %v4314, %v4290
  %v4316 = vsel %vm4191, %v486, %v4313
  %v4317 = vsel %vm4191, 0, %v4315
  %v4318 = vmul.f32 %v4316, %v4316
  %v4319 = vmul.f32 %v4318, -0.001358992
  %v4320 = vadd.f32 %v4319, 0.041655596
  %v4321 = vmul.f32 %v4318, %v4320
  %v4322 = vadd.f32 %v4321, -0.4999988
  %v4323 = vmul.f32 %v4318, %v4322
  %v4324 = vadd.f32 1.0, %v4323
  %v4325 = vmul.f32 %v4316, %v4316
  %v4326 = vmul.f32 %v4325, -0.00019511016
  %v4327 = vadd.f32 %v4326, 0.008332121
  %v4328 = vmul.f32 %v4325, %v4327
  %v4329 = vadd.f32 %v4328, -0.16666654
  %v4330 = vmul.f32 %v4325, %v4329
  %v4331 = vadd.f32 %v4330, 1.0
  %v4332 = vmul.f32 %v4331, %v4316
  %vm4333 = vweird.f32 %v486
  %v4334 = vand.u32 %v4317, 3
  %vm4335 = vcmp.lt.s32.totalorder %v4334, 2
  %vm4336 = vcmp.eq.s32.totalorder %v4334, 0
  %v4337 = vxor.u32 %v4332, 2147483648
  %v4338 = vsel %vm4336, %v4324, %v4337
  %vm4339 = vcmp.eq.s32.totalorder %v4334, 2
  %v4340 = vxor.u32 %v4324, 2147483648
  %v4341 = vsel %vm4339, %v4340, %v4332
  %v4342 = vsel %vm4335, %v4338, %v4341
  %v4343 = vsel %vm4333, nan, %v4342
  %v4344 = vand.u32 2147483647, %v487
  %vm4345 = vcmp.le.f32.partialorder %v4344, 0.7853982
  %vm4346 = vcmp.lt.s32.totalorder %v487, 0
  %v4347 = vand.u32 %v487, 2139095040
  %v4348 = vshrl.u32 %v4347, 23
  %v4349 = vsub.s32 %v4348, 127
  %v4350 = vand.u32 2147483647, %v487
  %v4351 = vand.u32 %v4350, 8388607
  %v4352 = vor.u32 %v4351, 8388608
  %v4353 = vsub.s32 0, %v4352
  %v4354 = vadd.s32 %v4349, 1
  %vm4355 = vcmp.gt.s32.totalorder %v4354, 0
  %v4356 = vsel %vm4355, %v4354, 0
  %v4357 = vshrl.u32 %v4356, 5
  %v4358 = vand.u32 %v4356, 31
  %v4359 = vsub.s32 32, %v4358
  %v4360 = vshrl.u32 683565275, %v4359
  %v4361 = vshll.u32 683565275, %v4358
  %v4362 = vshrl.u32 2475754826, %v4359
  %v4363 = vor.u32 %v4361, %v4362
  %v4364 = vshll.u32 2475754826, %v4358
  %v4365 = vshrl.u32 2131351028, %v4359
  %v4366 = vor.u32 %v4364, %v4365
  %v4367 = vshll.u32 2131351028, %v4358
  %v4368 = vshrl.u32 2102212464, %v4359
  %v4369 = vor.u32 %v4367, %v4368
  %v4370 = vshll.u32 2102212464, %v4358
  %v4371 = vshrl.u32 920167782, %v4359
  %v4372 = vor.u32 %v4370, %v4371
  %v4373 = vshll.u32 920167782, %v4358
  %v4374 = vshrl.u32 1326507024, %v4359
  %v4375 = vor.u32 %v4373, %v4374
  %vm4376 = vcmp.lt.s32.totalorder %v4357, 1
  %vm4377 = vcmp.lt.s32.totalorder %v4357, 2
  %vm4378 = vcmp.lt.s32.totalorder %v4357, 3
  %vm4379 = vcmp.lt.s32.totalorder %v4357, 4
  %v4380 = vsel %vm4376, %v4360, %v4363
  %v4381 = vsel %vm4379, %v4369, 2102212464
  %v4382 = vsel %vm4378, %v4366, %v4381
  %v4383 = vsel %vm4377, %v4380, %v4382
  %v4384 = vsel %vm4376, %v4363, %v4366
  %v4385 = vsel %vm4379, %v4372, 920167782
  %v4386 = vsel %vm4378, %v4369, %v4385
  %v4387 = vsel %vm4377, %v4384, %v4386
  %v4388 = vsel %vm4376, %v4366, %v4369
  %v4389 = vsel %vm4379, %v4375, 1326507024
  %v4390 = vsel %vm4378, %v4372, %v4389
  %v4391 = vsel %vm4377, %v4388, %v4390
  %v4392 = vshll.u32 %v4352, 8
  %v4393 = vand.u32 %v4392, 65535
  %v4394 = vshrl.u32 %v4392, 16
  %v4395 = vand.u32 %v4391, 65535
  %v4396 = vshrl.u32 %v4391, 16
  %v4397 = vmul.u32 %v4393, %v4395
  %v4398 = vmul.u32 %v4393, %v4396
  %v4399 = vmul.u32 %v4394, %v4395
  %v4400 = vmul.u32 %v4394, %v4396
  %v4401 = vshll.u32 %v4398, 16
  %v4402 = vshrl.u32 %v4398, 16
  %v4403 = vshll.u32 %v4399, 16
  %v4404 = vshrl.u32 %v4399, 16
  %vm4405 = vc.u32 %v4397, %v4401
  %v4406 = vsel %vm4405, 1, 0
  %v4407 = vadd.s32 %v4397, %v4401
  %v4408 = vadd.s32 %v4400, %v4406
  %vm4409 = vc.u32 %v4407, %v4403
  %v4410 = vsel %vm4409, 1, 0
  %v4411 = vadd.s32 %v4407, %v4403
  %v4412 = vadd.s32 %v4408, %v4410
  %v4413 = vadd.s32 %v4412, %v4402
  %v4414 = vadd.s32 %v4413, %v4404
  %v4415 = vand.u32 %v4392, 65535
  %v4416 = vshrl.u32 %v4392, 16
  %v4417 = vand.u32 %v4387, 65535
  %v4418 = vshrl.u32 %v4387, 16
  %v4419 = vmul.u32 %v4415, %v4417
  %v4420 = vmul.u32 %v4415, %v4418
  %v4421 = vmul.u32 %v4416, %v4417
  %v4422 = vmul.u32 %v4416, %v4418
  %v4423 = vshll.u32 %v4420, 16
  %v4424 = vshrl.u32 %v4420, 16
  %v4425 = vshll.u32 %v4421, 16
  %v4426 = vshrl.u32 %v4421, 16
  %vm4427 = vc.u32 %v4419, %v4423
  %v4428 = vsel %vm4427, 1, 0
  %v4429 = vadd.s32 %v4419, %v4423
  %v4430 = vadd.s32 %v4422, %v4428
  %vm4431 = vc.u32 %v4429, %v4425
  %v4432 = vsel %vm4431, 1, 0
  %v4433 = vadd.s32 %v4429, %v4425
  %v4434 = vadd.s32 %v4430, %v4432
  %v4435 = vadd.s32 %v4434, %v4424
  %v4436 = vadd.s32 %v4435, %v4426
  %v4437 = vmul.u32 %v4392, %v4383
  %v4438 = vadd.s32 %v4414, %v4433
  %vm4439 = vc.u32 %v4414, %v4433
  %v4440 = vadd.s32 %v4436, 1
  %v4441 = vsel %vm4439, %v4440, %v4436
  %v4442 = vadd.s32 %v4437, %v4441
  %v4443 = vadd.s32 %v4442, 536870912
  %v4444 = vshrl.u32 %v4443, 30
  %v4445 = vshll.u32 %v4444, 30
  %v4446 = vsub.s32 %v4442, %v4445
  %vm4447 = vcmp.lt.s32.totalorder %v4446, 0
  %v4448 = vsub.s32 0, %v4446
  %v4449 = vsel %vm4447, %v4448, %v4446
  %v4450 = vclz %v4449
  %v4451 = vsub.s32 %v4450, 2
  %vm4452 = vcmp.gt.s32.totalorder 0, %v4451
  %v4453 = vsel %vm4452, 0, %v4451
  %v4454 = vsub.s32 32, %v4453
  %v4455 = vshll.u32 %v4446, %v4453
  %v4456 = vshrl.u32 %v4438, %v4454
  %v4457 = vor.u32 %v4455, %v4456
  %v4458 = vsub.s32 4294967266, %v4453
  %v4459 = vadd.s32 %v4458, 127
  %v4460 = vshll.u32 %v4459, 23
  %v4461 = vor.u32 4788187, %v4460
  %v4462 = vand.u32 2147483647, %v4461
  %v4464 = vcvt.s32.f32 %v4457
  %v4465 = vmul.f32 %v4464, %v4462
  %v4466 = vxor.u32 %v4465, 2147483648
  %v4467 = vsel %vm4346, %v4466, %v4465
  %v4468 = vsub.s32 4, %v4444
  %v4469 = vsel %vm4346, %v4468, %v4444
  %v4470 = vsel %vm4345, %v487, %v4467
  %v4471 = vsel %vm4345, 0, %v4469
  %v4472 = vmul.f32 %v4470, %v4470
  %v4473 = vmul.f32 %v4472, -0.001358992
  %v4474 = vadd.f32 %v4473, 0.041655596
  %v4475 = vmul.f32 %v4472, %v4474
  %v4476 = vadd.f32 %v4475, -0.4999988
  %v4477 = vmul.f32 %v4472, %v4476
  %v4478 = vadd.f32 1.0, %v4477
  %v4479 = vmul.f32 %v4470, %v4470
  %v4480 = vmul.f32 %v4479, -0.00019511016
  %v4481 = vadd.f32 %v4480, 0.008332121
  %v4482 = vmul.f32 %v4479, %v4481
  %v4483 = vadd.f32 %v4482, -0.16666654
  %v4484 = vmul.f32 %v4479, %v4483
  %v4485 = vadd.f32 %v4484, 1.0
  %v4486 = vmul.f32 %v4485, %v4470
  %vm4487 = vweird.f32 %v487
  %v4488 = vand.u32 %v4471, 3
  %vm4489 = vcmp.lt.s32.totalorder %v4488, 2
  %vm4490 = vcmp.eq.s32.totalorder %v4488, 0
  %v4491 = vxor.u32 %v4486, 2147483648
  %v4492 = vsel %vm4490, %v4478, %v4491
  %vm4493 = vcmp.eq.s32.totalorder %v4488, 2
  %v4494 = vxor.u32 %v4478, 2147483648
  %v4495 = vsel %vm4493, %v4494, %v4486
  %v4496 = vsel %vm4489, %v4492, %v4495
  %v4497 = vsel %vm4487, nan, %v4496
  %v4498 = vand.u32 2147483647, %v488
  %vm4499 = vcmp.le.f32.partialorder %v4498, 0.7853982
  %vm4500 = vcmp.lt.s32.totalorder %v488, 0
  %v4501 = vand.u32 %v488, 2139095040
  %v4502 = vshrl.u32 %v4501, 23
  %v4503 = vsub.s32 %v4502, 127
  %v4504 = vand.u32 2147483647, %v488
  %v4505 = vand.u32 %v4504, 8388607
  %v4506 = vor.u32 %v4505, 8388608
  %v4507 = vsub.s32 0, %v4506
  %v4508 = vadd.s32 %v4503, 1
  %vm4509 = vcmp.gt.s32.totalorder %v4508, 0
  %v4510 = vsel %vm4509, %v4508, 0
  %v4511 = vshrl.u32 %v4510, 5
  %v4512 = vand.u32 %v4510, 31
  %v4513 = vsub.s32 32, %v4512
  %v4514 = vshrl.u32 683565275, %v4513
  %v4515 = vshll.u32 683565275, %v4512
  %v4516 = vshrl.u32 2475754826, %v4513
  %v4517 = vor.u32 %v4515, %v4516
  %v4518 = vshll.u32 2475754826, %v4512
  %v4519 = vshrl.u32 2131351028, %v4513
  %v4520 = vor.u32 %v4518, %v4519
  %v4521 = vshll.u32 2131351028, %v4512
  %v4522 = vshrl.u32 2102212464, %v4513
  %v4523 = vor.u32 %v4521, %v4522
  %v4524 = vshll.u32 2102212464, %v4512
  %v4525 = vshrl.u32 920167782, %v4513
  %v4526 = vor.u32 %v4524, %v4525
  %v4527 = vshll.u32 920167782, %v4512
  %v4528 = vshrl.u32 1326507024, %v4513
  %v4529 = vor.u32 %v4527, %v4528
  %vm4530 = vcmp.lt.s32.totalorder %v4511, 1
  %vm4531 = vcmp.lt.s32.totalorder %v4511, 2
  %vm4532 = vcmp.lt.s32.totalorder %v4511, 3
  %vm4533 = vcmp.lt.s32.totalorder %v4511, 4
  %v4534 = vsel %vm4530, %v4514, %v4517
  %v4535 = vsel %vm4533, %v4523, 2102212464
  %v4536 = vsel %vm4532, %v4520, %v4535
  %v4537 = vsel %vm4531, %v4534, %v4536
  %v4538 = vsel %vm4530, %v4517, %v4520
  %v4539 = vsel %vm4533, %v4526, 920167782
  %v4540 = vsel %vm4532, %v4523, %v4539
  %v4541 = vsel %vm4531, %v4538, %v4540
  %v4542 = vsel %vm4530, %v4520, %v4523
  %v4543 = vsel %vm4533, %v4529, 1326507024
  %v4544 = vsel %vm4532, %v4526, %v4543
  %v4545 = vsel %vm4531, %v4542, %v4544
  %v4546 = vshll.u32 %v4506, 8
  %v4547 = vand.u32 %v4546, 65535
  %v4548 = vshrl.u32 %v4546, 16
  %v4549 = vand.u32 %v4545, 65535
  %v4550 = vshrl.u32 %v4545, 16
  %v4551 = vmul.u32 %v4547, %v4549
  %v4552 = vmul.u32 %v4547, %v4550
  %v4553 = vmul.u32 %v4548, %v4549
  %v4554 = vmul.u32 %v4548, %v4550
  %v4555 = vshll.u32 %v4552, 16
  %v4556 = vshrl.u32 %v4552, 16
  %v4557 = vshll.u32 %v4553, 16
  %v4558 = vshrl.u32 %v4553, 16
  %vm4559 = vc.u32 %v4551, %v4555
  %v4560 = vsel %vm4559, 1, 0
  %v4561 = vadd.s32 %v4551, %v4555
  %v4562 = vadd.s32 %v4554, %v4560
  %vm4563 = vc.u32 %v4561, %v4557
  %v4564 = vsel %vm4563, 1, 0
  %v4565 = vadd.s32 %v4561, %v4557
  %v4566 = vadd.s32 %v4562, %v4564
  %v4567 = vadd.s32 %v4566, %v4556
  %v4568 = vadd.s32 %v4567, %v4558
  %v4569 = vand.u32 %v4546, 65535
  %v4570 = vshrl.u32 %v4546, 16
  %v4571 = vand.u32 %v4541, 65535
  %v4572 = vshrl.u32 %v4541, 16
  %v4573 = vmul.u32 %v4569, %v4571
  %v4574 = vmul.u32 %v4569, %v4572
  %v4575 = vmul.u32 %v4570, %v4571
  %v4576 = vmul.u32 %v4570, %v4572
  %v4577 = vshll.u32 %v4574, 16
  %v4578 = vshrl.u32 %v4574, 16
  %v4579 = vshll.u32 %v4575, 16
  %v4580 = vshrl.u32 %v4575, 16
  %vm4581 = vc.u32 %v4573, %v4577
  %v4582 = vsel %vm4581, 1, 0
  %v4583 = vadd.s32 %v4573, %v4577
  %v4584 = vadd.s32 %v4576, %v4582
  %vm4585 = vc.u32 %v4583, %v4579
  %v4586 = vsel %vm4585, 1, 0
  %v4587 = vadd.s32 %v4583, %v4579
  %v4588 = vadd.s32 %v4584, %v4586
  %v4589 = vadd.s32 %v4588, %v4578
  %v4590 = vadd.s32 %v4589, %v4580
  %v4591 = vmul.u32 %v4546, %v4537
  %v4592 = vadd.s32 %v4568, %v4587
  %vm4593 = vc.u32 %v4568, %v4587
  %v4594 = vadd.s32 %v4590, 1
  %v4595 = vsel %vm4593, %v4594, %v4590
  %v4596 = vadd.s32 %v4591, %v4595
  %v4597 = vadd.s32 %v4596, 536870912
  %v4598 = vshrl.u32 %v4597, 30
  %v4599 = vshll.u32 %v4598, 30
  %v4600 = vsub.s32 %v4596, %v4599
  %vm4601 = vcmp.lt.s32.totalorder %v4600, 0
  %v4602 = vsub.s32 0, %v4600
  %v4603 = vsel %vm4601, %v4602, %v4600
  %v4604 = vclz %v4603
  %v4605 = vsub.s32 %v4604, 2
  %vm4606 = vcmp.gt.s32.totalorder 0, %v4605
  %v4607 = vsel %vm4606, 0, %v4605
  %v4608 = vsub.s32 32, %v4607
  %v4609 = vshll.u32 %v4600, %v4607
  %v4610 = vshrl.u32 %v4592, %v4608
  %v4611 = vor.u32 %v4609, %v4610
  %v4612 = vsub.s32 4294967266, %v4607
  %v4613 = vadd.s32 %v4612, 127
  %v4614 = vshll.u32 %v4613, 23
  %v4615 = vor.u32 4788187, %v4614
  %v4616 = vand.u32 2147483647, %v4615
  %v4618 = vcvt.s32.f32 %v4611
  %v4619 = vmul.f32 %v4618, %v4616
  %v4620 = vxor.u32 %v4619, 2147483648
  %v4621 = vsel %vm4500, %v4620, %v4619
  %v4622 = vsub.s32 4, %v4598
  %v4623 = vsel %vm4500, %v4622, %v4598
  %v4624 = vsel %vm4499, %v488, %v4621
  %v4625 = vsel %vm4499, 0, %v4623
  %v4626 = vmul.f32 %v4624, %v4624
  %v4627 = vmul.f32 %v4626, -0.001358992
  %v4628 = vadd.f32 %v4627, 0.041655596
  %v4629 = vmul.f32 %v4626, %v4628
  %v4630 = vadd.f32 %v4629, -0.4999988
  %v4631 = vmul.f32 %v4626, %v4630
  %v4632 = vadd.f32 1.0, %v4631
  %v4633 = vmul.f32 %v4624, %v4624
  %v4634 = vmul.f32 %v4633, -0.00019511016
  %v4635 = vadd.f32 %v4634, 0.008332121
  %v4636 = vmul.f32 %v4633, %v4635
  %v4637 = vadd.f32 %v4636, -0.16666654
  %v4638 = vmul.f32 %v4633, %v4637
  %v4639 = vadd.f32 %v4638, 1.0
  %v4640 = vmul.f32 %v4639, %v4624
  %vm4641 = vweird.f32 %v488
  %v4642 = vand.u32 %v4625, 3
  %vm4643 = vcmp.lt.s32.totalorder %v4642, 2
  %vm4644 = vcmp.eq.s32.totalorder %v4642, 0
  %v4645 = vxor.u32 %v4640, 2147483648
  %v4646 = vsel %vm4644, %v4632, %v4645
  %vm4647 = vcmp.eq.s32.totalorder %v4642, 2
  %v4648 = vxor.u32 %v4632, 2147483648
  %v4649 = vsel %vm4647, %v4648, %v4640
  %v4650 = vsel %vm4643, %v4646, %v4649
  %v4651 = vsel %vm4641, nan, %v4650
  %v4652 = vand.u32 2147483647, %v489
  %vm4653 = vcmp.le.f32.partialorder %v4652, 0.7853982
  %vm4654 = vcmp.lt.s32.totalorder %v489, 0
  %v4655 = vand.u32 %v489, 2139095040
  %v4656 = vshrl.u32 %v4655, 23
  %v4657 = vsub.s32 %v4656, 127
  %v4658 = vand.u32 2147483647, %v489
  %v4659 = vand.u32 %v4658, 8388607
  %v4660 = vor.u32 %v4659, 8388608
  %v4661 = vsub.s32 0, %v4660
  %v4662 = vadd.s32 %v4657, 1
  %vm4663 = vcmp.gt.s32.totalorder %v4662, 0
  %v4664 = vsel %vm4663, %v4662, 0
  %v4665 = vshrl.u32 %v4664, 5
  %v4666 = vand.u32 %v4664, 31
  %v4667 = vsub.s32 32, %v4666
  %v4668 = vshrl.u32 683565275, %v4667
  %v4669 = vshll.u32 683565275, %v4666
  %v4670 = vshrl.u32 2475754826, %v4667
  %v4671 = vor.u32 %v4669, %v4670
  %v4672 = vshll.u32 2475754826, %v4666
  %v4673 = vshrl.u32 2131351028, %v4667
  %v4674 = vor.u32 %v4672, %v4673
  %v4675 = vshll.u32 2131351028, %v4666
  %v4676 = vshrl.u32 2102212464, %v4667
  %v4677 = vor.u32 %v4675, %v4676
  %v4678 = vshll.u32 2102212464, %v4666
  %v4679 = vshrl.u32 920167782, %v4667
  %v4680 = vor.u32 %v4678, %v4679
  %v4681 = vshll.u32 920167782, %v4666
  %v4682 = vshrl.u32 1326507024, %v4667
  %v4683 = vor.u32 %v4681, %v4682
  %vm4684 = vcmp.lt.s32.totalorder %v4665, 1
  %vm4685 = vcmp.lt.s32.totalorder %v4665, 2
  %vm4686 = vcmp.lt.s32.totalorder %v4665, 3
  %vm4687 = vcmp.lt.s32.totalorder %v4665, 4
  %v4688 = vsel %vm4684, %v4668, %v4671
  %v4689 = vsel %vm4687, %v4677, 2102212464
  %v4690 = vsel %vm4686, %v4674, %v4689
  %v4691 = vsel %vm4685, %v4688, %v4690
  %v4692 = vsel %vm4684, %v4671, %v4674
  %v4693 = vsel %vm4687, %v4680, 920167782
  %v4694 = vsel %vm4686, %v4677, %v4693
  %v4695 = vsel %vm4685, %v4692, %v4694
  %v4696 = vsel %vm4684, %v4674, %v4677
  %v4697 = vsel %vm4687, %v4683, 1326507024
  %v4698 = vsel %vm4686, %v4680, %v4697
  %v4699 = vsel %vm4685, %v4696, %v4698
  %v4700 = vshll.u32 %v4660, 8
  %v4701 = vand.u32 %v4700, 65535
  %v4702 = vshrl.u32 %v4700, 16
  %v4703 = vand.u32 %v4699, 65535
  %v4704 = vshrl.u32 %v4699, 16
  %v4705 = vmul.u32 %v4701, %v4703
  %v4706 = vmul.u32 %v4701, %v4704
  %v4707 = vmul.u32 %v4702, %v4703
  %v4708 = vmul.u32 %v4702, %v4704
  %v4709 = vshll.u32 %v4706, 16
  %v4710 = vshrl.u32 %v4706, 16
  %v4711 = vshll.u32 %v4707, 16
  %v4712 = vshrl.u32 %v4707, 16
  %vm4713 = vc.u32 %v4705, %v4709
  %v4714 = vsel %vm4713, 1, 0
  %v4715 = vadd.s32 %v4705, %v4709
  %v4716 = vadd.s32 %v4708, %v4714
  %vm4717 = vc.u32 %v4715, %v4711
  %v4718 = vsel %vm4717, 1, 0
  %v4719 = vadd.s32 %v4715, %v4711
  %v4720 = vadd.s32 %v4716, %v4718
  %v4721 = vadd.s32 %v4720, %v4710
  %v4722 = vadd.s32 %v4721, %v4712
  %v4723 = vand.u32 %v4700, 65535
  %v4724 = vshrl.u32 %v4700, 16
  %v4725 = vand.u32 %v4695, 65535
  %v4726 = vshrl.u32 %v4695, 16
  %v4727 = vmul.u32 %v4723, %v4725
  %v4728 = vmul.u32 %v4723, %v4726
  %v4729 = vmul.u32 %v4724, %v4725
  %v4730 = vmul.u32 %v4724, %v4726
  %v4731 = vshll.u32 %v4728, 16
  %v4732 = vshrl.u32 %v4728, 16
  %v4733 = vshll.u32 %v4729, 16
  %v4734 = vshrl.u32 %v4729, 16
  %vm4735 = vc.u32 %v4727, %v4731
  %v4736 = vsel %vm4735, 1, 0
  %v4737 = vadd.s32 %v4727, %v4731
  %v4738 = vadd.s32 %v4730, %v4736
  %vm4739 = vc.u32 %v4737, %v4733
  %v4740 = vsel %vm4739, 1, 0
  %v4741 = vadd.s32 %v4737, %v4733
  %v4742 = vadd.s32 %v4738, %v4740
  %v4743 = vadd.s32 %v4742, %v4732
  %v4744 = vadd.s32 %v4743, %v4734
  %v4745 = vmul.u32 %v4700, %v4691
  %v4746 = vadd.s32 %v4722, %v4741
  %vm4747 = vc.u32 %v4722, %v4741
  %v4748 = vadd.s32 %v4744, 1
  %v4749 = vsel %vm4747, %v4748, %v4744
  %v4750 = vadd.s32 %v4745, %v4749
  %v4751 = vadd.s32 %v4750, 536870912
  %v4752 = vshrl.u32 %v4751, 30
  %v4753 = vshll.u32 %v4752, 30
  %v4754 = vsub.s32 %v4750, %v4753
  %vm4755 = vcmp.lt.s32.totalorder %v4754, 0
  %v4756 = vsub.s32 0, %v4754
  %v4757 = vsel %vm4755, %v4756, %v4754
  %v4758 = vclz %v4757
  %v4759 = vsub.s32 %v4758, 2
  %vm4760 = vcmp.gt.s32.totalorder 0, %v4759
  %v4761 = vsel %vm4760, 0, %v4759
  %v4762 = vsub.s32 32, %v4761
  %v4763 = vshll.u32 %v4754, %v4761
  %v4764 = vshrl.u32 %v4746, %v4762
  %v4765 = vor.u32 %v4763, %v4764
  %v4766 = vsub.s32 4294967266, %v4761
  %v4767 = vadd.s32 %v4766, 127
  %v4768 = vshll.u32 %v4767, 23
  %v4769 = vor.u32 4788187, %v4768
  %v4770 = vand.u32 2147483647, %v4769
  %v4772 = vcvt.s32.f32 %v4765
  %v4773 = vmul.f32 %v4772, %v4770
  %v4774 = vxor.u32 %v4773, 2147483648
  %v4775 = vsel %vm4654, %v4774, %v4773
  %v4776 = vsub.s32 4, %v4752
  %v4777 = vsel %vm4654, %v4776, %v4752
  %v4778 = vsel %vm4653, %v489, %v4775
  %v4779 = vsel %vm4653, 0, %v4777
  %v4780 = vmul.f32 %v4778, %v4778
  %v4781 = vmul.f32 %v4780, -0.001358992
  %v4782 = vadd.f32 %v4781, 0.041655596
  %v4783 = vmul.f32 %v4780, %v4782
  %v4784 = vadd.f32 %v4783, -0.4999988
  %v4785 = vmul.f32 %v4780, %v4784
  %v4786 = vadd.f32 1.0, %v4785
  %v4787 = vmul.f32 %v4778, %v4778
  %v4788 = vmul.f32 %v4787, -0.00019511016
  %v4789 = vadd.f32 %v4788, 0.008332121
  %v4790 = vmul.f32 %v4787, %v4789
  %v4791 = vadd.f32 %v4790, -0.16666654
  %v4792 = vmul.f32 %v4787, %v4791
  %v4793 = vadd.f32 %v4792, 1.0
  %v4794 = vmul.f32 %v4793, %v4778
  %vm4795 = vweird.f32 %v489
  %v4796 = vand.u32 %v4779, 3
  %vm4797 = vcmp.lt.s32.totalorder %v4796, 2
  %vm4798 = vcmp.eq.s32.totalorder %v4796, 0
  %v4799 = vxor.u32 %v4794, 2147483648
  %v4800 = vsel %vm4798, %v4786, %v4799
  %vm4801 = vcmp.eq.s32.totalorder %v4796, 2
  %v4802 = vxor.u32 %v4786, 2147483648
  %v4803 = vsel %vm4801, %v4802, %v4794
  %v4804 = vsel %vm4797, %v4800, %v4803
  %v4805 = vsel %vm4795, nan, %v4804
  %v4806 = vand.u32 2147483647, %v490
  %vm4807 = vcmp.le.f32.partialorder %v4806, 0.7853982
  %vm4808 = vcmp.lt.s32.totalorder %v490, 0
  %v4809 = vand.u32 %v490, 2139095040
  %v4810 = vshrl.u32 %v4809, 23
  %v4811 = vsub.s32 %v4810, 127
  %v4812 = vand.u32 2147483647, %v490
  %v4813 = vand.u32 %v4812, 8388607
  %v4814 = vor.u32 %v4813, 8388608
  %v4815 = vsub.s32 0, %v4814
  %v4816 = vadd.s32 %v4811, 1
  %vm4817 = vcmp.gt.s32.totalorder %v4816, 0
  %v4818 = vsel %vm4817, %v4816, 0
  %v4819 = vshrl.u32 %v4818, 5
  %v4820 = vand.u32 %v4818, 31
  %v4821 = vsub.s32 32, %v4820
  %v4822 = vshrl.u32 683565275, %v4821
  %v4823 = vshll.u32 683565275, %v4820
  %v4824 = vshrl.u32 2475754826, %v4821
  %v4825 = vor.u32 %v4823, %v4824
  %v4826 = vshll.u32 2475754826, %v4820
  %v4827 = vshrl.u32 2131351028, %v4821
  %v4828 = vor.u32 %v4826, %v4827
  %v4829 = vshll.u32 2131351028, %v4820
  %v4830 = vshrl.u32 2102212464, %v4821
  %v4831 = vor.u32 %v4829, %v4830
  %v4832 = vshll.u32 2102212464, %v4820
  %v4833 = vshrl.u32 920167782, %v4821
  %v4834 = vor.u32 %v4832, %v4833
  %v4835 = vshll.u32 920167782, %v4820
  %v4836 = vshrl.u32 1326507024, %v4821
  %v4837 = vor.u32 %v4835, %v4836
  %vm4838 = vcmp.lt.s32.totalorder %v4819, 1
  %vm4839 = vcmp.lt.s32.totalorder %v4819, 2
  %vm4840 = vcmp.lt.s32.totalorder %v4819, 3
  %vm4841 = vcmp.lt.s32.totalorder %v4819, 4
  %v4842 = vsel %vm4838, %v4822, %v4825
  %v4843 = vsel %vm4841, %v4831, 2102212464
  %v4844 = vsel %vm4840, %v4828, %v4843
  %v4845 = vsel %vm4839, %v4842, %v4844
  %v4846 = vsel %vm4838, %v4825, %v4828
  %v4847 = vsel %vm4841, %v4834, 920167782
  %v4848 = vsel %vm4840, %v4831, %v4847
  %v4849 = vsel %vm4839, %v4846, %v4848
  %v4850 = vsel %vm4838, %v4828, %v4831
  %v4851 = vsel %vm4841, %v4837, 1326507024
  %v4852 = vsel %vm4840, %v4834, %v4851
  %v4853 = vsel %vm4839, %v4850, %v4852
  %v4854 = vshll.u32 %v4814, 8
  %v4855 = vand.u32 %v4854, 65535
  %v4856 = vshrl.u32 %v4854, 16
  %v4857 = vand.u32 %v4853, 65535
  %v4858 = vshrl.u32 %v4853, 16
  %v4859 = vmul.u32 %v4855, %v4857
  %v4860 = vmul.u32 %v4855, %v4858
  %v4861 = vmul.u32 %v4856, %v4857
  %v4862 = vmul.u32 %v4856, %v4858
  %v4863 = vshll.u32 %v4860, 16
  %v4864 = vshrl.u32 %v4860, 16
  %v4865 = vshll.u32 %v4861, 16
  %v4866 = vshrl.u32 %v4861, 16
  %vm4867 = vc.u32 %v4859, %v4863
  %v4868 = vsel %vm4867, 1, 0
  %v4869 = vadd.s32 %v4859, %v4863
  %v4870 = vadd.s32 %v4862, %v4868
  %vm4871 = vc.u32 %v4869, %v4865
  %v4872 = vsel %vm4871, 1, 0
  %v4873 = vadd.s32 %v4869, %v4865
  %v4874 = vadd.s32 %v4870, %v4872
  %v4875 = vadd.s32 %v4874, %v4864
  %v4876 = vadd.s32 %v4875, %v4866
  %v4877 = vand.u32 %v4854, 65535
  %v4878 = vshrl.u32 %v4854, 16
  %v4879 = vand.u32 %v4849, 65535
  %v4880 = vshrl.u32 %v4849, 16
  %v4881 = vmul.u32 %v4877, %v4879
  %v4882 = vmul.u32 %v4877, %v4880
  %v4883 = vmul.u32 %v4878, %v4879
  %v4884 = vmul.u32 %v4878, %v4880
  %v4885 = vshll.u32 %v4882, 16
  %v4886 = vshrl.u32 %v4882, 16
  %v4887 = vshll.u32 %v4883, 16
  %v4888 = vshrl.u32 %v4883, 16
  %vm4889 = vc.u32 %v4881, %v4885
  %v4890 = vsel %vm4889, 1, 0
  %v4891 = vadd.s32 %v4881, %v4885
  %v4892 = vadd.s32 %v4884, %v4890
  %vm4893 = vc.u32 %v4891, %v4887
  %v4894 = vsel %vm4893, 1, 0
  %v4895 = vadd.s32 %v4891, %v4887
  %v4896 = vadd.s32 %v4892, %v4894
  %v4897 = vadd.s32 %v4896, %v4886
  %v4898 = vadd.s32 %v4897, %v4888
  %v4899 = vmul.u32 %v4854, %v4845
  %v4900 = vadd.s32 %v4876, %v4895
  %vm4901 = vc.u32 %v4876, %v4895
  %v4902 = vadd.s32 %v4898, 1
  %v4903 = vsel %vm4901, %v4902, %v4898
  %v4904 = vadd.s32 %v4899, %v4903
  %v4905 = vadd.s32 %v4904, 536870912
  %v4906 = vshrl.u32 %v4905, 30
  %v4907 = vshll.u32 %v4906, 30
  %v4908 = vsub.s32 %v4904, %v4907
  %vm4909 = vcmp.lt.s32.totalorder %v4908, 0
  %v4910 = vsub.s32 0, %v4908
  %v4911 = vsel %vm4909, %v4910, %v4908
  %v4912 = vclz %v4911
  %v4913 = vsub.s32 %v4912, 2
  %vm4914 = vcmp.gt.s32.totalorder 0, %v4913
  %v4915 = vsel %vm4914, 0, %v4913
  %v4916 = vsub.s32 32, %v4915
  %v4917 = vshll.u32 %v4908, %v4915
  %v4918 = vshrl.u32 %v4900, %v4916
  %v4919 = vor.u32 %v4917, %v4918
  %v4920 = vsub.s32 4294967266, %v4915
  %v4921 = vadd.s32 %v4920, 127
  %v4922 = vshll.u32 %v4921, 23
  %v4923 = vor.u32 4788187, %v4922
  %v4924 = vand.u32 2147483647, %v4923
  %v4926 = vcvt.s32.f32 %v4919
  %v4927 = vmul.f32 %v4926, %v4924
  %v4928 = vxor.u32 %v4927, 2147483648
  %v4929 = vsel %vm4808, %v4928, %v4927
  %v4930 = vsub.s32 4, %v4906
  %v4931 = vsel %vm4808, %v4930, %v4906
  %v4932 = vsel %vm4807, %v490, %v4929
  %v4933 = vsel %vm4807, 0, %v4931
  %v4934 = vmul.f32 %v4932, %v4932
  %v4935 = vmul.f32 %v4934, -0.001358992
  %v4936 = vadd.f32 %v4935, 0.041655596
  %v4937 = vmul.f32 %v4934, %v4936
  %v4938 = vadd.f32 %v4937, -0.4999988
  %v4939 = vmul.f32 %v4934, %v4938
  %v4940 = vadd.f32 1.0, %v4939
  %v4941 = vmul.f32 %v4932, %v4932
  %v4942 = vmul.f32 %v4941, -0.00019511016
  %v4943 = vadd.f32 %v4942, 0.008332121
  %v4944 = vmul.f32 %v4941, %v4943
  %v4945 = vadd.f32 %v4944, -0.16666654
  %v4946 = vmul.f32 %v4941, %v4945
  %v4947 = vadd.f32 %v4946, 1.0
  %v4948 = vmul.f32 %v4947, %v4932
  %vm4949 = vweird.f32 %v490
  %v4950 = vand.u32 %v4933, 3
  %vm4951 = vcmp.lt.s32.totalorder %v4950, 2
  %vm4952 = vcmp.eq.s32.totalorder %v4950, 0
  %v4953 = vxor.u32 %v4948, 2147483648
  %v4954 = vsel %vm4952, %v4940, %v4953
  %vm4955 = vcmp.eq.s32.totalorder %v4950, 2
  %v4956 = vxor.u32 %v4940, 2147483648
  %v4957 = vsel %vm4955, %v4956, %v4948
  %v4958 = vsel %vm4951, %v4954, %v4957
  %v4959 = vsel %vm4949, nan, %v4958
  %v4960 = vand.u32 2147483647, %v491
  %vm4961 = vcmp.le.f32.partialorder %v4960, 0.7853982
  %vm4962 = vcmp.lt.s32.totalorder %v491, 0
  %v4963 = vand.u32 %v491, 2139095040
  %v4964 = vshrl.u32 %v4963, 23
  %v4965 = vsub.s32 %v4964, 127
  %v4966 = vand.u32 2147483647, %v491
  %v4967 = vand.u32 %v4966, 8388607
  %v4968 = vor.u32 %v4967, 8388608
  %v4969 = vsub.s32 0, %v4968
  %v4970 = vadd.s32 %v4965, 1
  %vm4971 = vcmp.gt.s32.totalorder %v4970, 0
  %v4972 = vsel %vm4971, %v4970, 0
  %v4973 = vshrl.u32 %v4972, 5
  %v4974 = vand.u32 %v4972, 31
  %v4975 = vsub.s32 32, %v4974
  %v4976 = vshrl.u32 683565275, %v4975
  %v4977 = vshll.u32 683565275, %v4974
  %v4978 = vshrl.u32 2475754826, %v4975
  %v4979 = vor.u32 %v4977, %v4978
  %v4980 = vshll.u32 2475754826, %v4974
  %v4981 = vshrl.u32 2131351028, %v4975
  %v4982 = vor.u32 %v4980, %v4981
  %v4983 = vshll.u32 2131351028, %v4974
  %v4984 = vshrl.u32 2102212464, %v4975
  %v4985 = vor.u32 %v4983, %v4984
  %v4986 = vshll.u32 2102212464, %v4974
  %v4987 = vshrl.u32 920167782, %v4975
  %v4988 = vor.u32 %v4986, %v4987
  %v4989 = vshll.u32 920167782, %v4974
  %v4990 = vshrl.u32 1326507024, %v4975
  %v4991 = vor.u32 %v4989, %v4990
  %vm4992 = vcmp.lt.s32.totalorder %v4973, 1
  %vm4993 = vcmp.lt.s32.totalorder %v4973, 2
  %vm4994 = vcmp.lt.s32.totalorder %v4973, 3
  %vm4995 = vcmp.lt.s32.totalorder %v4973, 4
  %v4996 = vsel %vm4992, %v4976, %v4979
  %v4997 = vsel %vm4995, %v4985, 2102212464
  %v4998 = vsel %vm4994, %v4982, %v4997
  %v4999 = vsel %vm4993, %v4996, %v4998
  %v5000 = vsel %vm4992, %v4979, %v4982
  %v5001 = vsel %vm4995, %v4988, 920167782
  %v5002 = vsel %vm4994, %v4985, %v5001
  %v5003 = vsel %vm4993, %v5000, %v5002
  %v5004 = vsel %vm4992, %v4982, %v4985
  %v5005 = vsel %vm4995, %v4991, 1326507024
  %v5006 = vsel %vm4994, %v4988, %v5005
  %v5007 = vsel %vm4993, %v5004, %v5006
  %v5008 = vshll.u32 %v4968, 8
  %v5009 = vand.u32 %v5008, 65535
  %v5010 = vshrl.u32 %v5008, 16
  %v5011 = vand.u32 %v5007, 65535
  %v5012 = vshrl.u32 %v5007, 16
  %v5013 = vmul.u32 %v5009, %v5011
  %v5014 = vmul.u32 %v5009, %v5012
  %v5015 = vmul.u32 %v5010, %v5011
  %v5016 = vmul.u32 %v5010, %v5012
  %v5017 = vshll.u32 %v5014, 16
  %v5018 = vshrl.u32 %v5014, 16
  %v5019 = vshll.u32 %v5015, 16
  %v5020 = vshrl.u32 %v5015, 16
  %vm5021 = vc.u32 %v5013, %v5017
  %v5022 = vsel %vm5021, 1, 0
  %v5023 = vadd.s32 %v5013, %v5017
  %v5024 = vadd.s32 %v5016, %v5022
  %vm5025 = vc.u32 %v5023, %v5019
  %v5026 = vsel %vm5025, 1, 0
  %v5027 = vadd.s32 %v5023, %v5019
  %v5028 = vadd.s32 %v5024, %v5026
  %v5029 = vadd.s32 %v5028, %v5018
  %v5030 = vadd.s32 %v5029, %v5020
  %v5031 = vand.u32 %v5008, 65535
  %v5032 = vshrl.u32 %v5008, 16
  %v5033 = vand.u32 %v5003, 65535
  %v5034 = vshrl.u32 %v5003, 16
  %v5035 = vmul.u32 %v5031, %v5033
  %v5036 = vmul.u32 %v5031, %v5034
  %v5037 = vmul.u32 %v5032, %v5033
  %v5038 = vmul.u32 %v5032, %v5034
  %v5039 = vshll.u32 %v5036, 16
  %v5040 = vshrl.u32 %v5036, 16
  %v5041 = vshll.u32 %v5037, 16
  %v5042 = vshrl.u32 %v5037, 16
  %vm5043 = vc.u32 %v5035, %v5039
  %v5044 = vsel %vm5043, 1, 0
  %v5045 = vadd.s32 %v5035, %v5039
  %v5046 = vadd.s32 %v5038, %v5044
  %vm5047 = vc.u32 %v5045, %v5041
  %v5048 = vsel %vm5047, 1, 0
  %v5049 = vadd.s32 %v5045, %v5041
  %v5050 = vadd.s32 %v5046, %v5048
  %v5051 = vadd.s32 %v5050, %v5040
  %v5052 = vadd.s32 %v5051, %v5042
  %v5053 = vmul.u32 %v5008, %v4999
  %v5054 = vadd.s32 %v5030, %v5049
  %vm5055 = vc.u32 %v5030, %v5049
  %v5056 = vadd.s32 %v5052, 1
  %v5057 = vsel %vm5055, %v5056, %v5052
  %v5058 = vadd.s32 %v5053, %v5057
  %v5059 = vadd.s32 %v5058, 536870912
  %v5060 = vshrl.u32 %v5059, 30
  %v5061 = vshll.u32 %v5060, 30
  %v5062 = vsub.s32 %v5058, %v5061
  %vm5063 = vcmp.lt.s32.totalorder %v5062, 0
  %v5064 = vsub.s32 0, %v5062
  %v5065 = vsel %vm5063, %v5064, %v5062
  %v5066 = vclz %v5065
  %v5067 = vsub.s32 %v5066, 2
  %vm5068 = vcmp.gt.s32.totalorder 0, %v5067
  %v5069 = vsel %vm5068, 0, %v5067
  %v5070 = vsub.s32 32, %v5069
  %v5071 = vshll.u32 %v5062, %v5069
  %v5072 = vshrl.u32 %v5054, %v5070
  %v5073 = vor.u32 %v5071, %v5072
  %v5074 = vsub.s32 4294967266, %v5069
  %v5075 = vadd.s32 %v5074, 127
  %v5076 = vshll.u32 %v5075, 23
  %v5077 = vor.u32 4788187, %v5076
  %v5078 = vand.u32 2147483647, %v5077
  %v5080 = vcvt.s32.f32 %v5073
  %v5081 = vmul.f32 %v5080, %v5078
  %v5082 = vxor.u32 %v5081, 2147483648
  %v5083 = vsel %vm4962, %v5082, %v5081
  %v5084 = vsub.s32 4, %v5060
  %v5085 = vsel %vm4962, %v5084, %v5060
  %v5086 = vsel %vm4961, %v491, %v5083
  %v5087 = vsel %vm4961, 0, %v5085
  %v5088 = vmul.f32 %v5086, %v5086
  %v5089 = vmul.f32 %v5088, -0.001358992
  %v5090 = vadd.f32 %v5089, 0.041655596
  %v5091 = vmul.f32 %v5088, %v5090
  %v5092 = vadd.f32 %v5091, -0.4999988
  %v5093 = vmul.f32 %v5088, %v5092
  %v5094 = vadd.f32 1.0, %v5093
  %v5095 = vmul.f32 %v5086, %v5086
  %v5096 = vmul.f32 %v5095, -0.00019511016
  %v5097 = vadd.f32 %v5096, 0.008332121
  %v5098 = vmul.f32 %v5095, %v5097
  %v5099 = vadd.f32 %v5098, -0.16666654
  %v5100 = vmul.f32 %v5095, %v5099
  %v5101 = vadd.f32 %v5100, 1.0
  %v5102 = vmul.f32 %v5101, %v5086
  %vm5103 = vweird.f32 %v491
  %v5104 = vand.u32 %v5087, 3
  %vm5105 = vcmp.lt.s32.totalorder %v5104, 2
  %vm5106 = vcmp.eq.s32.totalorder %v5104, 0
  %v5107 = vxor.u32 %v5102, 2147483648
  %v5108 = vsel %vm5106, %v5094, %v5107
  %vm5109 = vcmp.eq.s32.totalorder %v5104, 2
  %v5110 = vxor.u32 %v5094, 2147483648
  %v5111 = vsel %vm5109, %v5110, %v5102
  %v5112 = vsel %vm5105, %v5108, %v5111
  %v5113 = vsel %vm5103, nan, %v5112
  %v5114 = vand.u32 2147483647, %v492
  %vm5115 = vcmp.le.f32.partialorder %v5114, 0.7853982
  %vm5116 = vcmp.lt.s32.totalorder %v492, 0
  %v5117 = vand.u32 %v492, 2139095040
  %v5118 = vshrl.u32 %v5117, 23
  %v5119 = vsub.s32 %v5118, 127
  %v5120 = vand.u32 2147483647, %v492
  %v5121 = vand.u32 %v5120, 8388607
  %v5122 = vor.u32 %v5121, 8388608
  %v5123 = vsub.s32 0, %v5122
  %v5124 = vadd.s32 %v5119, 1
  %vm5125 = vcmp.gt.s32.totalorder %v5124, 0
  %v5126 = vsel %vm5125, %v5124, 0
  %v5127 = vshrl.u32 %v5126, 5
  %v5128 = vand.u32 %v5126, 31
  %v5129 = vsub.s32 32, %v5128
  %v5130 = vshrl.u32 683565275, %v5129
  %v5131 = vshll.u32 683565275, %v5128
  %v5132 = vshrl.u32 2475754826, %v5129
  %v5133 = vor.u32 %v5131, %v5132
  %v5134 = vshll.u32 2475754826, %v5128
  %v5135 = vshrl.u32 2131351028, %v5129
  %v5136 = vor.u32 %v5134, %v5135
  %v5137 = vshll.u32 2131351028, %v5128
  %v5138 = vshrl.u32 2102212464, %v5129
  %v5139 = vor.u32 %v5137, %v5138
  %v5140 = vshll.u32 2102212464, %v5128
  %v5141 = vshrl.u32 920167782, %v5129
  %v5142 = vor.u32 %v5140, %v5141
  %v5143 = vshll.u32 920167782, %v5128
  %v5144 = vshrl.u32 1326507024, %v5129
  %v5145 = vor.u32 %v5143, %v5144
  %vm5146 = vcmp.lt.s32.totalorder %v5127, 1
  %vm5147 = vcmp.lt.s32.totalorder %v5127, 2
  %vm5148 = vcmp.lt.s32.totalorder %v5127, 3
  %vm5149 = vcmp.lt.s32.totalorder %v5127, 4
  %v5150 = vsel %vm5146, %v5130, %v5133
  %v5151 = vsel %vm5149, %v5139, 2102212464
  %v5152 = vsel %vm5148, %v5136, %v5151
  %v5153 = vsel %vm5147, %v5150, %v5152
  %v5154 = vsel %vm5146, %v5133, %v5136
  %v5155 = vsel %vm5149, %v5142, 920167782
  %v5156 = vsel %vm5148, %v5139, %v5155
  %v5157 = vsel %vm5147, %v5154, %v5156
  %v5158 = vsel %vm5146, %v5136, %v5139
  %v5159 = vsel %vm5149, %v5145, 1326507024
  %v5160 = vsel %vm5148, %v5142, %v5159
  %v5161 = vsel %vm5147, %v5158, %v5160
  %v5162 = vshll.u32 %v5122, 8
  %v5163 = vand.u32 %v5162, 65535
  %v5164 = vshrl.u32 %v5162, 16
  %v5165 = vand.u32 %v5161, 65535
  %v5166 = vshrl.u32 %v5161, 16
  %v5167 = vmul.u32 %v5163, %v5165
  %v5168 = vmul.u32 %v5163, %v5166
  %v5169 = vmul.u32 %v5164, %v5165
  %v5170 = vmul.u32 %v5164, %v5166
  %v5171 = vshll.u32 %v5168, 16
  %v5172 = vshrl.u32 %v5168, 16
  %v5173 = vshll.u32 %v5169, 16
  %v5174 = vshrl.u32 %v5169, 16
  %vm5175 = vc.u32 %v5167, %v5171
  %v5176 = vsel %vm5175, 1, 0
  %v5177 = vadd.s32 %v5167, %v5171
  %v5178 = vadd.s32 %v5170, %v5176
  %vm5179 = vc.u32 %v5177, %v5173
  %v5180 = vsel %vm5179, 1, 0
  %v5181 = vadd.s32 %v5177, %v5173
  %v5182 = vadd.s32 %v5178, %v5180
  %v5183 = vadd.s32 %v5182, %v5172
  %v5184 = vadd.s32 %v5183, %v5174
  %v5185 = vand.u32 %v5162, 65535
  %v5186 = vshrl.u32 %v5162, 16
  %v5187 = vand.u32 %v5157, 65535
  %v5188 = vshrl.u32 %v5157, 16
  %v5189 = vmul.u32 %v5185, %v5187
  %v5190 = vmul.u32 %v5185, %v5188
  %v5191 = vmul.u32 %v5186, %v5187
  %v5192 = vmul.u32 %v5186, %v5188
  %v5193 = vshll.u32 %v5190, 16
  %v5194 = vshrl.u32 %v5190, 16
  %v5195 = vshll.u32 %v5191, 16
  %v5196 = vshrl.u32 %v5191, 16
  %vm5197 = vc.u32 %v5189, %v5193
  %v5198 = vsel %vm5197, 1, 0
  %v5199 = vadd.s32 %v5189, %v5193
  %v5200 = vadd.s32 %v5192, %v5198
  %vm5201 = vc.u32 %v5199, %v5195
  %v5202 = vsel %vm5201, 1, 0
  %v5203 = vadd.s32 %v5199, %v5195
  %v5204 = vadd.s32 %v5200, %v5202
  %v5205 = vadd.s32 %v5204, %v5194
  %v5206 = vadd.s32 %v5205, %v5196
  %v5207 = vmul.u32 %v5162, %v5153
  %v5208 = vadd.s32 %v5184, %v5203
  %vm5209 = vc.u32 %v5184, %v5203
  %v5210 = vadd.s32 %v5206, 1
  %v5211 = vsel %vm5209, %v5210, %v5206
  %v5212 = vadd.s32 %v5207, %v5211
  %v5213 = vadd.s32 %v5212, 536870912
  %v5214 = vshrl.u32 %v5213, 30
  %v5215 = vshll.u32 %v5214, 30
  %v5216 = vsub.s32 %v5212, %v5215
  %vm5217 = vcmp.lt.s32.totalorder %v5216, 0
  %v5218 = vsub.s32 0, %v5216
  %v5219 = vsel %vm5217, %v5218, %v5216
  %v5220 = vclz %v5219
  %v5221 = vsub.s32 %v5220, 2
  %vm5222 = vcmp.gt.s32.totalorder 0, %v5221
  %v5223 = vsel %vm5222, 0, %v5221
  %v5224 = vsub.s32 32, %v5223
  %v5225 = vshll.u32 %v5216, %v5223
  %v5226 = vshrl.u32 %v5208, %v5224
  %v5227 = vor.u32 %v5225, %v5226
  %v5228 = vsub.s32 4294967266, %v5223
  %v5229 = vadd.s32 %v5228, 127
  %v5230 = vshll.u32 %v5229, 23
  %v5231 = vor.u32 4788187, %v5230
  %v5232 = vand.u32 2147483647, %v5231
  %v5234 = vcvt.s32.f32 %v5227
  %v5235 = vmul.f32 %v5234, %v5232
  %v5236 = vxor.u32 %v5235, 2147483648
  %v5237 = vsel %vm5116, %v5236, %v5235
  %v5238 = vsub.s32 4, %v5214
  %v5239 = vsel %vm5116, %v5238, %v5214
  %v5240 = vsel %vm5115, %v492, %v5237
  %v5241 = vsel %vm5115, 0, %v5239
  %v5242 = vmul.f32 %v5240, %v5240
  %v5243 = vmul.f32 %v5242, -0.001358992
  %v5244 = vadd.f32 %v5243, 0.041655596
  %v5245 = vmul.f32 %v5242, %v5244
  %v5246 = vadd.f32 %v5245, -0.4999988
  %v5247 = vmul.f32 %v5242, %v5246
  %v5248 = vadd.f32 1.0, %v5247
  %v5249 = vmul.f32 %v5240, %v5240
  %v5250 = vmul.f32 %v5249, -0.00019511016
  %v5251 = vadd.f32 %v5250, 0.008332121
  %v5252 = vmul.f32 %v5249, %v5251
  %v5253 = vadd.f32 %v5252, -0.16666654
  %v5254 = vmul.f32 %v5249, %v5253
  %v5255 = vadd.f32 %v5254, 1.0
  %v5256 = vmul.f32 %v5255, %v5240
  %vm5257 = vweird.f32 %v492
  %v5258 = vand.u32 %v5241, 3
  %vm5259 = vcmp.lt.s32.totalorder %v5258, 2
  %vm5260 = vcmp.eq.s32.totalorder %v5258, 0
  %v5261 = vxor.u32 %v5256, 2147483648
  %v5262 = vsel %vm5260, %v5248, %v5261
  %vm5263 = vcmp.eq.s32.totalorder %v5258, 2
  %v5264 = vxor.u32 %v5248, 2147483648
  %v5265 = vsel %vm5263, %v5264, %v5256
  %v5266 = vsel %vm5259, %v5262, %v5265
  %v5267 = vsel %vm5257, nan, %v5266
  %v5268 = vand.u32 2147483647, %v493
  %vm5269 = vcmp.le.f32.partialorder %v5268, 0.7853982
  %vm5270 = vcmp.lt.s32.totalorder %v493, 0
  %v5271 = vand.u32 %v493, 2139095040
  %v5272 = vshrl.u32 %v5271, 23
  %v5273 = vsub.s32 %v5272, 127
  %v5274 = vand.u32 2147483647, %v493
  %v5275 = vand.u32 %v5274, 8388607
  %v5276 = vor.u32 %v5275, 8388608
  %v5277 = vsub.s32 0, %v5276
  %v5278 = vadd.s32 %v5273, 1
  %vm5279 = vcmp.gt.s32.totalorder %v5278, 0
  %v5280 = vsel %vm5279, %v5278, 0
  %v5281 = vshrl.u32 %v5280, 5
  %v5282 = vand.u32 %v5280, 31
  %v5283 = vsub.s32 32, %v5282
  %v5284 = vshrl.u32 683565275, %v5283
  %v5285 = vshll.u32 683565275, %v5282
  %v5286 = vshrl.u32 2475754826, %v5283
  %v5287 = vor.u32 %v5285, %v5286
  %v5288 = vshll.u32 2475754826, %v5282
  %v5289 = vshrl.u32 2131351028, %v5283
  %v5290 = vor.u32 %v5288, %v5289
  %v5291 = vshll.u32 2131351028, %v5282
  %v5292 = vshrl.u32 2102212464, %v5283
  %v5293 = vor.u32 %v5291, %v5292
  %v5294 = vshll.u32 2102212464, %v5282
  %v5295 = vshrl.u32 920167782, %v5283
  %v5296 = vor.u32 %v5294, %v5295
  %v5297 = vshll.u32 920167782, %v5282
  %v5298 = vshrl.u32 1326507024, %v5283
  %v5299 = vor.u32 %v5297, %v5298
  %vm5300 = vcmp.lt.s32.totalorder %v5281, 1
  %vm5301 = vcmp.lt.s32.totalorder %v5281, 2
  %vm5302 = vcmp.lt.s32.totalorder %v5281, 3
  %vm5303 = vcmp.lt.s32.totalorder %v5281, 4
  %v5304 = vsel %vm5300, %v5284, %v5287
  %v5305 = vsel %vm5303, %v5293, 2102212464
  %v5306 = vsel %vm5302, %v5290, %v5305
  %v5307 = vsel %vm5301, %v5304, %v5306
  %v5308 = vsel %vm5300, %v5287, %v5290
  %v5309 = vsel %vm5303, %v5296, 920167782
  %v5310 = vsel %vm5302, %v5293, %v5309
  %v5311 = vsel %vm5301, %v5308, %v5310
  %v5312 = vsel %vm5300, %v5290, %v5293
  %v5313 = vsel %vm5303, %v5299, 1326507024
  %v5314 = vsel %vm5302, %v5296, %v5313
  %v5315 = vsel %vm5301, %v5312, %v5314
  %v5316 = vshll.u32 %v5276, 8
  %v5317 = vand.u32 %v5316, 65535
  %v5318 = vshrl.u32 %v5316, 16
  %v5319 = vand.u32 %v5315, 65535
  %v5320 = vshrl.u32 %v5315, 16
  %v5321 = vmul.u32 %v5317, %v5319
  %v5322 = vmul.u32 %v5317, %v5320
  %v5323 = vmul.u32 %v5318, %v5319
  %v5324 = vmul.u32 %v5318, %v5320
  %v5325 = vshll.u32 %v5322, 16
  %v5326 = vshrl.u32 %v5322, 16
  %v5327 = vshll.u32 %v5323, 16
  %v5328 = vshrl.u32 %v5323, 16
  %vm5329 = vc.u32 %v5321, %v5325
  %v5330 = vsel %vm5329, 1, 0
  %v5331 = vadd.s32 %v5321, %v5325
  %v5332 = vadd.s32 %v5324, %v5330
  %vm5333 = vc.u32 %v5331, %v5327
  %v5334 = vsel %vm5333, 1, 0
  %v5335 = vadd.s32 %v5331, %v5327
  %v5336 = vadd.s32 %v5332, %v5334
  %v5337 = vadd.s32 %v5336, %v5326
  %v5338 = vadd.s32 %v5337, %v5328
  %v5339 = vand.u32 %v5316, 65535
  %v5340 = vshrl.u32 %v5316, 16
  %v5341 = vand.u32 %v5311, 65535
  %v5342 = vshrl.u32 %v5311, 16
  %v5343 = vmul.u32 %v5339, %v5341
  %v5344 = vmul.u32 %v5339, %v5342
  %v5345 = vmul.u32 %v5340, %v5341
  %v5346 = vmul.u32 %v5340, %v5342
  %v5347 = vshll.u32 %v5344, 16
  %v5348 = vshrl.u32 %v5344, 16
  %v5349 = vshll.u32 %v5345, 16
  %v5350 = vshrl.u32 %v5345, 16
  %vm5351 = vc.u32 %v5343, %v5347
  %v5352 = vsel %vm5351, 1, 0
  %v5353 = vadd.s32 %v5343, %v5347
  %v5354 = vadd.s32 %v5346, %v5352
  %vm5355 = vc.u32 %v5353, %v5349
  %v5356 = vsel %vm5355, 1, 0
  %v5357 = vadd.s32 %v5353, %v5349
  %v5358 = vadd.s32 %v5354, %v5356
  %v5359 = vadd.s32 %v5358, %v5348
  %v5360 = vadd.s32 %v5359, %v5350
  %v5361 = vmul.u32 %v5316, %v5307
  %v5362 = vadd.s32 %v5338, %v5357
  %vm5363 = vc.u32 %v5338, %v5357
  %v5364 = vadd.s32 %v5360, 1
  %v5365 = vsel %vm5363, %v5364, %v5360
  %v5366 = vadd.s32 %v5361, %v5365
  %v5367 = vadd.s32 %v5366, 536870912
  %v5368 = vshrl.u32 %v5367, 30
  %v5369 = vshll.u32 %v5368, 30
  %v5370 = vsub.s32 %v5366, %v5369
  %vm5371 = vcmp.lt.s32.totalorder %v5370, 0
  %v5372 = vsub.s32 0, %v5370
  %v5373 = vsel %vm5371, %v5372, %v5370
  %v5374 = vclz %v5373
  %v5375 = vsub.s32 %v5374, 2
  %vm5376 = vcmp.gt.s32.totalorder 0, %v5375
  %v5377 = vsel %vm5376, 0, %v5375
  %v5378 = vsub.s32 32, %v5377
  %v5379 = vshll.u32 %v5370, %v5377
  %v5380 = vshrl.u32 %v5362, %v5378
  %v5381 = vor.u32 %v5379, %v5380
  %v5382 = vsub.s32 4294967266, %v5377
  %v5383 = vadd.s32 %v5382, 127
  %v5384 = vshll.u32 %v5383, 23
  %v5385 = vor.u32 4788187, %v5384
  %v5386 = vand.u32 2147483647, %v5385
  %v5388 = vcvt.s32.f32 %v5381
  %v5389 = vmul.f32 %v5388, %v5386
  %v5390 = vxor.u32 %v5389, 2147483648
  %v5391 = vsel %vm5270, %v5390, %v5389
  %v5392 = vsub.s32 4, %v5368
  %v5393 = vsel %vm5270, %v5392, %v5368
  %v5394 = vsel %vm5269, %v493, %v5391
  %v5395 = vsel %vm5269, 0, %v5393
  %v5396 = vmul.f32 %v5394, %v5394
  %v5397 = vmul.f32 %v5396, -0.001358992
  %v5398 = vadd.f32 %v5397, 0.041655596
  %v5399 = vmul.f32 %v5396, %v5398
  %v5400 = vadd.f32 %v5399, -0.4999988
  %v5401 = vmul.f32 %v5396, %v5400
  %v5402 = vadd.f32 1.0, %v5401
  %v5403 = vmul.f32 %v5394, %v5394
  %v5404 = vmul.f32 %v5403, -0.00019511016
  %v5405 = vadd.f32 %v5404, 0.008332121
  %v5406 = vmul.f32 %v5403, %v5405
  %v5407 = vadd.f32 %v5406, -0.16666654
  %v5408 = vmul.f32 %v5403, %v5407
  %v5409 = vadd.f32 %v5408, 1.0
  %v5410 = vmul.f32 %v5409, %v5394
  %vm5411 = vweird.f32 %v493
  %v5412 = vand.u32 %v5395, 3
  %vm5413 = vcmp.lt.s32.totalorder %v5412, 2
  %vm5414 = vcmp.eq.s32.totalorder %v5412, 0
  %v5415 = vxor.u32 %v5410, 2147483648
  %v5416 = vsel %vm5414, %v5402, %v5415
  %vm5417 = vcmp.eq.s32.totalorder %v5412, 2
  %v5418 = vxor.u32 %v5402, 2147483648
  %v5419 = vsel %vm5417, %v5418, %v5410
  %v5420 = vsel %vm5413, %v5416, %v5419
  %v5421 = vsel %vm5411, nan, %v5420
  %v5422 = vadd.f32 %v647, 1.0
  %v5423 = vadd.f32 %v801, 1.0
  %v5424 = vadd.f32 %v955, 1.0
  %v5425 = vadd.f32 %v1109, 1.0
  %v5426 = vadd.f32 %v1263, 1.0
  %v5427 = vadd.f32 %v1417, 1.0
  %v5428 = vadd.f32 %v1571, 1.0
  %v5429 = vadd.f32 %v1725, 1.0
  %v5430 = vadd.f32 %v1879, 1.0
  %v5431 = vadd.f32 %v2033, 1.0
  %v5432 = vadd.f32 %v2187, 1.0
  %v5433 = vadd.f32 %v2341, 1.0
  %v5434 = vadd.f32 %v2495, 1.0
  %v5435 = vadd.f32 %v2649, 1.0
  %v5436 = vadd.f32 %v2803, 1.0
  %v5437 = vadd.f32 %v2957, 1.0
  %v5438 = vadd.f32 %v3111, 1.0
  %v5439 = vadd.f32 %v3265, 1.0
  %v5440 = vadd.f32 %v3419, 1.0
  %v5441 = vadd.f32 %v3573, 1.0
  %v5442 = vadd.f32 %v3727, 1.0
  %v5443 = vadd.f32 %v3881, 1.0
  %v5444 = vadd.f32 %v4035, 1.0
  %v5445 = vadd.f32 %v4189, 1.0
  %v5446 = vadd.f32 %v4343, 1.0
  %v5447 = vadd.f32 %v4497, 1.0
  %v5448 = vadd.f32 %v4651, 1.0
  %v5449 = vadd.f32 %v4805, 1.0
  %v5450 = vadd.f32 %v4959, 1.0
  %v5451 = vadd.f32 %v5113, 1.0
  %v5452 = vadd.f32 %v5267, 1.0
  %v5453 = vadd.f32 %v5421, 1.0
  %v5454 = vmul.f32 %v5422, 0.5
  %v5455 = vmul.f32 %v5423, 0.5
  %v5456 = vmul.f32 %v5424, 0.5
  %v5457 = vmul.f32 %v5425, 0.5
  %v5458 = vmul.f32 %v5426, 0.5
  %v5459 = vmul.f32 %v5427, 0.5
  %v5460 = vmul.f32 %v5428, 0.5
  %v5461 = vmul.f32 %v5429, 0.5
  %v5462 = vmul.f32 %v5430, 0.5
  %v5463 = vmul.f32 %v5431, 0.5
  %v5464 = vmul.f32 %v5432, 0.5
  %v5465 = vmul.f32 %v5433, 0.5
  %v5466 = vmul.f32 %v5434, 0.5
  %v5467 = vmul.f32 %v5435, 0.5
  %v5468 = vmul.f32 %v5436, 0.5
  %v5469 = vmul.f32 %v5437, 0.5
  %v5470 = vmul.f32 %v5438, 0.5
  %v5471 = vmul.f32 %v5439, 0.5
  %v5472 = vmul.f32 %v5440, 0.5
  %v5473 = vmul.f32 %v5441, 0.5
  %v5474 = vmul.f32 %v5442, 0.5
  %v5475 = vmul.f32 %v5443, 0.5
  %v5476 = vmul.f32 %v5444, 0.5
  %v5477 = vmul.f32 %v5445, 0.5
  %v5478 = vmul.f32 %v5446, 0.5
  %v5479 = vmul.f32 %v5447, 0.5
  %v5480 = vmul.f32 %v5448, 0.5
  %v5481 = vmul.f32 %v5449, 0.5
  %v5482 = vmul.f32 %v5450, 0.5
  %v5483 = vmul.f32 %v5451, 0.5
  %v5484 = vmul.f32 %v5452, 0.5
  %v5485 = vmul.f32 %v5453, 0.5
  %vm5486 = vcmp.lt.f32.partialorder %v11, 5.0
  %vm5487 = vcmp.lt.f32.partialorder %v12, 5.0
  %vm5488 = vcmp.lt.f32.partialorder %v13, 5.0
  %vm5489 = vcmp.lt.f32.partialorder %v14, 5.0
  %vm5490 = vcmp.lt.f32.partialorder %v15, 5.0
  %vm5491 = vcmp.lt.f32.partialorder %v16, 5.0
  %vm5492 = vcmp.lt.f32.partialorder %v17, 5.0
  %vm5493 = vcmp.lt.f32.partialorder %v18, 5.0
  %vm5494 = vcmp.lt.f32.partialorder %v19, 5.0
  %vm5495 = vcmp.lt.f32.partialorder %v20, 5.0
  %vm5496 = vcmp.lt.f32.partialorder %v21, 5.0
  %vm5497 = vcmp.lt.f32.partialorder %v22, 5.0
  %vm5498 = vcmp.lt.f32.partialorder %v23, 5.0
  %vm5499 = vcmp.lt.f32.partialorder %v24, 5.0
  %vm5500 = vcmp.lt.f32.partialorder %v25, 5.0
  %vm5501 = vcmp.lt.f32.partialorder %v26, 5.0
  %vm5502 = vcmp.lt.f32.partialorder %v27, 5.0
  %vm5503 = vcmp.lt.f32.partialorder %v28, 5.0
  %vm5504 = vcmp.lt.f32.partialorder %v29, 5.0
  %vm5505 = vcmp.lt.f32.partialorder %v30, 5.0
  %vm5506 = vcmp.lt.f32.partialorder %v31, 5.0
  %vm5507 = vcmp.lt.f32.partialorder %v32, 5.0
  %vm5508 = vcmp.lt.f32.partialorder %v33, 5.0
  %vm5509 = vcmp.lt.f32.partialorder %v34, 5.0
  %vm5510 = vcmp.lt.f32.partialorder %v35, 5.0
  %vm5511 = vcmp.lt.f32.partialorder %v36, 5.0
  %vm5512 = vcmp.lt.f32.partialorder %v37, 5.0
  %vm5513 = vcmp.lt.f32.partialorder %v38, 5.0
  %vm5514 = vcmp.lt.f32.partialorder %v39, 5.0
  %vm5515 = vcmp.lt.f32.partialorder %v40, 5.0
  %vm5516 = vcmp.lt.f32.partialorder %v41, 5.0
  %vm5517 = vcmp.lt.f32.partialorder %v42, 5.0
  %v5518 = vsel %vm5486, %v5454, 0.0
  %v5519 = vsel %vm5487, %v5455, 0.0
  %v5520 = vsel %vm5488, %v5456, 0.0
  %v5521 = vsel %vm5489, %v5457, 0.0
  %v5522 = vsel %vm5490, %v5458, 0.0
  %v5523 = vsel %vm5491, %v5459, 0.0
  %v5524 = vsel %vm5492, %v5460, 0.0
  %v5525 = vsel %vm5493, %v5461, 0.0
  %v5526 = vsel %vm5494, %v5462, 0.0
  %v5527 = vsel %vm5495, %v5463, 0.0
  %v5528 = vsel %vm5496, %v5464, 0.0
  %v5529 = vsel %vm5497, %v5465, 0.0
  %v5530 = vsel %vm5498, %v5466, 0.0
  %v5531 = vsel %vm5499, %v5467, 0.0
  %v5532 = vsel %vm5500, %v5468, 0.0
  %v5533 = vsel %vm5501, %v5469, 0.0
  %v5534 = vsel %vm5502, %v5470, 0.0
  %v5535 = vsel %vm5503, %v5471, 0.0
  %v5536 = vsel %vm5504, %v5472, 0.0
  %v5537 = vsel %vm5505, %v5473, 0.0
  %v5538 = vsel %vm5506, %v5474, 0.0
  %v5539 = vsel %vm5507, %v5475, 0.0
  %v5540 = vsel %vm5508, %v5476, 0.0
  %v5541 = vsel %vm5509, %v5477, 0.0
  %v5542 = vsel %vm5510, %v5478, 0.0
  %v5543 = vsel %vm5511, %v5479, 0.0
  %v5544 = vsel %vm5512, %v5480, 0.0
  %v5545 = vsel %vm5513, %v5481, 0.0
  %v5546 = vsel %vm5514, %v5482, 0.0
  %v5547 = vsel %vm5515, %v5483, 0.0
  %v5548 = vsel %vm5516, %v5484, 0.0
  %v5549 = vsel %vm5517, %v5485, 0.0
  %5551 = vset.pattern.permute.xlu0 0
  %5552 = vperm.xlu0 %5551, %v5518
  %v5553 = vpop.permute.xlu0 %5552
  %5556 = vset.pattern.permute.xlu0 0
  %5557 = vperm.xlu0 %5556, %v5519
  %v5558 = vpop.permute.xlu0 %5557
  %5561 = vset.pattern.permute.xlu0 0
  %5562 = vperm.xlu0 %5561, %v5520
  %v5563 = vpop.permute.xlu0 %5562
  %5566 = vset.pattern.permute.xlu0 0
  %5567 = vperm.xlu0 %5566, %v5521
  %v5568 = vpop.permute.xlu0 %5567
  %5571 = vset.pattern.permute.xlu0 0
  %5572 = vperm.xlu0 %5571, %v5522
  %v5573 = vpop.permute.xlu0 %5572
  %5576 = vset.pattern.permute.xlu0 0
  %5577 = vperm.xlu0 %5576, %v5523
  %v5578 = vpop.permute.xlu0 %5577
  %5581 = vset.pattern.permute.xlu0 0
  %5582 = vperm.xlu0 %5581, %v5524
  %v5583 = vpop.permute.xlu0 %5582
  %5586 = vset.pattern.permute.xlu0 0
  %5587 = vperm.xlu0 %5586, %v5525
  %v5588 = vpop.permute.xlu0 %5587
  %5591 = vset.pattern.permute.xlu0 0
  %5592 = vperm.xlu0 %5591, %v5526
  %v5593 = vpop.permute.xlu0 %5592
  %5596 = vset.pattern.permute.xlu0 0
  %5597 = vperm.xlu0 %5596, %v5527
  %v5598 = vpop.permute.xlu0 %5597
  %5601 = vset.pattern.permute.xlu0 0
  %5602 = vperm.xlu0 %5601, %v5528
  %v5603 = vpop.permute.xlu0 %5602
  %5606 = vset.pattern.permute.xlu0 0
  %5607 = vperm.xlu0 %5606, %v5529
  %v5608 = vpop.permute.xlu0 %5607
  %5611 = vset.pattern.permute.xlu0 0
  %5612 = vperm.xlu0 %5611, %v5530
  %v5613 = vpop.permute.xlu0 %5612
  %5616 = vset.pattern.permute.xlu0 0
  %5617 = vperm.xlu0 %5616, %v5531
  %v5618 = vpop.permute.xlu0 %5617
  %5621 = vset.pattern.permute.xlu0 0
  %5622 = vperm.xlu0 %5621, %v5532
  %v5623 = vpop.permute.xlu0 %5622
  %5626 = vset.pattern.permute.xlu0 0
  %5627 = vperm.xlu0 %5626, %v5533
  %v5628 = vpop.permute.xlu0 %5627
  %5631 = vset.pattern.permute.xlu0 0
  %5632 = vperm.xlu0 %5631, %v5534
  %v5633 = vpop.permute.xlu0 %5632
  %5636 = vset.pattern.permute.xlu0 0
  %5637 = vperm.xlu0 %5636, %v5535
  %v5638 = vpop.permute.xlu0 %5637
  %5641 = vset.pattern.permute.xlu0 0
  %5642 = vperm.xlu0 %5641, %v5536
  %v5643 = vpop.permute.xlu0 %5642
  %5646 = vset.pattern.permute.xlu0 0
  %5647 = vperm.xlu0 %5646, %v5537
  %v5648 = vpop.permute.xlu0 %5647
  %5651 = vset.pattern.permute.xlu0 0
  %5652 = vperm.xlu0 %5651, %v5538
  %v5653 = vpop.permute.xlu0 %5652
  %5656 = vset.pattern.permute.xlu0 0
  %5657 = vperm.xlu0 %5656, %v5539
  %v5658 = vpop.permute.xlu0 %5657
  %5661 = vset.pattern.permute.xlu0 0
  %5662 = vperm.xlu0 %5661, %v5540
  %v5663 = vpop.permute.xlu0 %5662
  %5666 = vset.pattern.permute.xlu0 0
  %5667 = vperm.xlu0 %5666, %v5541
  %v5668 = vpop.permute.xlu0 %5667
  %5671 = vset.pattern.permute.xlu0 0
  %5672 = vperm.xlu0 %5671, %v5542
  %v5673 = vpop.permute.xlu0 %5672
  %5676 = vset.pattern.permute.xlu0 0
  %5677 = vperm.xlu0 %5676, %v5543
  %v5678 = vpop.permute.xlu0 %5677
  %5681 = vset.pattern.permute.xlu0 0
  %5682 = vperm.xlu0 %5681, %v5544
  %v5683 = vpop.permute.xlu0 %5682
  %5686 = vset.pattern.permute.xlu0 0
  %5687 = vperm.xlu0 %5686, %v5545
  %v5688 = vpop.permute.xlu0 %5687
  %5691 = vset.pattern.permute.xlu0 0
  %5692 = vperm.xlu0 %5691, %v5546
  %v5693 = vpop.permute.xlu0 %5692
  %5696 = vset.pattern.permute.xlu0 0
  %5697 = vperm.xlu0 %5696, %v5547
  %v5698 = vpop.permute.xlu0 %5697
  %5701 = vset.pattern.permute.xlu0 0
  %5702 = vperm.xlu0 %5701, %v5548
  %v5703 = vpop.permute.xlu0 %5702
  %5706 = vset.pattern.permute.xlu0 0
  %5707 = vperm.xlu0 %5706, %v5549
  %v5708 = vpop.permute.xlu0 %5707
  %v5710 = vmul.f32 %v399, %v5553
  %v5711 = vmul.f32 %v401, %v5558
  %v5712 = vmul.f32 %v403, %v5563
  %v5713 = vmul.f32 %v405, %v5568
  %v5714 = vmul.f32 %v407, %v5573
  %v5715 = vmul.f32 %v409, %v5578
  %v5716 = vmul.f32 %v411, %v5583
  %v5717 = vmul.f32 %v413, %v5588
  %v5718 = vmul.f32 %v415, %v5593
  %v5719 = vmul.f32 %v417, %v5598
  %v5720 = vmul.f32 %v419, %v5603
  %v5721 = vmul.f32 %v421, %v5608
  %v5722 = vmul.f32 %v423, %v5613
  %v5723 = vmul.f32 %v425, %v5618
  %v5724 = vmul.f32 %v427, %v5623
  %v5725 = vmul.f32 %v429, %v5628
  %v5726 = vmul.f32 %v431, %v5633
  %v5727 = vmul.f32 %v433, %v5638
  %v5728 = vmul.f32 %v435, %v5643
  %v5729 = vmul.f32 %v437, %v5648
  %v5730 = vmul.f32 %v439, %v5653
  %v5731 = vmul.f32 %v441, %v5658
  %v5732 = vmul.f32 %v443, %v5663
  %v5733 = vmul.f32 %v445, %v5668
  %v5734 = vmul.f32 %v447, %v5673
  %v5735 = vmul.f32 %v449, %v5678
  %v5736 = vmul.f32 %v451, %v5683
  %v5737 = vmul.f32 %v453, %v5688
  %v5738 = vmul.f32 %v455, %v5693
  %v5739 = vmul.f32 %v457, %v5698
  %v5740 = vmul.f32 %v459, %v5703
  %v5741 = vmul.f32 %v461, %v5708
  %vm5742 = vcmask 818176
  %5743 = vst.msk [vmem:[%s2] sm:$0xff] %vm5742, %v5710
  %5744 = vst.msk [vmem:[%s2 + $0x8] sm:$0xff] %vm5742, %v5711
  %5745 = vst.msk [vmem:[%s2 + $0x10] sm:$0xff] %vm5742, %v5712
  %5746 = vst.msk [vmem:[%s2 + $0x18] sm:$0xff] %vm5742, %v5713
  %5747 = vst.msk [vmem:[%s2 + $0x20] sm:$0xff] %vm5742, %v5714
  %5748 = vst.msk [vmem:[%s2 + $0x28] sm:$0xff] %vm5742, %v5715
  %5749 = vst.msk [vmem:[%s2 + $0x30] sm:$0xff] %vm5742, %v5716
  %5750 = vst.msk [vmem:[%s2 + $0x38] sm:$0xff] %vm5742, %v5717
  %5751 = vst.msk [vmem:[%s2 + $0x40] sm:$0xff] %vm5742, %v5718
  %5752 = vst.msk [vmem:[%s2 + $0x48] sm:$0xff] %vm5742, %v5719
  %5753 = vst.msk [vmem:[%s2 + $0x50] sm:$0xff] %vm5742, %v5720
  %5754 = vst.msk [vmem:[%s2 + $0x58] sm:$0xff] %vm5742, %v5721
  %5755 = vst.msk [vmem:[%s2 + $0x60] sm:$0xff] %vm5742, %v5722
  %5756 = vst.msk [vmem:[%s2 + $0x68] sm:$0xff] %vm5742, %v5723
  %5757 = vst.msk [vmem:[%s2 + $0x70] sm:$0xff] %vm5742, %v5724
  %5758 = vst.msk [vmem:[%s2 + $0x78] sm:$0xff] %vm5742, %v5725
  %5759 = vst.msk [vmem:[%s2 + $0x80] sm:$0xff] %vm5742, %v5726
  %5760 = vst.msk [vmem:[%s2 + $0x88] sm:$0xff] %vm5742, %v5727
  %5761 = vst.msk [vmem:[%s2 + $0x90] sm:$0xff] %vm5742, %v5728
  %5762 = vst.msk [vmem:[%s2 + $0x98] sm:$0xff] %vm5742, %v5729
  %5763 = vst.msk [vmem:[%s2 + $0xa0] sm:$0xff] %vm5742, %v5730
  %5764 = vst.msk [vmem:[%s2 + $0xa8] sm:$0xff] %vm5742, %v5731
  %5765 = vst.msk [vmem:[%s2 + $0xb0] sm:$0xff] %vm5742, %v5732
  %5766 = vst.msk [vmem:[%s2 + $0xb8] sm:$0xff] %vm5742, %v5733
  %5767 = vst.msk [vmem:[%s2 + $0xc0] sm:$0xff] %vm5742, %v5734
  %5768 = vst.msk [vmem:[%s2 + $0xc8] sm:$0xff] %vm5742, %v5735
  %5769 = vst.msk [vmem:[%s2 + $0xd0] sm:$0xff] %vm5742, %v5736
  %5770 = vst.msk [vmem:[%s2 + $0xd8] sm:$0xff] %vm5742, %v5737
  %5771 = vst.msk [vmem:[%s2 + $0xe0] sm:$0xff] %vm5742, %v5738
  %5772 = vst.msk [vmem:[%s2 + $0xe8] sm:$0xff] %vm5742, %v5739
  %5773 = vst.msk [vmem:[%s2 + $0xf0] sm:$0xff] %vm5742, %v5740
  %5774 = vst.msk [vmem:[%s2 + $0xf8] sm:$0xff] %vm5742, %v5741
  // Predicated region
  $region10: #{tpu_custom_call.1} parent=0 // pred_check
    _
  $region11: #{tpu_custom_call.1} parent=0 // pred_check_branch
    %5776 = sbr.rel (0) target = $region13
  $region12: #{tpu_custom_call.1} parent=0 // pred_region
    _
  $region13: #{tpu_custom_call.1} parent=0 // pred_fallthru
    _
  // Predicated region
  $region14: #{tpu_custom_call.1} parent=0 // pred_check
    _
  $region15: #{tpu_custom_call.1} parent=0 // pred_check_branch
    %5778 = sbr.rel (0) target = $region17
  $region16: #{tpu_custom_call.1} parent=0 // pred_region
    _
  $region17: #{tpu_custom_call.1} parent=0 // pred_fallthru
    _

</llo_original>
